<compile_context>
chip_gen: v7x
topology: tpu7x:2x2x1
jax: 0.10.0
libtpu: 0.0.40
codegen_flags: <defaults>
</compile_context>

<pallas_src>
import functools

import jax
import jax.numpy as jnp
from jax.experimental import pallas as pl
from jax.experimental.pallas import tpu as pltpu


LATENT_DIM = 100
HIDDEN = (256, 512, 1024)
OUT_CHANNELS = 1        # MNIST
IMAGE_SIZE = 28
OUTPUT_DIM = OUT_CHANNELS * IMAGE_SIZE * IMAGE_SIZE  # 784

LATENT_PAD = 128        # 100 -> 128   (lane aligned)
OUTPUT_PAD = 896        # 784 -> 896   (7 * 128, lane aligned)


def _round_up(x, m):
    return (x + m - 1) // m * m


def _leaky_relu(x, slope=0.2):
    return jnp.where(x > 0, x, slope * x)


def generator_kernel(z_ref,
                     w1_ref, b1_ref,
                     w2_ref, b2_ref,
                     w3_ref, b3_ref,
                     w4_ref, b4_ref,
                     out_ref):
    """One batch tile: 4 fused Linear(+bias) layers, LeakyReLU x3, Tanh.

    MXU matmuls take bf16 operands and accumulate in fp32; the bias/LeakyReLU
    epilogues of layers 1-3 run in bf16 (the next matmul consumes bf16 anyway),
    and the final tanh runs on a bf16 operand with a bf16 store.
    """
    # Layer 1: (TB, 128) @ (128, 256)
    h = jnp.dot(z_ref[...], w1_ref[...], preferred_element_type=jnp.float32)
    h = _leaky_relu(h.astype(jnp.bfloat16) + b1_ref[...])
    # Layer 2: (TB, 256) @ (256, 512)
    h = jnp.dot(h, w2_ref[...], preferred_element_type=jnp.float32)
    h = _leaky_relu(h.astype(jnp.bfloat16) + b2_ref[...])
    # Layer 3: (TB, 512) @ (512, 1024)
    h = jnp.dot(h, w3_ref[...], preferred_element_type=jnp.float32)
    h = _leaky_relu(h.astype(jnp.bfloat16) + b3_ref[...])
    # Layer 4: (TB, 1024) @ (1024, 896) -> Tanh (bf16 EUP on v6e/v7x)
    h = jnp.dot(h, w4_ref[...], preferred_element_type=jnp.float32)
    out_ref[...] = jnp.tanh((h + b4_ref[...]).astype(jnp.bfloat16))


def prepare_params(params_f32):
    """Lane-align and cast the master fp32 params for the kernel.

    w1 rows padded 100 -> 128 with zeros; w4/b4 columns padded 784 -> 896 with
    zeros (so the extra output lanes carry tanh(0)=0 and are sliced off later).
    Weights -> bf16; b1..b3 -> bf16 (bf16 epilogue); b4 stays fp32 (added to the
    fp32 accumulator before the bf16 tanh).
    """
    (w1, b1), (w2, b2), (w3, b3), (w4, b4) = params_f32
    w1p = jnp.zeros((LATENT_PAD, HIDDEN[0]), jnp.float32).at[:LATENT_DIM, :].set(w1)
    w4p = jnp.zeros((HIDDEN[2], OUTPUT_PAD), jnp.float32).at[:, :OUTPUT_DIM].set(w4)
    b4p = jnp.zeros((1, OUTPUT_PAD), jnp.float32).at[:, :OUTPUT_DIM].set(b4)
    return ((w1p.astype(jnp.bfloat16), b1.astype(jnp.bfloat16)),
            (w2.astype(jnp.bfloat16), b2.astype(jnp.bfloat16)),
            (w3.astype(jnp.bfloat16), b3.astype(jnp.bfloat16)),
            (w4p.astype(jnp.bfloat16), b4p))


@functools.partial(jax.jit, static_argnames=("tile_b",))
def generator_forward(z, kernel_params, *, tile_b=512):
    """z: (B, LATENT_DIM) f32. Returns (B, OUT_CHANNELS, IMAGE_SIZE, IMAGE_SIZE) f32."""
    B = z.shape[0]
    (w1, b1), (w2, b2), (w3, b3), (w4, b4) = kernel_params

    # Batch tile: multiple of 16 (bf16 packs 2 rows/sublane), capped by the batch,
    # and capped so there are >= 2 grid steps when the batch allows (v7x has 2 TCs).
    b_pad16 = _round_up(max(B, 1), 16)
    tile_b = _round_up(min(tile_b, b_pad16), 16)
    if b_pad16 >= 32:
        tile_b = min(tile_b, _round_up((b_pad16 + 1) // 2, 16))
    B_pad = _round_up(B, tile_b)

    # Lane-align latent dim (100 -> 128) and sublane-align the batch; bf16 operand.
    zp = jnp.zeros((B_pad, LATENT_PAD), jnp.bfloat16)
    zp = zp.at[:B, :LATENT_DIM].set(z.astype(jnp.bfloat16))

    grid = (B_pad // tile_b,)

    def tiled(feat):          # batch-tiled activations: new block each grid step
        return pl.BlockSpec((tile_b, feat), lambda i: (i, 0))

    def resident(arr):        # grid-invariant weights/biases: single-buffered in VMEM
        return pl.BlockSpec(arr.shape, lambda i: (0, 0),
                            pipeline_mode=pl.Buffered(1))

    # VMEM footprint: single-buffered params + double-buffered z/out tiles +
    # bf16 intermediates + fp32 accumulator headroom; clamp to a safe scoped limit.
    param_bytes = sum(int(a.size) * a.dtype.itemsize
                      for pair in kernel_params for a in pair)
    per_row_bytes = (2 * LATENT_PAD * 2          # z tile, bf16, double buffered
                     + 2 * OUTPUT_PAD * 2        # out tile, bf16, double buffered
                     + sum(HIDDEN) * 2 + OUTPUT_PAD * 2   # bf16 activations
                     + 2 * max(HIDDEN[2], OUTPUT_PAD) * 4)  # fp32 accumulators
    vmem_bytes = param_bytes + tile_b * per_row_bytes
    vmem_limit = int(min(max(vmem_bytes * 3 // 2, 32 * 1024 * 1024),
                         56 * 1024 * 1024))

    flops = 2 * B_pad * (LATENT_PAD * HIDDEN[0] + HIDDEN[0] * HIDDEN[1]
                         + HIDDEN[1] * HIDDEN[2] + HIDDEN[2] * OUTPUT_PAD)
    bytes_accessed = param_bytes + B_pad * (LATENT_PAD * 2 + OUTPUT_PAD * 2)

    flat = pl.pallas_call(
        generator_kernel,
        out_shape=jax.ShapeDtypeStruct((B_pad, OUTPUT_PAD), jnp.bfloat16),
        grid=grid,
        in_specs=[
            tiled(LATENT_PAD),
            resident(w1), resident(b1),
            resident(w2), resident(b2),
            resident(w3), resident(b3),
            resident(w4), resident(b4),
        ],
        out_specs=tiled(OUTPUT_PAD),
        compiler_params=pltpu.CompilerParams(
            dimension_semantics=("parallel",),   # batch tiles independent (v7x 2-TC)
            vmem_limit_bytes=vmem_limit,
        ),
        cost_estimate=pl.CostEstimate(
            flops=flops,
            transcendentals=B_pad * OUTPUT_PAD,
            bytes_accessed=bytes_accessed,
        ),
    )(zp, w1, b1, w2, b2, w3, b3, w4, b4)

    # Drop batch / lane padding (bf16 -> half the crop traffic), cast back to f32,
    # then the `view(-1, C, H, W)` (pure metadata).
    out = flat[:B, :OUTPUT_DIM].astype(jnp.float32)
    return out.reshape(B, OUT_CHANNELS, IMAGE_SIZE, IMAGE_SIZE)


def init_params(key):
    """Deterministic synthetic fp32 parameters (same shapes as the nn.Linear layers),
    stored as (in_features, out_features) for `x @ W + b`."""
    dims = (LATENT_DIM,) + HIDDEN + (OUTPUT_DIM,)
    params = []
    for i in range(len(dims) - 1):
        key, kw, kb = jax.random.split(key, 3)
        fan_in = dims[i]
        bound = 1.0 / jnp.sqrt(fan_in)
        w = jax.random.uniform(kw, (dims[i], dims[i + 1]), jnp.float32,
                               minval=-bound, maxval=bound)
        b = jax.random.uniform(kb, (1, dims[i + 1]), jnp.float32,
                               minval=-bound, maxval=bound)
        params.append((w, b))
    return params


def reference_forward(z, params_f32):
    """Pure-JAX fp32 reference for a sanity check."""
    h = z
    n = len(params_f32)
    for i, (w, b) in enumerate(params_f32):
        h = h @ w + b
        h = _leaky_relu(h) if i < n - 1 else jnp.tanh(h)
    return h.reshape(-1, OUT_CHANNELS, IMAGE_SIZE, IMAGE_SIZE)


if __name__ == "__main__":
    key = jax.random.PRNGKey(0)
    key, kz = jax.random.split(key)

    # Small test batch: B=40 with tile_b=16 exercises a 3-step batch grid plus
    # batch padding (40 -> 48) that must be sliced off correctly.
    B = 40
    z = jax.random.normal(kz, (B, LATENT_DIM), dtype=jnp.float32)

    master_params = init_params(key)               # fp32 "master" weights
    kernel_params = prepare_params(master_params)  # padded + bf16 for the kernel

    out = generator_forward(z, kernel_params, tile_b=16)
    out = jax.block_until_ready(out)

    ref = reference_forward(z, master_params)
    assert out.shape == (B, OUT_CHANNELS, IMAGE_SIZE, IMAGE_SIZE)
    # bf16 weights/epilogues/output vs fp32 reference: relaxed tolerance
    # (tanh output lies in [-1, 1]).
    max_err = float(jnp.max(jnp.abs(out - ref)))
    assert max_err < 6e-2, f"max abs err {max_err}"

    print("KERNEL_OK")
</pallas_src>

<mosaic_0001>
module attributes {stable_mosaic.version = 11 : i64} {
  func.func @generator_kernel(%arg0: i32, %arg1: memref<16x128xbf16, #tpu.memory_space<vmem>>, %arg2: memref<128x256xbf16, #tpu.memory_space<vmem>>, %arg3: memref<1x256xbf16, #tpu.memory_space<vmem>>, %arg4: memref<256x512xbf16, #tpu.memory_space<vmem>>, %arg5: memref<1x512xbf16, #tpu.memory_space<vmem>>, %arg6: memref<512x1024xbf16, #tpu.memory_space<vmem>>, %arg7: memref<1x1024xbf16, #tpu.memory_space<vmem>>, %arg8: memref<1024x896xbf16, #tpu.memory_space<vmem>>, %arg9: memref<1x896xf32, #tpu.memory_space<vmem>>, %arg10: memref<16x896xbf16, #tpu.memory_space<vmem>>) attributes {dimension_semantics = [#tpu.dimension_semantics<parallel>], iteration_bounds = array<i64: 3>, scalar_prefetch = 0 : i64, scratch_operands = 0 : i64, tpu.core_type = #tpu.core_type<tc>, window_params = [{transform_indices = @transform_0, window_bounds = array<i64: 16, 128>}, {pipeline_mode = #tpu.pipeline_mode<synchronous>, transform_indices = @transform_1, window_bounds = array<i64: 128, 256>}, {pipeline_mode = #tpu.pipeline_mode<synchronous>, transform_indices = @transform_2, window_bounds = array<i64: 1, 256>}, {pipeline_mode = #tpu.pipeline_mode<synchronous>, transform_indices = @transform_3, window_bounds = array<i64: 256, 512>}, {pipeline_mode = #tpu.pipeline_mode<synchronous>, transform_indices = @transform_4, window_bounds = array<i64: 1, 512>}, {pipeline_mode = #tpu.pipeline_mode<synchronous>, transform_indices = @transform_5, window_bounds = array<i64: 512, 1024>}, {pipeline_mode = #tpu.pipeline_mode<synchronous>, transform_indices = @transform_6, window_bounds = array<i64: 1, 1024>}, {pipeline_mode = #tpu.pipeline_mode<synchronous>, transform_indices = @transform_7, window_bounds = array<i64: 1024, 896>}, {pipeline_mode = #tpu.pipeline_mode<synchronous>, transform_indices = @transform_8, window_bounds = array<i64: 1, 896>}, {transform_indices = @transform_9, window_bounds = array<i64: 16, 896>}]} {
    %c0 = arith.constant 0 : index
    %c0_0 = arith.constant 0 : index
    %0 = vector.load %arg1[%c0, %c0_0] : memref<16x128xbf16, #tpu.memory_space<vmem>>, vector<16x128xbf16>
    %c0_1 = arith.constant 0 : index
    %c0_2 = arith.constant 0 : index
    %1 = vector.load %arg2[%c0_1, %c0_2] : memref<128x256xbf16, #tpu.memory_space<vmem>>, vector<128x256xbf16>
    %cst = arith.constant dense<0.000000e+00> : vector<16x256xf32>
    %2 = tpu.matmul %0, %1, %cst {dimension_numbers = #tpu.dot_dimension_numbers<[1], [0], [0], [1], [0, 0, 1, 1], [], []>} : vector<16x128xbf16>, vector<128x256xbf16>, vector<16x256xf32> -> vector<16x256xf32>
    %3 = arith.truncf %2 : vector<16x256xf32> to vector<16x256xbf16>
    %c0_3 = arith.constant 0 : index
    %c0_4 = arith.constant 0 : index
    %4 = vector.load %arg3[%c0_3, %c0_4] : memref<1x256xbf16, #tpu.memory_space<vmem>>, vector<1x256xbf16>
    %5 = vector.broadcast %4 : vector<1x256xbf16> to vector<16x256xbf16>
    %6 = arith.addf %3, %5 : vector<16x256xbf16>
    %cst_5 = arith.constant 0.000000e+00 : bf16
    %7 = vector.broadcast %cst_5 : bf16 to vector<16x256xbf16>
    %8 = arith.cmpf ogt, %6, %7 : vector<16x256xbf16>
    %cst_6 = arith.constant 2.001950e-01 : bf16
    %9 = vector.broadcast %cst_6 : bf16 to vector<16x256xbf16>
    %10 = arith.mulf %9, %6 : vector<16x256xbf16>
    %11 = arith.select %8, %6, %10 : vector<16x256xi1>, vector<16x256xbf16>
    %c0_7 = arith.constant 0 : index
    %c0_8 = arith.constant 0 : index
    %12 = vector.load %arg4[%c0_7, %c0_8] : memref<256x512xbf16, #tpu.memory_space<vmem>>, vector<256x512xbf16>
    %cst_9 = arith.constant dense<0.000000e+00> : vector<16x512xf32>
    %13 = tpu.matmul %11, %12, %cst_9 {dimension_numbers = #tpu.dot_dimension_numbers<[1], [0], [0], [1], [0, 0, 1, 1], [], []>} : vector<16x256xbf16>, vector<256x512xbf16>, vector<16x512xf32> -> vector<16x512xf32>
    %14 = arith.truncf %13 : vector<16x512xf32> to vector<16x512xbf16>
    %c0_10 = arith.constant 0 : index
    %c0_11 = arith.constant 0 : index
    %15 = vector.load %arg5[%c0_10, %c0_11] : memref<1x512xbf16, #tpu.memory_space<vmem>>, vector<1x512xbf16>
    %16 = vector.broadcast %15 : vector<1x512xbf16> to vector<16x512xbf16>
    %17 = arith.addf %14, %16 : vector<16x512xbf16>
    %cst_12 = arith.constant 0.000000e+00 : bf16
    %18 = vector.broadcast %cst_12 : bf16 to vector<16x512xbf16>
    %19 = arith.cmpf ogt, %17, %18 : vector<16x512xbf16>
    %cst_13 = arith.constant 2.001950e-01 : bf16
    %20 = vector.broadcast %cst_13 : bf16 to vector<16x512xbf16>
    %21 = arith.mulf %20, %17 : vector<16x512xbf16>
    %22 = arith.select %19, %17, %21 : vector<16x512xi1>, vector<16x512xbf16>
    %c0_14 = arith.constant 0 : index
    %c0_15 = arith.constant 0 : index
    %23 = vector.load %arg6[%c0_14, %c0_15] : memref<512x1024xbf16, #tpu.memory_space<vmem>>, vector<512x1024xbf16>
    %cst_16 = arith.constant dense<0.000000e+00> : vector<16x1024xf32>
    %24 = tpu.matmul %22, %23, %cst_16 {dimension_numbers = #tpu.dot_dimension_numbers<[1], [0], [0], [1], [0, 0, 1, 1], [], []>} : vector<16x512xbf16>, vector<512x1024xbf16>, vector<16x1024xf32> -> vector<16x1024xf32>
    %25 = arith.truncf %24 : vector<16x1024xf32> to vector<16x1024xbf16>
    %c0_17 = arith.constant 0 : index
    %c0_18 = arith.constant 0 : index
    %26 = vector.load %arg7[%c0_17, %c0_18] : memref<1x1024xbf16, #tpu.memory_space<vmem>>, vector<1x1024xbf16>
    %27 = vector.broadcast %26 : vector<1x1024xbf16> to vector<16x1024xbf16>
    %28 = arith.addf %25, %27 : vector<16x1024xbf16>
    %cst_19 = arith.constant 0.000000e+00 : bf16
    %29 = vector.broadcast %cst_19 : bf16 to vector<16x1024xbf16>
    %30 = arith.cmpf ogt, %28, %29 : vector<16x1024xbf16>
    %cst_20 = arith.constant 2.001950e-01 : bf16
    %31 = vector.broadcast %cst_20 : bf16 to vector<16x1024xbf16>
    %32 = arith.mulf %31, %28 : vector<16x1024xbf16>
    %33 = arith.select %30, %28, %32 : vector<16x1024xi1>, vector<16x1024xbf16>
    %c0_21 = arith.constant 0 : index
    %c0_22 = arith.constant 0 : index
    %34 = vector.load %arg8[%c0_21, %c0_22] : memref<1024x896xbf16, #tpu.memory_space<vmem>>, vector<1024x896xbf16>
    %cst_23 = arith.constant dense<0.000000e+00> : vector<16x896xf32>
    %35 = tpu.matmul %33, %34, %cst_23 {dimension_numbers = #tpu.dot_dimension_numbers<[1], [0], [0], [1], [0, 0, 1, 1], [], []>} : vector<16x1024xbf16>, vector<1024x896xbf16>, vector<16x896xf32> -> vector<16x896xf32>
    %c0_24 = arith.constant 0 : index
    %c0_25 = arith.constant 0 : index
    %36 = vector.load %arg9[%c0_24, %c0_25] : memref<1x896xf32, #tpu.memory_space<vmem>>, vector<1x896xf32>
    %37 = vector.broadcast %36 : vector<1x896xf32> to vector<16x896xf32>
    %38 = arith.addf %35, %37 : vector<16x896xf32>
    %39 = arith.truncf %38 : vector<16x896xf32> to vector<16x896xbf16>
    %40 = math.tanh %39 : vector<16x896xbf16>
    %c0_26 = arith.constant 0 : index
    %c0_27 = arith.constant 0 : index
    %41 = vector.load %arg10[%c0_26, %c0_27] : memref<16x896xbf16, #tpu.memory_space<vmem>>, vector<16x896xbf16>
    tpu.vector_store %arg10[%c0_26, %c0_27], %40 {strides = array<i32>} : memref<16x896xbf16, #tpu.memory_space<vmem>>, vector<16x896xbf16>,
    return
  }
  func.func @transform_0(%arg0: i32) -> (i32, i32) {
    %c0_i32 = arith.constant 0 : i32
    %c0_i32_0 = arith.constant 0 : i32
    return %arg0, %c0_i32 : i32, i32
  }
  func.func @transform_1(%arg0: i32) -> (i32, i32) {
    %c0_i32 = arith.constant 0 : i32
    %c0_i32_0 = arith.constant 0 : i32
    %c0_i32_1 = arith.constant 0 : i32
    return %c0_i32, %c0_i32_0 : i32, i32
  }
  func.func @transform_2(%arg0: i32) -> (i32, i32) {
    %c0_i32 = arith.constant 0 : i32
    %c0_i32_0 = arith.constant 0 : i32
    %c0_i32_1 = arith.constant 0 : i32
    return %c0_i32, %c0_i32_0 : i32, i32
  }
  func.func @transform_3(%arg0: i32) -> (i32, i32) {
    %c0_i32 = arith.constant 0 : i32
    %c0_i32_0 = arith.constant 0 : i32
    %c0_i32_1 = arith.constant 0 : i32
    return %c0_i32, %c0_i32_0 : i32, i32
  }
  func.func @transform_4(%arg0: i32) -> (i32, i32) {
    %c0_i32 = arith.constant 0 : i32
    %c0_i32_0 = arith.constant 0 : i32
    %c0_i32_1 = arith.constant 0 : i32
    return %c0_i32, %c0_i32_0 : i32, i32
  }
  func.func @transform_5(%arg0: i32) -> (i32, i32) {
    %c0_i32 = arith.constant 0 : i32
    %c0_i32_0 = arith.constant 0 : i32
    %c0_i32_1 = arith.constant 0 : i32
    return %c0_i32, %c0_i32_0 : i32, i32
  }
  func.func @transform_6(%arg0: i32) -> (i32, i32) {
    %c0_i32 = arith.constant 0 : i32
    %c0_i32_0 = arith.constant 0 : i32
    %c0_i32_1 = arith.constant 0 : i32
    return %c0_i32, %c0_i32_0 : i32, i32
  }
  func.func @transform_7(%arg0: i32) -> (i32, i32) {
    %c0_i32 = arith.constant 0 : i32
    %c0_i32_0 = arith.constant 0 : i32
    %c0_i32_1 = arith.constant 0 : i32
    return %c0_i32, %c0_i32_0 : i32, i32
  }
  func.func @transform_8(%arg0: i32) -> (i32, i32) {
    %c0_i32 = arith.constant 0 : i32
    %c0_i32_0 = arith.constant 0 : i32
    %c0_i32_1 = arith.constant 0 : i32
    return %c0_i32, %c0_i32_0 : i32, i32
  }
  func.func @transform_9(%arg0: i32) -> (i32, i32) {
    %c0_i32 = arith.constant 0 : i32
    %c0_i32_0 = arith.constant 0 : i32
    return %arg0, %c0_i32 : i32, i32
  }
}

</mosaic_0001>

<llo_original>
// kernel: generator_forward.1
$region0: #{generator_forward.1}
  #allocation0 [shape = 'u32[]', space=smem, size = 0x4, offset = 0x4, fixed_abs, tag = 'smem constant byte address 0x4 - core index']
  #allocation1 [shape = 'u32[144,128]{1,0:T(1,128)}', space=vmem, size = 0x12000, scoped, tag = 'internal scratch']
  %s0 = inlined_call_operand.vmem [shape: bf16[48,128], index: 0, kind: input, shape index: {}]
  %s1 = inlined_call_operand.hbm [shape: bf16[128,256], index: 1, kind: input, shape index: {}]
  %s2 = inlined_call_operand.hbm [shape: bf16[1,256], index: 2, kind: input, shape index: {}]
  %s3 = inlined_call_operand.hbm [shape: bf16[256,512], index: 3, kind: input, shape index: {}]
  %s4 = inlined_call_operand.hbm [shape: bf16[1,512], index: 4, kind: input, shape index: {}]
  %s5 = inlined_call_operand.hbm [shape: bf16[512,1024], index: 5, kind: input, shape index: {}]
  %s6 = inlined_call_operand.hbm [shape: bf16[1,1024], index: 6, kind: input, shape index: {}]
  %s7 = inlined_call_operand.hbm [shape: bf16[1024,896], index: 7, kind: input, shape index: {}]
  %s8 = inlined_call_operand.hbm [shape: f32[1,896], index: 8, kind: input, shape index: {}]
  %s9 = inlined_call_operand.vmem [shape: bf16[48,896], index: 9, kind: output, shape index: {}]
  %s10 = sld [smem:[#allocation0]]
  $region101: #{generator_forward.1} parent=0
    _
  %s12 = ssub.s32 1, %s10
  %s13 = scalar_select 0, %s12, %s10
  $region1: #{generator_forward.1} parent=0
    #allocation2 [shape = 'u8[65536]{0}', space=vmem, size = 0x10000, scoped, tag = 'input window, operand 1, single buffered']
    #allocation3 [shape = 's32[2]{0}', space=sflag, size = 0x8, scoped, tag = 'scoped memory for generator_forward.1']
    #allocation4 [shape = 'u8[1024]{0}', space=vmem, size = 0x400, scoped, tag = 'input window, operand 2, single buffered']
    #allocation5 [shape = 's32[1]{0}', space=sflag, size = 0x4, scoped, tag = 'scoped memory for generator_forward.1']
    #allocation6 [shape = 'u8[262144]{0}', space=vmem, size = 0x40000, scoped, tag = 'input window, operand 3, single buffered']
    #allocation7 [shape = 'u8[2048]{0}', space=vmem, size = 0x800, scoped, tag = 'input window, operand 4, single buffered']
    #allocation8 [shape = 's32[1]{0}', space=sflag, size = 0x4, scoped, tag = 'scoped memory for generator_forward.1']
    #allocation9 [shape = 'u8[1048576]{0}', space=vmem, size = 0x100000, scoped, tag = 'input window, operand 5, single buffered']
    #allocation10 [shape = 'u8[4096]{0}', space=vmem, size = 0x1000, scoped, tag = 'input window, operand 6, single buffered']
    #allocation11 [shape = 's32[1]{0}', space=sflag, size = 0x4, scoped, tag = 'scoped memory for generator_forward.1']
    #allocation12 [shape = 'u8[1835008]{0}', space=vmem, size = 0x1c0000, scoped, tag = 'input window, operand 7, single buffered']
    #allocation13 [shape = 'u8[3584]{0}', space=vmem, size = 0x1000, scoped, tag = 'input window, operand 8, single buffered']
    #allocation14 [shape = 's32[1]{0}', space=sflag, size = 0x4, scoped, tag = 'scoped memory for generator_forward.1']
    %14 = vsyncpa [#allocation3], 0
    %15 = vsyncpa [#allocation5], 0
    %16 = vsyncpa [#allocation8], 0
    %17 = vsyncpa [#allocation11], 0
    %18 = vsyncpa [#allocation14], 0
    loop: start=0, step=1, limit=5
    $region2: #{generator_forward.1} parent=1 // loop_pre_header
      _
    $region3: #{generator_forward.1} parent=1 // loop_header
      %s20 = sphi 0, %s24
      %p21 = scmp.ge.s32.totalorder %s20, 5
      %s30 = sphi 0, %s32
      %s33 = sphi 0, %s30
      %s34 = sphi 0, %s33
      %s50 = sphi 0, %s34
      %s54 = sphi 0, %s54
      %s56 = sphi 0, %s54
      %s57 = sphi 0, %s56
      %s71 = sphi 0, %s57
      %s75 = sphi 0, %s75
      %s77 = sphi 0, %s75
      %s78 = sphi 0, %s77
      %s92 = sphi 0, %s78
      %s96 = sphi 0, %s96
      %s98 = sphi 0, %s96
      %s99 = sphi 0, %s98
      %s113 = sphi 0, %s99
      %s117 = sphi 0, %s117
      %s119 = sphi 0, %s117
      %s120 = sphi 0, %s119
      %s134 = sphi 0, %s120
      %s138 = sphi 0, %s138
      %s140 = sphi 0, %s138
      %s141 = sphi 0, %s140
      %s155 = sphi 0, %s141
      %s159 = sphi 0, %s159
      %s161 = sphi 0, %s159
      %s162 = sphi 0, %s161
      %s176 = sphi 0, %s162
      %s180 = sphi 0, %s180
      %s182 = sphi 0, %s180
      %s183 = sphi 0, %s182
      %s197 = sphi 0, %s183
      %s201 = sphi 0, %s201
      %s203 = sphi 0, %s201
      %s204 = sphi 0, %s203
      %s218 = sphi 0, %s204
      %s224 = sphi 0, %s226
      %s227 = sphi 0, %s224
      %s228 = sphi 0, %s227
      %s244 = sphi 0, %s228
    $region4: #{generator_forward.1} parent=1 // loop_header_branch
      %23 = sbr.rel (%p21) target = $region8
    $region5: #{generator_forward.1} parent=1 // loop_body
      %s25 = ssub.s32 %s20, 1
      %s26 = ssub.s32 %s20, 2
      %s27 = sadd.s32 %s20, 1
      %s28 = ssub.s32 %s20, %s27
      %p29 = scmp.eq.s32.totalorder %s28, 0
      %s31 = sadd.s32 %s30, 1
      %s32 = scalar_select %p29, %s30, %s31
      %p35 = pneg %p29
      %p36 = scmp.eq.s32.totalorder %s20, 2
      %p37 = por %p35, %p36
      %p38 = scmp.ne.s32.totalorder %s30, %s33
      %p39 = scmp.eq.s32.totalorder %s20, 0
      %p40 = por %p38, %p39
      %p41 = scmp.ne.s32.totalorder %s30, %s33
      %p42 = scmp.eq.s32.totalorder %s25, 2
      %p43 = por %p41, %p42
      %p44 = scmp.ne.s32.totalorder %s33, %s34
      %p45 = scmp.eq.s32.totalorder %s25, 0
      %p46 = por %p44, %p45
      %p47 = scmp.ne.s32.totalorder %s33, %s34
      %p48 = scmp.eq.s32.totalorder %s26, 2
      %p49 = por %p47, %p48
      %p51 = scmp.ne.s32.totalorder %s34, %s50
      %p52 = scmp.eq.s32.totalorder %s26, 0
      %p53 = por %p51, %p52
      %s55 = sadd.s32 %s54, 1
      %p58 = scmp.eq.s32.totalorder %s20, 2
      %p59 = scmp.ne.s32.totalorder %s54, %s56
      %p60 = scmp.eq.s32.totalorder %s20, 0
      %p61 = por %p59, %p60
      %p62 = scmp.ne.s32.totalorder %s54, %s56
      %p63 = scmp.eq.s32.totalorder %s25, 2
      %p64 = por %p62, %p63
      %p65 = scmp.ne.s32.totalorder %s56, %s57
      %p66 = scmp.eq.s32.totalorder %s25, 0
      %p67 = por %p65, %p66
      %p68 = scmp.ne.s32.totalorder %s56, %s57
      %p69 = scmp.eq.s32.totalorder %s26, 2
      %p70 = por %p68, %p69
      %p72 = scmp.ne.s32.totalorder %s57, %s71
      %p73 = scmp.eq.s32.totalorder %s26, 0
      %p74 = por %p72, %p73
      %s76 = sadd.s32 %s75, 1
      %p79 = scmp.eq.s32.totalorder %s20, 2
      %p80 = scmp.ne.s32.totalorder %s75, %s77
      %p81 = scmp.eq.s32.totalorder %s20, 0
      %p82 = por %p80, %p81
      %p83 = scmp.ne.s32.totalorder %s75, %s77
      %p84 = scmp.eq.s32.totalorder %s25, 2
      %p85 = por %p83, %p84
      %p86 = scmp.ne.s32.totalorder %s77, %s78
      %p87 = scmp.eq.s32.totalorder %s25, 0
      %p88 = por %p86, %p87
      %p89 = scmp.ne.s32.totalorder %s77, %s78
      %p90 = scmp.eq.s32.totalorder %s26, 2
      %p91 = por %p89, %p90
      %p93 = scmp.ne.s32.totalorder %s78, %s92
      %p94 = scmp.eq.s32.totalorder %s26, 0
      %p95 = por %p93, %p94
      %s97 = sadd.s32 %s96, 1
      %p100 = scmp.eq.s32.totalorder %s20, 2
      %p101 = scmp.ne.s32.totalorder %s96, %s98
      %p102 = scmp.eq.s32.totalorder %s20, 0
      %p103 = por %p101, %p102
      %p104 = scmp.ne.s32.totalorder %s96, %s98
      %p105 = scmp.eq.s32.totalorder %s25, 2
      %p106 = por %p104, %p105
      %p107 = scmp.ne.s32.totalorder %s98, %s99
      %p108 = scmp.eq.s32.totalorder %s25, 0
      %p109 = por %p107, %p108
      %p110 = scmp.ne.s32.totalorder %s98, %s99
      %p111 = scmp.eq.s32.totalorder %s26, 2
      %p112 = por %p110, %p111
      %p114 = scmp.ne.s32.totalorder %s99, %s113
      %p115 = scmp.eq.s32.totalorder %s26, 0
      %p116 = por %p114, %p115
      %s118 = sadd.s32 %s117, 1
      %p121 = scmp.eq.s32.totalorder %s20, 2
      %p122 = scmp.ne.s32.totalorder %s117, %s119
      %p123 = scmp.eq.s32.totalorder %s20, 0
      %p124 = por %p122, %p123
      %p125 = scmp.ne.s32.totalorder %s117, %s119
      %p126 = scmp.eq.s32.totalorder %s25, 2
      %p127 = por %p125, %p126
      %p128 = scmp.ne.s32.totalorder %s119, %s120
      %p129 = scmp.eq.s32.totalorder %s25, 0
      %p130 = por %p128, %p129
      %p131 = scmp.ne.s32.totalorder %s119, %s120
      %p132 = scmp.eq.s32.totalorder %s26, 2
      %p133 = por %p131, %p132
      %p135 = scmp.ne.s32.totalorder %s120, %s134
      %p136 = scmp.eq.s32.totalorder %s26, 0
      %p137 = por %p135, %p136
      %s139 = sadd.s32 %s138, 1
      %p142 = scmp.eq.s32.totalorder %s20, 2
      %p143 = scmp.ne.s32.totalorder %s138, %s140
      %p144 = scmp.eq.s32.totalorder %s20, 0
      %p145 = por %p143, %p144
      %p146 = scmp.ne.s32.totalorder %s138, %s140
      %p147 = scmp.eq.s32.totalorder %s25, 2
      %p148 = por %p146, %p147
      %p149 = scmp.ne.s32.totalorder %s140, %s141
      %p150 = scmp.eq.s32.totalorder %s25, 0
      %p151 = por %p149, %p150
      %p152 = scmp.ne.s32.totalorder %s140, %s141
      %p153 = scmp.eq.s32.totalorder %s26, 2
      %p154 = por %p152, %p153
      %p156 = scmp.ne.s32.totalorder %s141, %s155
      %p157 = scmp.eq.s32.totalorder %s26, 0
      %p158 = por %p156, %p157
      %s160 = sadd.s32 %s159, 1
      %p163 = scmp.eq.s32.totalorder %s20, 2
      %p164 = scmp.ne.s32.totalorder %s159, %s161
      %p165 = scmp.eq.s32.totalorder %s20, 0
      %p166 = por %p164, %p165
      %p167 = scmp.ne.s32.totalorder %s159, %s161
      %p168 = scmp.eq.s32.totalorder %s25, 2
      %p169 = por %p167, %p168
      %p170 = scmp.ne.s32.totalorder %s161, %s162
      %p171 = scmp.eq.s32.totalorder %s25, 0
      %p172 = por %p170, %p171
      %p173 = scmp.ne.s32.totalorder %s161, %s162
      %p174 = scmp.eq.s32.totalorder %s26, 2
      %p175 = por %p173, %p174
      %p177 = scmp.ne.s32.totalorder %s162, %s176
      %p178 = scmp.eq.s32.totalorder %s26, 0
      %p179 = por %p177, %p178
      %s181 = sadd.s32 %s180, 1
      %p184 = scmp.eq.s32.totalorder %s20, 2
      %p185 = scmp.ne.s32.totalorder %s180, %s182
      %p186 = scmp.eq.s32.totalorder %s20, 0
      %p187 = por %p185, %p186
      %p188 = scmp.ne.s32.totalorder %s180, %s182
      %p189 = scmp.eq.s32.totalorder %s25, 2
      %p190 = por %p188, %p189
      %p191 = scmp.ne.s32.totalorder %s182, %s183
      %p192 = scmp.eq.s32.totalorder %s25, 0
      %p193 = por %p191, %p192
      %p194 = scmp.ne.s32.totalorder %s182, %s183
      %p195 = scmp.eq.s32.totalorder %s26, 2
      %p196 = por %p194, %p195
      %p198 = scmp.ne.s32.totalorder %s183, %s197
      %p199 = scmp.eq.s32.totalorder %s26, 0
      %p200 = por %p198, %p199
      %s202 = sadd.s32 %s201, 1
      %p205 = scmp.eq.s32.totalorder %s20, 2
      %p206 = scmp.ne.s32.totalorder %s201, %s203
      %p207 = scmp.eq.s32.totalorder %s20, 0
      %p208 = por %p206, %p207
      %p209 = scmp.ne.s32.totalorder %s201, %s203
      %p210 = scmp.eq.s32.totalorder %s25, 2
      %p211 = por %p209, %p210
      %p212 = scmp.ne.s32.totalorder %s203, %s204
      %p213 = scmp.eq.s32.totalorder %s25, 0
      %p214 = por %p212, %p213
      %p215 = scmp.ne.s32.totalorder %s203, %s204
      %p216 = scmp.eq.s32.totalorder %s26, 2
      %p217 = por %p215, %p216
      %p219 = scmp.ne.s32.totalorder %s204, %s218
      %p220 = scmp.eq.s32.totalorder %s26, 0
      %p221 = por %p219, %p220
      %s222 = ssub.s32 %s20, %s27
      %p223 = scmp.eq.s32.totalorder %s222, 0
      %s225 = sadd.s32 %s224, 1
      %s226 = scalar_select %p223, %s224, %s225
      %p229 = pneg %p223
      %p230 = scmp.eq.s32.totalorder %s20, 2
      %p231 = por %p229, %p230
      %p232 = scmp.ne.s32.totalorder %s224, %s227
      %p233 = scmp.eq.s32.totalorder %s20, 0
      %p234 = por %p232, %p233
      %p235 = scmp.ne.s32.totalorder %s224, %s227
      %p236 = scmp.eq.s32.totalorder %s25, 2
      %p237 = por %p235, %p236
      %p238 = scmp.ne.s32.totalorder %s227, %s228
      %p239 = scmp.eq.s32.totalorder %s25, 0
      %p240 = por %p238, %p239
      %p241 = scmp.ne.s32.totalorder %s227, %s228
      %p242 = scmp.eq.s32.totalorder %s26, 2
      %p243 = por %p241, %p242
      %p245 = scmp.ne.s32.totalorder %s228, %s244
      %p246 = scmp.eq.s32.totalorder %s26, 0
      %p247 = por %p245, %p246
      %p248 = scmp.le.s32.totalorder 1, %s20
      %p249 = scmp.lt.s32.totalorder %s20, 4
      %p250 = pnand %p248, %p249
      %p251 = pneg %p250
      // Predicated region
      $region9: #{generator_forward.1} parent=5 // pred_check
        _
      $region10: #{generator_forward.1} parent=5 // pred_check_branch
        %253 = sbr.rel (%p250) target = $region12
      $region11: #{generator_forward.1} parent=5 // pred_region
        %s254 = ssub.s32 %s20, 1
        // Predicated region
        $region13: #{generator_forward.1} parent=11 // pred_check
          %p255 = pneg %p67
        $region14: #{generator_forward.1} parent=11 // pred_check_branch
          %257 = sbr.rel (%p255) target = $region16
        $region15: #{generator_forward.1} parent=11 // pred_region
          %s259 = ssub.s32 2048, 2048
          %260 = vsyncadd [#allocation3], %s259
          %s261 = sshll.u32 [#allocation2], 4
          %s262 = int_to_ptr.vmem [resolvable:$true] %s261
          %267 = dma.hbm_to_vmem [thread:$0]  %s1, 2048, %s262, [#allocation3], 128, 128, 8
        $region16: #{generator_forward.1} parent=11 // pred_fallthru
          _
        // Predicated region
        $region17: #{generator_forward.1} parent=11 // pred_check
          %p268 = pneg %p88
        $region18: #{generator_forward.1} parent=11 // pred_check_branch
          %270 = sbr.rel (%p268) target = $region20
        $region19: #{generator_forward.1} parent=11 // pred_region
          %s272 = ssub.s32 32, 32
          %273 = vsyncadd [#allocation5], %s272
          %s275 = sshll.u32 [#allocation4], 4
          %s276 = int_to_ptr.vmem [resolvable:$true] %s275
          %278 = dma.hbm_to_vmem [thread:$0]  %s2, 32, %s276, [#allocation5]
        $region20: #{generator_forward.1} parent=11 // pred_fallthru
          _
        // Predicated region
        $region21: #{generator_forward.1} parent=11 // pred_check
          %p279 = pneg %p109
        $region22: #{generator_forward.1} parent=11 // pred_check_branch
          %281 = sbr.rel (%p279) target = $region24
        $region23: #{generator_forward.1} parent=11 // pred_region
          %s283 = ssub.s32 8192, 8192
          %284 = vsyncadd [#allocation5], %s283
          %s285 = sshll.u32 [#allocation6], 4
          %s286 = int_to_ptr.vmem [resolvable:$true] %s285
          %291 = dma.hbm_to_vmem [thread:$0]  %s3, 8192, %s286, [#allocation5], 256, 256, 16
        $region24: #{generator_forward.1} parent=11 // pred_fallthru
          _
        // Predicated region
        $region25: #{generator_forward.1} parent=11 // pred_check
          %p292 = pneg %p130
        $region26: #{generator_forward.1} parent=11 // pred_check_branch
          %294 = sbr.rel (%p292) target = $region28
        $region27: #{generator_forward.1} parent=11 // pred_region
          %s296 = ssub.s32 64, 64
          %297 = vsyncadd [#allocation8], %s296
          %s299 = sshll.u32 [#allocation7], 4
          %s300 = int_to_ptr.vmem [resolvable:$true] %s299
          %302 = dma.hbm_to_vmem [thread:$0]  %s4, 64, %s300, [#allocation8]
        $region28: #{generator_forward.1} parent=11 // pred_fallthru
          _
        // Predicated region
        $region29: #{generator_forward.1} parent=11 // pred_check
          %p303 = pneg %p151
        $region30: #{generator_forward.1} parent=11 // pred_check_branch
          %305 = sbr.rel (%p303) target = $region32
        $region31: #{generator_forward.1} parent=11 // pred_region
          %s307 = ssub.s32 32768, 32768
          %308 = vsyncadd [#allocation8], %s307
          %s309 = sshll.u32 [#allocation9], 4
          %s310 = int_to_ptr.vmem [resolvable:$true] %s309
          %315 = dma.hbm_to_vmem [thread:$0]  %s5, 32768, %s310, [#allocation8], 512, 512, 32
        $region32: #{generator_forward.1} parent=11 // pred_fallthru
          _
        // Predicated region
        $region33: #{generator_forward.1} parent=11 // pred_check
          %p316 = pneg %p172
        $region34: #{generator_forward.1} parent=11 // pred_check_branch
          %318 = sbr.rel (%p316) target = $region36
        $region35: #{generator_forward.1} parent=11 // pred_region
          %s320 = ssub.s32 128, 128
          %321 = vsyncadd [#allocation11], %s320
          %s323 = sshll.u32 [#allocation10], 4
          %s324 = int_to_ptr.vmem [resolvable:$true] %s323
          %326 = dma.hbm_to_vmem [thread:$0]  %s6, 128, %s324, [#allocation11]
        $region36: #{generator_forward.1} parent=11 // pred_fallthru
          _
        // Predicated region
        $region37: #{generator_forward.1} parent=11 // pred_check
          %p327 = pneg %p193
        $region38: #{generator_forward.1} parent=11 // pred_check_branch
          %329 = sbr.rel (%p327) target = $region40
        $region39: #{generator_forward.1} parent=11 // pred_region
          %s331 = ssub.s32 57344, 57344
          %332 = vsyncadd [#allocation11], %s331
          %s333 = sshll.u32 [#allocation12], 4
          %s334 = int_to_ptr.vmem [resolvable:$true] %s333
          %339 = dma.hbm_to_vmem [thread:$0]  %s7, 57344, %s334, [#allocation11], 448, 448, 28
        $region40: #{generator_forward.1} parent=11 // pred_fallthru
          _
        // Predicated region
        $region41: #{generator_forward.1} parent=11 // pred_check
          %p340 = pneg %p214
        $region42: #{generator_forward.1} parent=11 // pred_check_branch
          %342 = sbr.rel (%p340) target = $region44
        $region43: #{generator_forward.1} parent=11 // pred_region
          %s344 = ssub.s32 112, 112
          %345 = vsyncadd [#allocation14], %s344
          %s347 = sshll.u32 [#allocation13], 4
          %s348 = int_to_ptr.vmem [resolvable:$true] %s347
          %350 = dma.hbm_to_vmem [thread:$0]  %s8, 112, %s348, [#allocation14]
        $region44: #{generator_forward.1} parent=11 // pred_fallthru
          _
      $region12: #{generator_forward.1} parent=5 // pred_fallthru
        _
      %p351 = scmp.lt.s32.totalorder %s20, 3
      // Predicated region
      $region45: #{generator_forward.1} parent=5 // pred_check
        %p352 = pneg %p351
      $region46: #{generator_forward.1} parent=5 // pred_check_branch
        %354 = sbr.rel (%p352) target = $region48
      $region47: #{generator_forward.1} parent=5 // pred_region
        // Predicated region
        $region49: #{generator_forward.1} parent=47 // pred_check
          %p355 = pneg %p40
        $region50: #{generator_forward.1} parent=47 // pred_check_branch
          %357 = sbr.rel (%p355) target = $region52
        $region51: #{generator_forward.1} parent=47 // pred_region
          %s358 = smul.u32 2, %s20
          %p359 = scmp.lt.s32.totalorder %s358, 5
          %s360 = scalar_select %p359, %s358, 5
          %s361 = smul.addr %s360, 4
          %s362 = scalar_lea.vmem %s0, %s361
          %s363 = smul.u32 2, %s20
        $region52: #{generator_forward.1} parent=47 // pred_fallthru
          _
      $region48: #{generator_forward.1} parent=5 // pred_fallthru
        _
      %p364 = scmp.le.s32.totalorder 1, %s20
      %p365 = scmp.lt.s32.totalorder %s20, 4
      %p366 = pnand %p364, %p365
      %p367 = pneg %p366
      // Predicated region
      $region53: #{generator_forward.1} parent=5 // pred_check
        _
      $region54: #{generator_forward.1} parent=5 // pred_check_branch
        %369 = sbr.rel (%p366) target = $region56
      $region55: #{generator_forward.1} parent=5 // pred_region
        %s370 = ssub.s32 %s20, 1
        // Predicated region
        $region57: #{generator_forward.1} parent=55 // pred_check
          %p371 = pneg %p67
        $region58: #{generator_forward.1} parent=55 // pred_check_branch
          %373 = sbr.rel (%p371) target = $region60
        $region59: #{generator_forward.1} parent=55 // pred_region
          %374 = dma.done [#allocation3], 2048
        $region60: #{generator_forward.1} parent=55 // pred_fallthru
          _
        // Predicated region
        $region61: #{generator_forward.1} parent=55 // pred_check
          %p375 = pneg %p88
        $region62: #{generator_forward.1} parent=55 // pred_check_branch
          %377 = sbr.rel (%p375) target = $region64
        $region63: #{generator_forward.1} parent=55 // pred_region
          %378 = dma.done [#allocation5], 32
        $region64: #{generator_forward.1} parent=55 // pred_fallthru
          _
        // Predicated region
        $region65: #{generator_forward.1} parent=55 // pred_check
          %p379 = pneg %p109
        $region66: #{generator_forward.1} parent=55 // pred_check_branch
          %381 = sbr.rel (%p379) target = $region68
        $region67: #{generator_forward.1} parent=55 // pred_region
          %382 = dma.done [#allocation5], 8192
        $region68: #{generator_forward.1} parent=55 // pred_fallthru
          _
        // Predicated region
        $region69: #{generator_forward.1} parent=55 // pred_check
          %p383 = pneg %p130
        $region70: #{generator_forward.1} parent=55 // pred_check_branch
          %385 = sbr.rel (%p383) target = $region72
        $region71: #{generator_forward.1} parent=55 // pred_region
          %386 = dma.done [#allocation8], 64
        $region72: #{generator_forward.1} parent=55 // pred_fallthru
          _
        // Predicated region
        $region73: #{generator_forward.1} parent=55 // pred_check
          %p387 = pneg %p151
        $region74: #{generator_forward.1} parent=55 // pred_check_branch
          %389 = sbr.rel (%p387) target = $region76
        $region75: #{generator_forward.1} parent=55 // pred_region
          %390 = dma.done [#allocation8], 32768
        $region76: #{generator_forward.1} parent=55 // pred_fallthru
          _
        // Predicated region
        $region77: #{generator_forward.1} parent=55 // pred_check
          %p391 = pneg %p172
        $region78: #{generator_forward.1} parent=55 // pred_check_branch
          %393 = sbr.rel (%p391) target = $region80
        $region79: #{generator_forward.1} parent=55 // pred_region
          %394 = dma.done [#allocation11], 128
        $region80: #{generator_forward.1} parent=55 // pred_fallthru
          _
        // Predicated region
        $region81: #{generator_forward.1} parent=55 // pred_check
          %p395 = pneg %p193
        $region82: #{generator_forward.1} parent=55 // pred_check_branch
          %397 = sbr.rel (%p395) target = $region84
        $region83: #{generator_forward.1} parent=55 // pred_region
          %398 = dma.done [#allocation11], 57344
        $region84: #{generator_forward.1} parent=55 // pred_fallthru
          _
        // Predicated region
        $region85: #{generator_forward.1} parent=55 // pred_check
          %p399 = pneg %p214
        $region86: #{generator_forward.1} parent=55 // pred_check_branch
          %401 = sbr.rel (%p399) target = $region88
        $region87: #{generator_forward.1} parent=55 // pred_region
          %402 = dma.done [#allocation14], 112
        $region88: #{generator_forward.1} parent=55 // pred_fallthru
          _
        %s403 = smul.u32 2, %s25
        %p404 = scmp.lt.s32.totalorder %s403, 5
        %s405 = scalar_select %p404, %s403, 5
        %s406 = smul.addr %s405, 4
        %s407 = scalar_lea.vmem %s0, %s406
        %p408 = pneg %p46
        %p409 = pneg %p43
        %p410 = pneg %p67
        %p411 = pneg %p64
        %p412 = pneg %p88
        %p413 = pneg %p85
        %p414 = pneg %p109
        %p415 = pneg %p106
        %p416 = pneg %p130
        %p417 = pneg %p127
        %p418 = pneg %p151
        %p419 = pneg %p148
        %p420 = pneg %p172
        %p421 = pneg %p169
        %p422 = pneg %p193
        %p423 = pneg %p190
        %p424 = pneg %p214
        %p425 = pneg %p211
        %p426 = pneg %p240
        %p427 = pneg %p237
        %s428 = smul.u32 2, %s25
        %p429 = scmp.lt.s32.totalorder %s428, 5
        %s430 = scalar_select %p429, %s428, 5
        %s431 = smul.addr %s430, 7
        %s432 = smul.addr %s431, 4
        %s433 = scalar_lea.vmem %s9, %s432
        %s434 = smul.u32 2, %s25
        %p435 = scmp.lt.s32.totalorder %s434, 5
        %s436 = scalar_select %p435, %s434, 5
        %s437 = smul.addr %s436, 4
        %s438 = scalar_lea.vmem %s0, %s437
        %s439 = smul.u32 2, %s25
        %s440 = smul.u32 2, %s25
        %p441 = scmp.lt.s32.totalorder %s440, 5
        %s442 = scalar_select %p441, %s440, 5
        %s443 = smul.addr %s442, 7
        %s444 = smul.addr %s443, 4
        %s445 = scalar_lea.vmem %s9, %s444
        %s446 = smul.u32 2, %s25
        %v449 = vld [vmem:[%s438] sm:$0xf]
        %v450 = vld [vmem:[%s438 + $0x4] sm:$0xf]
        %v451 = vld [vmem:[#allocation2] sm:$0xff]
        %v452 = vld [vmem:[#allocation2 + $0x8] sm:$0xff]
        %v453 = vld [vmem:[#allocation2 + $0x10] sm:$0xff]
        %v454 = vld [vmem:[#allocation2 + $0x18] sm:$0xff]
        %v455 = vld [vmem:[#allocation2 + $0x20] sm:$0xff]
        %v456 = vld [vmem:[#allocation2 + $0x28] sm:$0xff]
        %v457 = vld [vmem:[#allocation2 + $0x30] sm:$0xff]
        %v458 = vld [vmem:[#allocation2 + $0x38] sm:$0xff]
        %v459 = vld [vmem:[#allocation2 + $0x40] sm:$0xff]
        %v460 = vld [vmem:[#allocation2 + $0x48] sm:$0xff]
        %v461 = vld [vmem:[#allocation2 + $0x50] sm:$0xff]
        %v462 = vld [vmem:[#allocation2 + $0x58] sm:$0xff]
        %v463 = vld [vmem:[#allocation2 + $0x60] sm:$0xff]
        %v464 = vld [vmem:[#allocation2 + $0x68] sm:$0xff]
        %v465 = vld [vmem:[#allocation2 + $0x70] sm:$0xff]
        %v466 = vld [vmem:[#allocation2 + $0x78] sm:$0xff]
        %v469 = vunpack.c.l.b16 %v449
        %v470 = vunpack.c.l.b16 %v450
        %v471 = vpack.c.b16 %v470, %v469
        %v489 = vunpack.c.l.b16 %v451
        %v490 = vunpack.c.h.b16 %v451
        %v491 = vunpack.c.l.b16 %v452
        %v492 = vunpack.c.h.b16 %v452
        %v493 = vunpack.c.l.b16 %v453
        %v494 = vunpack.c.h.b16 %v453
        %v495 = vunpack.c.l.b16 %v454
        %v496 = vunpack.c.h.b16 %v454
        %v497 = vunpack.c.l.b16 %v455
        %v498 = vunpack.c.h.b16 %v455
        %v499 = vunpack.c.l.b16 %v456
        %v500 = vunpack.c.h.b16 %v456
        %v501 = vunpack.c.l.b16 %v457
        %v502 = vunpack.c.h.b16 %v457
        %v503 = vunpack.c.l.b16 %v458
        %v504 = vunpack.c.h.b16 %v458
        %v505 = vunpack.c.l.b16 %v459
        %v506 = vunpack.c.h.b16 %v459
        %v507 = vunpack.c.l.b16 %v460
        %v508 = vunpack.c.h.b16 %v460
        %v509 = vunpack.c.l.b16 %v461
        %v510 = vunpack.c.h.b16 %v461
        %v511 = vunpack.c.l.b16 %v462
        %v512 = vunpack.c.h.b16 %v462
        %v513 = vunpack.c.l.b16 %v463
        %v514 = vunpack.c.h.b16 %v463
        %v515 = vunpack.c.l.b16 %v464
        %v516 = vunpack.c.h.b16 %v464
        %v517 = vunpack.c.l.b16 %v465
        %v518 = vunpack.c.h.b16 %v465
        %v519 = vunpack.c.l.b16 %v466
        %v520 = vunpack.c.h.b16 %v466
        %v521 = vpack.c.b16 %v491, %v489
        %v522 = vpack.c.b16 %v492, %v490
        %v523 = vpack.c.b16 %v495, %v493
        %v524 = vpack.c.b16 %v496, %v494
        %v525 = vpack.c.b16 %v499, %v497
        %v526 = vpack.c.b16 %v500, %v498
        %v527 = vpack.c.b16 %v503, %v501
        %v528 = vpack.c.b16 %v504, %v502
        %v529 = vpack.c.b16 %v507, %v505
        %v530 = vpack.c.b16 %v508, %v506
        %v531 = vpack.c.b16 %v511, %v509
        %v532 = vpack.c.b16 %v512, %v510
        %v533 = vpack.c.b16 %v515, %v513
        %v534 = vpack.c.b16 %v516, %v514
        %v535 = vpack.c.b16 %v519, %v517
        %v536 = vpack.c.b16 %v520, %v518
        %553 = vmatprep.subr.bf16.mxu0 %v522
        %554 = vmatpush1.bf16.msra.mxu0 %v521
        %555 = vmatprep.subr.bf16.mxu0 %v524
        %556 = vmatpush1.bf16.msra.mxu0 %v523
        %557 = vmatprep.subr.bf16.mxu0 %v526
        %558 = vmatpush1.bf16.msra.mxu0 %v525
        %559 = vmatprep.subr.bf16.mxu0 %v528
        %560 = vmatpush1.bf16.msra.mxu0 %v527
        %561 = vmatprep.subr.bf16.mxu0 %v530
        %562 = vmatpush1.bf16.msra.mxu0 %v529
        %563 = vmatprep.subr.bf16.mxu0 %v532
        %564 = vmatpush1.bf16.msra.mxu0 %v531
        %565 = vmatprep.subr.bf16.mxu0 %v534
        %566 = vmatpush1.bf16.msra.mxu0 %v533
        %567 = vmatprep.subr.bf16.mxu0 %v536
        %568 = vmatpush1.bf16.msra.mxu0 %v535
        %569 = vmatprep.subr.bf16.mxu0 0
        %570 = vmatpush1.bf16.msra.mxu0 0
        %571 = vmatprep.subr.bf16.mxu0 0
        %572 = vmatpush1.bf16.msra.mxu0 0
        %573 = vmatprep.subr.bf16.mxu0 0
        %574 = vmatpush1.bf16.msra.mxu0 0
        %575 = vmatprep.subr.bf16.mxu0 0
        %576 = vmatpush1.bf16.msra.mxu0 0
        %577 = vmatprep.subr.bf16.mxu0 0
        %578 = vmatpush1.bf16.msra.mxu0 0
        %579 = vmatprep.subr.bf16.mxu0 0
        %580 = vmatpush1.bf16.msra.mxu0 0
        %581 = vmatprep.subr.bf16.mxu0 0
        %582 = vmatpush1.bf16.msra.mxu0 0
        %583 = vmatprep.subr.bf16.mxu0 0
        %584 = vmatpush1.bf16.msra.mxu0 0
        %585 = vmatprep.mubr.bf16.mxu0 0
        %586 = vmatmul.mubr.bf16.gmra.mrb[0].mxu0 %v471
        %v587 = vpop.f32.mrb[0].mxu0
        %v588 = vadd.f32 0.0, %v587
        %v589 = vpop.f32.mrb[0].mxu0
        %v590 = vadd.f32 0.0, %v589
        %v591 = vpop.f32.mrb[0].mxu0
        %v592 = vadd.f32 0.0, %v591
        %v593 = vpop.f32.mrb[0].mxu0
        %v594 = vadd.f32 0.0, %v593
        %595 = vdwg.mxu0
        %v596 = vpack.c.bf16 %v592, %v588
        %v597 = vpack.c.bf16 %v594, %v590
        %v598 = vld [vmem:[#allocation4] sm:$0x3]
        %v601 = vunpack.c.l.s4 1966171168
        %v602 = vunpack.c.0.s8 %v601
        %v603 = vlaneseq
        %v604 = vshrl.u32 %v603, 7
        %v605 = vsub.s32 %v602, %v604
        %v606 = vrot.slane %v598, %v605
        %v607 = vcombine.high %v606, %v606
        %v609 = vunpack.c.l.s4 1966171168
        %v610 = vunpack.c.0.s8 %v609
        %v611 = vlaneseq
        %v612 = vshrl.u32 %v611, 7
        %v613 = vsub.s32 %v610, %v612
        %v614 = vrot.slane %v606, %v613
        %v616 = vunpack.c.l.s4 1966171168
        %v617 = vunpack.c.0.s8 %v616
        %v618 = vlaneseq
        %v619 = vshrl.u32 %v618, 7
        %v620 = vsub.s32 %v617, %v619
        %v621 = vrot.slane %v607, %v620
        %v623 = vpack.i.b16 %v614, %v614
        %v625 = vlaneseq
        %v626 = vshrl.u32 %v625, 7
        %v627 = vsub.s32 0, %v626
        %v628 = vrot.slane %v623, %v627
        %v630 = vpack.i.b16 %v621, %v621
        %v632 = vlaneseq
        %v633 = vshrl.u32 %v632, 7
        %v634 = vsub.s32 0, %v633
        %v635 = vrot.slane %v630, %v634
        %v636 = vadd.bf16 %v596, %v628
        %v637 = vadd.bf16 %v597, %v635
        %vm638 = vcmp.gt.bf16.partialorder %v636, 0
        %vm639 = vcmp.gt.bf16.partialorder %v637, 0
        %v640 = vmul.bf16 %v636, 1045249613
        %v641 = vmul.bf16 %v637, 1045249613
        %v642 = vsel %vm638, %v636, %v640
        %v643 = vsel %vm639, %v637, %v641
        %v644 = vld [vmem:[#allocation6] sm:$0xff]
        %v645 = vld [vmem:[#allocation6 + $0x8] sm:$0xff]
        %v646 = vld [vmem:[#allocation6 + $0x10] sm:$0xff]
        %v647 = vld [vmem:[#allocation6 + $0x18] sm:$0xff]
        %v648 = vld [vmem:[#allocation6 + $0x20] sm:$0xff]
        %v649 = vld [vmem:[#allocation6 + $0x28] sm:$0xff]
        %v650 = vld [vmem:[#allocation6 + $0x30] sm:$0xff]
        %v651 = vld [vmem:[#allocation6 + $0x38] sm:$0xff]
        %v652 = vld [vmem:[#allocation6 + $0x40] sm:$0xff]
        %v653 = vld [vmem:[#allocation6 + $0x48] sm:$0xff]
        %v654 = vld [vmem:[#allocation6 + $0x50] sm:$0xff]
        %v655 = vld [vmem:[#allocation6 + $0x58] sm:$0xff]
        %v656 = vld [vmem:[#allocation6 + $0x60] sm:$0xff]
        %v657 = vld [vmem:[#allocation6 + $0x68] sm:$0xff]
        %v658 = vld [vmem:[#allocation6 + $0x70] sm:$0xff]
        %v659 = vld [vmem:[#allocation6 + $0x78] sm:$0xff]
        %v660 = vld [vmem:[#allocation6 + $0x80] sm:$0xff]
        %v661 = vld [vmem:[#allocation6 + $0x88] sm:$0xff]
        %v662 = vld [vmem:[#allocation6 + $0x90] sm:$0xff]
        %v663 = vld [vmem:[#allocation6 + $0x98] sm:$0xff]
        %v664 = vld [vmem:[#allocation6 + $0xa0] sm:$0xff]
        %v665 = vld [vmem:[#allocation6 + $0xa8] sm:$0xff]
        %v666 = vld [vmem:[#allocation6 + $0xb0] sm:$0xff]
        %v667 = vld [vmem:[#allocation6 + $0xb8] sm:$0xff]
        %v668 = vld [vmem:[#allocation6 + $0xc0] sm:$0xff]
        %v669 = vld [vmem:[#allocation6 + $0xc8] sm:$0xff]
        %v670 = vld [vmem:[#allocation6 + $0xd0] sm:$0xff]
        %v671 = vld [vmem:[#allocation6 + $0xd8] sm:$0xff]
        %v672 = vld [vmem:[#allocation6 + $0xe0] sm:$0xff]
        %v673 = vld [vmem:[#allocation6 + $0xe8] sm:$0xff]
        %v674 = vld [vmem:[#allocation6 + $0xf0] sm:$0xff]
        %v675 = vld [vmem:[#allocation6 + $0xf8] sm:$0xff]
        %v676 = vld [vmem:[#allocation6 + $0x100] sm:$0xff]
        %v677 = vld [vmem:[#allocation6 + $0x108] sm:$0xff]
        %v678 = vld [vmem:[#allocation6 + $0x110] sm:$0xff]
        %v679 = vld [vmem:[#allocation6 + $0x118] sm:$0xff]
        %v680 = vld [vmem:[#allocation6 + $0x120] sm:$0xff]
        %v681 = vld [vmem:[#allocation6 + $0x128] sm:$0xff]
        %v682 = vld [vmem:[#allocation6 + $0x130] sm:$0xff]
        %v683 = vld [vmem:[#allocation6 + $0x138] sm:$0xff]
        %v684 = vld [vmem:[#allocation6 + $0x140] sm:$0xff]
        %v685 = vld [vmem:[#allocation6 + $0x148] sm:$0xff]
        %v686 = vld [vmem:[#allocation6 + $0x150] sm:$0xff]
        %v687 = vld [vmem:[#allocation6 + $0x158] sm:$0xff]
        %v688 = vld [vmem:[#allocation6 + $0x160] sm:$0xff]
        %v689 = vld [vmem:[#allocation6 + $0x168] sm:$0xff]
        %v690 = vld [vmem:[#allocation6 + $0x170] sm:$0xff]
        %v691 = vld [vmem:[#allocation6 + $0x178] sm:$0xff]
        %v692 = vld [vmem:[#allocation6 + $0x180] sm:$0xff]
        %v693 = vld [vmem:[#allocation6 + $0x188] sm:$0xff]
        %v694 = vld [vmem:[#allocation6 + $0x190] sm:$0xff]
        %v695 = vld [vmem:[#allocation6 + $0x198] sm:$0xff]
        %v696 = vld [vmem:[#allocation6 + $0x1a0] sm:$0xff]
        %v697 = vld [vmem:[#allocation6 + $0x1a8] sm:$0xff]
        %v698 = vld [vmem:[#allocation6 + $0x1b0] sm:$0xff]
        %v699 = vld [vmem:[#allocation6 + $0x1b8] sm:$0xff]
        %v700 = vld [vmem:[#allocation6 + $0x1c0] sm:$0xff]
        %v701 = vld [vmem:[#allocation6 + $0x1c8] sm:$0xff]
        %v702 = vld [vmem:[#allocation6 + $0x1d0] sm:$0xff]
        %v703 = vld [vmem:[#allocation6 + $0x1d8] sm:$0xff]
        %v704 = vld [vmem:[#allocation6 + $0x1e0] sm:$0xff]
        %v705 = vld [vmem:[#allocation6 + $0x1e8] sm:$0xff]
        %v706 = vld [vmem:[#allocation6 + $0x1f0] sm:$0xff]
        %v707 = vld [vmem:[#allocation6 + $0x1f8] sm:$0xff]
        %v772 = vunpack.c.l.b16 %v644
        %v773 = vunpack.c.h.b16 %v644
        %v774 = vunpack.c.l.b16 %v645
        %v775 = vunpack.c.h.b16 %v645
        %v776 = vunpack.c.l.b16 %v646
        %v777 = vunpack.c.h.b16 %v646
        %v778 = vunpack.c.l.b16 %v647
        %v779 = vunpack.c.h.b16 %v647
        %v780 = vunpack.c.l.b16 %v648
        %v781 = vunpack.c.h.b16 %v648
        %v782 = vunpack.c.l.b16 %v649
        %v783 = vunpack.c.h.b16 %v649
        %v784 = vunpack.c.l.b16 %v650
        %v785 = vunpack.c.h.b16 %v650
        %v786 = vunpack.c.l.b16 %v651
        %v787 = vunpack.c.h.b16 %v651
        %v788 = vunpack.c.l.b16 %v652
        %v789 = vunpack.c.h.b16 %v652
        %v790 = vunpack.c.l.b16 %v653
        %v791 = vunpack.c.h.b16 %v653
        %v792 = vunpack.c.l.b16 %v654
        %v793 = vunpack.c.h.b16 %v654
        %v794 = vunpack.c.l.b16 %v655
        %v795 = vunpack.c.h.b16 %v655
        %v796 = vunpack.c.l.b16 %v656
        %v797 = vunpack.c.h.b16 %v656
        %v798 = vunpack.c.l.b16 %v657
        %v799 = vunpack.c.h.b16 %v657
        %v800 = vunpack.c.l.b16 %v658
        %v801 = vunpack.c.h.b16 %v658
        %v802 = vunpack.c.l.b16 %v659
        %v803 = vunpack.c.h.b16 %v659
        %v804 = vunpack.c.l.b16 %v660
        %v805 = vunpack.c.h.b16 %v660
        %v806 = vunpack.c.l.b16 %v661
        %v807 = vunpack.c.h.b16 %v661
        %v808 = vunpack.c.l.b16 %v662
        %v809 = vunpack.c.h.b16 %v662
        %v810 = vunpack.c.l.b16 %v663
        %v811 = vunpack.c.h.b16 %v663
        %v812 = vunpack.c.l.b16 %v664
        %v813 = vunpack.c.h.b16 %v664
        %v814 = vunpack.c.l.b16 %v665
        %v815 = vunpack.c.h.b16 %v665
        %v816 = vunpack.c.l.b16 %v666
        %v817 = vunpack.c.h.b16 %v666
        %v818 = vunpack.c.l.b16 %v667
        %v819 = vunpack.c.h.b16 %v667
        %v820 = vunpack.c.l.b16 %v668
        %v821 = vunpack.c.h.b16 %v668
        %v822 = vunpack.c.l.b16 %v669
        %v823 = vunpack.c.h.b16 %v669
        %v824 = vunpack.c.l.b16 %v670
        %v825 = vunpack.c.h.b16 %v670
        %v826 = vunpack.c.l.b16 %v671
        %v827 = vunpack.c.h.b16 %v671
        %v828 = vunpack.c.l.b16 %v672
        %v829 = vunpack.c.h.b16 %v672
        %v830 = vunpack.c.l.b16 %v673
        %v831 = vunpack.c.h.b16 %v673
        %v832 = vunpack.c.l.b16 %v674
        %v833 = vunpack.c.h.b16 %v674
        %v834 = vunpack.c.l.b16 %v675
        %v835 = vunpack.c.h.b16 %v675
        %v836 = vunpack.c.l.b16 %v676
        %v837 = vunpack.c.h.b16 %v676
        %v838 = vunpack.c.l.b16 %v677
        %v839 = vunpack.c.h.b16 %v677
        %v840 = vunpack.c.l.b16 %v678
        %v841 = vunpack.c.h.b16 %v678
        %v842 = vunpack.c.l.b16 %v679
        %v843 = vunpack.c.h.b16 %v679
        %v844 = vunpack.c.l.b16 %v680
        %v845 = vunpack.c.h.b16 %v680
        %v846 = vunpack.c.l.b16 %v681
        %v847 = vunpack.c.h.b16 %v681
        %v848 = vunpack.c.l.b16 %v682
        %v849 = vunpack.c.h.b16 %v682
        %v850 = vunpack.c.l.b16 %v683
        %v851 = vunpack.c.h.b16 %v683
        %v852 = vunpack.c.l.b16 %v684
        %v853 = vunpack.c.h.b16 %v684
        %v854 = vunpack.c.l.b16 %v685
        %v855 = vunpack.c.h.b16 %v685
        %v856 = vunpack.c.l.b16 %v686
        %v857 = vunpack.c.h.b16 %v686
        %v858 = vunpack.c.l.b16 %v687
        %v859 = vunpack.c.h.b16 %v687
        %v860 = vunpack.c.l.b16 %v688
        %v861 = vunpack.c.h.b16 %v688
        %v862 = vunpack.c.l.b16 %v689
        %v863 = vunpack.c.h.b16 %v689
        %v864 = vunpack.c.l.b16 %v690
        %v865 = vunpack.c.h.b16 %v690
        %v866 = vunpack.c.l.b16 %v691
        %v867 = vunpack.c.h.b16 %v691
        %v868 = vunpack.c.l.b16 %v692
        %v869 = vunpack.c.h.b16 %v692
        %v870 = vunpack.c.l.b16 %v693
        %v871 = vunpack.c.h.b16 %v693
        %v872 = vunpack.c.l.b16 %v694
        %v873 = vunpack.c.h.b16 %v694
        %v874 = vunpack.c.l.b16 %v695
        %v875 = vunpack.c.h.b16 %v695
        %v876 = vunpack.c.l.b16 %v696
        %v877 = vunpack.c.h.b16 %v696
        %v878 = vunpack.c.l.b16 %v697
        %v879 = vunpack.c.h.b16 %v697
        %v880 = vunpack.c.l.b16 %v698
        %v881 = vunpack.c.h.b16 %v698
        %v882 = vunpack.c.l.b16 %v699
        %v883 = vunpack.c.h.b16 %v699
        %v884 = vunpack.c.l.b16 %v700
        %v885 = vunpack.c.h.b16 %v700
        %v886 = vunpack.c.l.b16 %v701
        %v887 = vunpack.c.h.b16 %v701
        %v888 = vunpack.c.l.b16 %v702
        %v889 = vunpack.c.h.b16 %v702
        %v890 = vunpack.c.l.b16 %v703
        %v891 = vunpack.c.h.b16 %v703
        %v892 = vunpack.c.l.b16 %v704
        %v893 = vunpack.c.h.b16 %v704
        %v894 = vunpack.c.l.b16 %v705
        %v895 = vunpack.c.h.b16 %v705
        %v896 = vunpack.c.l.b16 %v706
        %v897 = vunpack.c.h.b16 %v706
        %v898 = vunpack.c.l.b16 %v707
        %v899 = vunpack.c.h.b16 %v707
        %v900 = vpack.c.b16 %v776, %v772
        %v901 = vpack.c.b16 %v777, %v773
        %v902 = vpack.c.b16 %v778, %v774
        %v903 = vpack.c.b16 %v779, %v775
        %v904 = vpack.c.b16 %v784, %v780
        %v905 = vpack.c.b16 %v785, %v781
        %v906 = vpack.c.b16 %v786, %v782
        %v907 = vpack.c.b16 %v787, %v783
        %v908 = vpack.c.b16 %v792, %v788
        %v909 = vpack.c.b16 %v793, %v789
        %v910 = vpack.c.b16 %v794, %v790
        %v911 = vpack.c.b16 %v795, %v791
        %v912 = vpack.c.b16 %v800, %v796
        %v913 = vpack.c.b16 %v801, %v797
        %v914 = vpack.c.b16 %v802, %v798
        %v915 = vpack.c.b16 %v803, %v799
        %v916 = vpack.c.b16 %v808, %v804
        %v917 = vpack.c.b16 %v809, %v805
        %v918 = vpack.c.b16 %v810, %v806
        %v919 = vpack.c.b16 %v811, %v807
        %v920 = vpack.c.b16 %v816, %v812
        %v921 = vpack.c.b16 %v817, %v813
        %v922 = vpack.c.b16 %v818, %v814
        %v923 = vpack.c.b16 %v819, %v815
        %v924 = vpack.c.b16 %v824, %v820
        %v925 = vpack.c.b16 %v825, %v821
        %v926 = vpack.c.b16 %v826, %v822
        %v927 = vpack.c.b16 %v827, %v823
        %v928 = vpack.c.b16 %v832, %v828
        %v929 = vpack.c.b16 %v833, %v829
        %v930 = vpack.c.b16 %v834, %v830
        %v931 = vpack.c.b16 %v835, %v831
        %v932 = vpack.c.b16 %v840, %v836
        %v933 = vpack.c.b16 %v841, %v837
        %v934 = vpack.c.b16 %v842, %v838
        %v935 = vpack.c.b16 %v843, %v839
        %v936 = vpack.c.b16 %v848, %v844
        %v937 = vpack.c.b16 %v849, %v845
        %v938 = vpack.c.b16 %v850, %v846
        %v939 = vpack.c.b16 %v851, %v847
        %v940 = vpack.c.b16 %v856, %v852
        %v941 = vpack.c.b16 %v857, %v853
        %v942 = vpack.c.b16 %v858, %v854
        %v943 = vpack.c.b16 %v859, %v855
        %v944 = vpack.c.b16 %v864, %v860
        %v945 = vpack.c.b16 %v865, %v861
        %v946 = vpack.c.b16 %v866, %v862
        %v947 = vpack.c.b16 %v867, %v863
        %v948 = vpack.c.b16 %v872, %v868
        %v949 = vpack.c.b16 %v873, %v869
        %v950 = vpack.c.b16 %v874, %v870
        %v951 = vpack.c.b16 %v875, %v871
        %v952 = vpack.c.b16 %v880, %v876
        %v953 = vpack.c.b16 %v881, %v877
        %v954 = vpack.c.b16 %v882, %v878
        %v955 = vpack.c.b16 %v883, %v879
        %v956 = vpack.c.b16 %v888, %v884
        %v957 = vpack.c.b16 %v889, %v885
        %v958 = vpack.c.b16 %v890, %v886
        %v959 = vpack.c.b16 %v891, %v887
        %v960 = vpack.c.b16 %v896, %v892
        %v961 = vpack.c.b16 %v897, %v893
        %v962 = vpack.c.b16 %v898, %v894
        %v963 = vpack.c.b16 %v899, %v895
        %1028 = vmatprep.subr.bf16.mxu0 %v901
        %1029 = vmatpush1.bf16.msra.mxu0 %v900
        %1030 = vmatprep.subr.bf16.mxu0 %v905
        %1031 = vmatpush1.bf16.msra.mxu0 %v904
        %1032 = vmatprep.subr.bf16.mxu0 %v909
        %1033 = vmatpush1.bf16.msra.mxu0 %v908
        %1034 = vmatprep.subr.bf16.mxu0 %v913
        %1035 = vmatpush1.bf16.msra.mxu0 %v912
        %1036 = vmatprep.subr.bf16.mxu0 %v917
        %1037 = vmatpush1.bf16.msra.mxu0 %v916
        %1038 = vmatprep.subr.bf16.mxu0 %v921
        %1039 = vmatpush1.bf16.msra.mxu0 %v920
        %1040 = vmatprep.subr.bf16.mxu0 %v925
        %1041 = vmatpush1.bf16.msra.mxu0 %v924
        %1042 = vmatprep.subr.bf16.mxu0 %v929
        %1043 = vmatpush1.bf16.msra.mxu0 %v928
        %1044 = vmatprep.subr.bf16.mxu0 %v933
        %1045 = vmatpush1.bf16.msra.mxu0 %v932
        %1046 = vmatprep.subr.bf16.mxu0 %v937
        %1047 = vmatpush1.bf16.msra.mxu0 %v936
        %1048 = vmatprep.subr.bf16.mxu0 %v941
        %1049 = vmatpush1.bf16.msra.mxu0 %v940
        %1050 = vmatprep.subr.bf16.mxu0 %v945
        %1051 = vmatpush1.bf16.msra.mxu0 %v944
        %1052 = vmatprep.subr.bf16.mxu0 %v949
        %1053 = vmatpush1.bf16.msra.mxu0 %v948
        %1054 = vmatprep.subr.bf16.mxu0 %v953
        %1055 = vmatpush1.bf16.msra.mxu0 %v952
        %1056 = vmatprep.subr.bf16.mxu0 %v957
        %1057 = vmatpush1.bf16.msra.mxu0 %v956
        %1058 = vmatprep.subr.bf16.mxu0 %v961
        %1059 = vmatpush1.bf16.msra.mxu0 %v960
        %1060 = vmatprep.mubr.bf16.mxu0 %v643
        %1061 = vmatmul.mubr.bf16.gmra.mrb[0].mxu0 %v642
        %v1062 = vpop.f32.mrb[0].mxu0
        %v1063 = vadd.f32 0.0, %v1062
        %v1064 = vpop.f32.mrb[0].mxu0
        %v1065 = vadd.f32 0.0, %v1064
        %v1066 = vpop.f32.mrb[0].mxu0
        %v1067 = vadd.f32 0.0, %v1066
        %v1068 = vpop.f32.mrb[0].mxu0
        %v1069 = vadd.f32 0.0, %v1068
        %1070 = vdwg.mxu0
        %1071 = vmatprep.subr.bf16.mxu0 %v903
        %1072 = vmatpush1.bf16.msra.mxu0 %v902
        %1073 = vmatprep.subr.bf16.mxu0 %v907
        %1074 = vmatpush1.bf16.msra.mxu0 %v906
        %1075 = vmatprep.subr.bf16.mxu0 %v911
        %1076 = vmatpush1.bf16.msra.mxu0 %v910
        %1077 = vmatprep.subr.bf16.mxu0 %v915
        %1078 = vmatpush1.bf16.msra.mxu0 %v914
        %1079 = vmatprep.subr.bf16.mxu0 %v919
        %1080 = vmatpush1.bf16.msra.mxu0 %v918
        %1081 = vmatprep.subr.bf16.mxu0 %v923
        %1082 = vmatpush1.bf16.msra.mxu0 %v922
        %1083 = vmatprep.subr.bf16.mxu0 %v927
        %1084 = vmatpush1.bf16.msra.mxu0 %v926
        %1085 = vmatprep.subr.bf16.mxu0 %v931
        %1086 = vmatpush1.bf16.msra.mxu0 %v930
        %1087 = vmatprep.subr.bf16.mxu0 %v935
        %1088 = vmatpush1.bf16.msra.mxu0 %v934
        %1089 = vmatprep.subr.bf16.mxu0 %v939
        %1090 = vmatpush1.bf16.msra.mxu0 %v938
        %1091 = vmatprep.subr.bf16.mxu0 %v943
        %1092 = vmatpush1.bf16.msra.mxu0 %v942
        %1093 = vmatprep.subr.bf16.mxu0 %v947
        %1094 = vmatpush1.bf16.msra.mxu0 %v946
        %1095 = vmatprep.subr.bf16.mxu0 %v951
        %1096 = vmatpush1.bf16.msra.mxu0 %v950
        %1097 = vmatprep.subr.bf16.mxu0 %v955
        %1098 = vmatpush1.bf16.msra.mxu0 %v954
        %1099 = vmatprep.subr.bf16.mxu0 %v959
        %1100 = vmatpush1.bf16.msra.mxu0 %v958
        %1101 = vmatprep.subr.bf16.mxu0 %v963
        %1102 = vmatpush1.bf16.msra.mxu0 %v962
        %1103 = vmatprep.mubr.bf16.mxu0 %v643
        %1104 = vmatmul.mubr.bf16.gmra.mrb[0].mxu0 %v642
        %v1105 = vpop.f32.mrb[0].mxu0
        %v1106 = vadd.f32 0.0, %v1105
        %v1107 = vpop.f32.mrb[0].mxu0
        %v1108 = vadd.f32 0.0, %v1107
        %v1109 = vpop.f32.mrb[0].mxu0
        %v1110 = vadd.f32 0.0, %v1109
        %v1111 = vpop.f32.mrb[0].mxu0
        %v1112 = vadd.f32 0.0, %v1111
        %1113 = vdwg.mxu0
        %v1114 = vpack.c.bf16 %v1067, %v1063
        %v1115 = vpack.c.bf16 %v1069, %v1065
        %v1116 = vpack.c.bf16 %v1110, %v1106
        %v1117 = vpack.c.bf16 %v1112, %v1108
        %v1118 = vld [vmem:[#allocation7] sm:$0xf]
        %v1121 = vunpack.c.l.s4 1966171168
        %v1122 = vunpack.c.0.s8 %v1121
        %v1123 = vlaneseq
        %v1124 = vshrl.u32 %v1123, 7
        %v1125 = vsub.s32 %v1122, %v1124
        %v1126 = vrot.slane %v1118, %v1125
        %v1127 = vcombine.high %v1126, %v1126
        %v1129 = vunpack.c.l.s4 1966171168
        %v1130 = vunpack.c.0.s8 %v1129
        %v1131 = vlaneseq
        %v1132 = vshrl.u32 %v1131, 7
        %v1133 = vsub.s32 %v1130, %v1132
        %v1134 = vrot.slane %v1126, %v1133
        %v1136 = vunpack.c.l.s4 1966171168
        %v1137 = vunpack.c.0.s8 %v1136
        %v1138 = vlaneseq
        %v1139 = vshrl.u32 %v1138, 7
        %v1140 = vsub.s32 %v1137, %v1139
        %v1141 = vrot.slane %v1127, %v1140
        %v1142 = vcombine.high %v1134, %v1134
        %v1143 = vcombine.high %v1141, %v1141
        %v1145 = vpack.i.b16 %v1134, %v1134
        %v1147 = vlaneseq
        %v1148 = vshrl.u32 %v1147, 7
        %v1149 = vsub.s32 0, %v1148
        %v1150 = vrot.slane %v1145, %v1149
        %v1152 = vpack.i.b16 %v1141, %v1141
        %v1154 = vlaneseq
        %v1155 = vshrl.u32 %v1154, 7
        %v1156 = vsub.s32 0, %v1155
        %v1157 = vrot.slane %v1152, %v1156
        %v1159 = vpack.i.b16 %v1142, %v1142
        %v1161 = vlaneseq
        %v1162 = vshrl.u32 %v1161, 7
        %v1163 = vsub.s32 0, %v1162
        %v1164 = vrot.slane %v1159, %v1163
        %v1166 = vpack.i.b16 %v1143, %v1143
        %v1168 = vlaneseq
        %v1169 = vshrl.u32 %v1168, 7
        %v1170 = vsub.s32 0, %v1169
        %v1171 = vrot.slane %v1166, %v1170
        %v1172 = vadd.bf16 %v1114, %v1150
        %v1173 = vadd.bf16 %v1115, %v1157
        %v1174 = vadd.bf16 %v1116, %v1164
        %v1175 = vadd.bf16 %v1117, %v1171
        %vm1176 = vcmp.gt.bf16.partialorder %v1172, 0
        %vm1177 = vcmp.gt.bf16.partialorder %v1173, 0
        %vm1178 = vcmp.gt.bf16.partialorder %v1174, 0
        %vm1179 = vcmp.gt.bf16.partialorder %v1175, 0
        %v1180 = vmul.bf16 %v1172, 1045249613
        %v1181 = vmul.bf16 %v1173, 1045249613
        %v1182 = vmul.bf16 %v1174, 1045249613
        %v1183 = vmul.bf16 %v1175, 1045249613
        %v1184 = vsel %vm1176, %v1172, %v1180
        %v1185 = vsel %vm1177, %v1173, %v1181
        %v1186 = vsel %vm1178, %v1174, %v1182
        %v1187 = vsel %vm1179, %v1175, %v1183
        %v1188 = vld [vmem:[#allocation9] sm:$0xff]
        %v1189 = vld [vmem:[#allocation9 + $0x8] sm:$0xff]
        %v1190 = vld [vmem:[#allocation9 + $0x10] sm:$0xff]
        %v1191 = vld [vmem:[#allocation9 + $0x18] sm:$0xff]
        %v1192 = vld [vmem:[#allocation9 + $0x20] sm:$0xff]
        %v1193 = vld [vmem:[#allocation9 + $0x28] sm:$0xff]
        %v1194 = vld [vmem:[#allocation9 + $0x30] sm:$0xff]
        %v1195 = vld [vmem:[#allocation9 + $0x38] sm:$0xff]
        %v1196 = vld [vmem:[#allocation9 + $0x40] sm:$0xff]
        %v1197 = vld [vmem:[#allocation9 + $0x48] sm:$0xff]
        %v1198 = vld [vmem:[#allocation9 + $0x50] sm:$0xff]
        %v1199 = vld [vmem:[#allocation9 + $0x58] sm:$0xff]
        %v1200 = vld [vmem:[#allocation9 + $0x60] sm:$0xff]
        %v1201 = vld [vmem:[#allocation9 + $0x68] sm:$0xff]
        %v1202 = vld [vmem:[#allocation9 + $0x70] sm:$0xff]
        %v1203 = vld [vmem:[#allocation9 + $0x78] sm:$0xff]
        %v1204 = vld [vmem:[#allocation9 + $0x80] sm:$0xff]
        %v1205 = vld [vmem:[#allocation9 + $0x88] sm:$0xff]
        %v1206 = vld [vmem:[#allocation9 + $0x90] sm:$0xff]
        %v1207 = vld [vmem:[#allocation9 + $0x98] sm:$0xff]
        %v1208 = vld [vmem:[#allocation9 + $0xa0] sm:$0xff]
        %v1209 = vld [vmem:[#allocation9 + $0xa8] sm:$0xff]
        %v1210 = vld [vmem:[#allocation9 + $0xb0] sm:$0xff]
        %v1211 = vld [vmem:[#allocation9 + $0xb8] sm:$0xff]
        %v1212 = vld [vmem:[#allocation9 + $0xc0] sm:$0xff]
        %v1213 = vld [vmem:[#allocation9 + $0xc8] sm:$0xff]
        %v1214 = vld [vmem:[#allocation9 + $0xd0] sm:$0xff]
        %v1215 = vld [vmem:[#allocation9 + $0xd8] sm:$0xff]
        %v1216 = vld [vmem:[#allocation9 + $0xe0] sm:$0xff]
        %v1217 = vld [vmem:[#allocation9 + $0xe8] sm:$0xff]
        %v1218 = vld [vmem:[#allocation9 + $0xf0] sm:$0xff]
        %v1219 = vld [vmem:[#allocation9 + $0xf8] sm:$0xff]
        %v1220 = vld [vmem:[#allocation9 + $0x100] sm:$0xff]
        %v1221 = vld [vmem:[#allocation9 + $0x108] sm:$0xff]
        %v1222 = vld [vmem:[#allocation9 + $0x110] sm:$0xff]
        %v1223 = vld [vmem:[#allocation9 + $0x118] sm:$0xff]
        %v1224 = vld [vmem:[#allocation9 + $0x120] sm:$0xff]
        %v1225 = vld [vmem:[#allocation9 + $0x128] sm:$0xff]
        %v1226 = vld [vmem:[#allocation9 + $0x130] sm:$0xff]
        %v1227 = vld [vmem:[#allocation9 + $0x138] sm:$0xff]
        %v1228 = vld [vmem:[#allocation9 + $0x140] sm:$0xff]
        %v1229 = vld [vmem:[#allocation9 + $0x148] sm:$0xff]
        %v1230 = vld [vmem:[#allocation9 + $0x150] sm:$0xff]
        %v1231 = vld [vmem:[#allocation9 + $0x158] sm:$0xff]
        %v1232 = vld [vmem:[#allocation9 + $0x160] sm:$0xff]
        %v1233 = vld [vmem:[#allocation9 + $0x168] sm:$0xff]
        %v1234 = vld [vmem:[#allocation9 + $0x170] sm:$0xff]
        %v1235 = vld [vmem:[#allocation9 + $0x178] sm:$0xff]
        %v1236 = vld [vmem:[#allocation9 + $0x180] sm:$0xff]
        %v1237 = vld [vmem:[#allocation9 + $0x188] sm:$0xff]
        %v1238 = vld [vmem:[#allocation9 + $0x190] sm:$0xff]
        %v1239 = vld [vmem:[#allocation9 + $0x198] sm:$0xff]
        %v1240 = vld [vmem:[#allocation9 + $0x1a0] sm:$0xff]
        %v1241 = vld [vmem:[#allocation9 + $0x1a8] sm:$0xff]
        %v1242 = vld [vmem:[#allocation9 + $0x1b0] sm:$0xff]
        %v1243 = vld [vmem:[#allocation9 + $0x1b8] sm:$0xff]
        %v1244 = vld [vmem:[#allocation9 + $0x1c0] sm:$0xff]
        %v1245 = vld [vmem:[#allocation9 + $0x1c8] sm:$0xff]
        %v1246 = vld [vmem:[#allocation9 + $0x1d0] sm:$0xff]
        %v1247 = vld [vmem:[#allocation9 + $0x1d8] sm:$0xff]
        %v1248 = vld [vmem:[#allocation9 + $0x1e0] sm:$0xff]
        %v1249 = vld [vmem:[#allocation9 + $0x1e8] sm:$0xff]
        %v1250 = vld [vmem:[#allocation9 + $0x1f0] sm:$0xff]
        %v1251 = vld [vmem:[#allocation9 + $0x1f8] sm:$0xff]
        %v1252 = vld [vmem:[#allocation9 + $0x200] sm:$0xff]
        %v1253 = vld [vmem:[#allocation9 + $0x208] sm:$0xff]
        %v1254 = vld [vmem:[#allocation9 + $0x210] sm:$0xff]
        %v1255 = vld [vmem:[#allocation9 + $0x218] sm:$0xff]
        %v1256 = vld [vmem:[#allocation9 + $0x220] sm:$0xff]
        %v1257 = vld [vmem:[#allocation9 + $0x228] sm:$0xff]
        %v1258 = vld [vmem:[#allocation9 + $0x230] sm:$0xff]
        %v1259 = vld [vmem:[#allocation9 + $0x238] sm:$0xff]
        %v1260 = vld [vmem:[#allocation9 + $0x240] sm:$0xff]
        %v1261 = vld [vmem:[#allocation9 + $0x248] sm:$0xff]
        %v1262 = vld [vmem:[#allocation9 + $0x250] sm:$0xff]
        %v1263 = vld [vmem:[#allocation9 + $0x258] sm:$0xff]
        %v1264 = vld [vmem:[#allocation9 + $0x260] sm:$0xff]
        %v1265 = vld [vmem:[#allocation9 + $0x268] sm:$0xff]
        %v1266 = vld [vmem:[#allocation9 + $0x270] sm:$0xff]
        %v1267 = vld [vmem:[#allocation9 + $0x278] sm:$0xff]
        %v1268 = vld [vmem:[#allocation9 + $0x280] sm:$0xff]
        %v1269 = vld [vmem:[#allocation9 + $0x288] sm:$0xff]
        %v1270 = vld [vmem:[#allocation9 + $0x290] sm:$0xff]
        %v1271 = vld [vmem:[#allocation9 + $0x298] sm:$0xff]
        %v1272 = vld [vmem:[#allocation9 + $0x2a0] sm:$0xff]
        %v1273 = vld [vmem:[#allocation9 + $0x2a8] sm:$0xff]
        %v1274 = vld [vmem:[#allocation9 + $0x2b0] sm:$0xff]
        %v1275 = vld [vmem:[#allocation9 + $0x2b8] sm:$0xff]
        %v1276 = vld [vmem:[#allocation9 + $0x2c0] sm:$0xff]
        %v1277 = vld [vmem:[#allocation9 + $0x2c8] sm:$0xff]
        %v1278 = vld [vmem:[#allocation9 + $0x2d0] sm:$0xff]
        %v1279 = vld [vmem:[#allocation9 + $0x2d8] sm:$0xff]
        %v1280 = vld [vmem:[#allocation9 + $0x2e0] sm:$0xff]
        %v1281 = vld [vmem:[#allocation9 + $0x2e8] sm:$0xff]
        %v1282 = vld [vmem:[#allocation9 + $0x2f0] sm:$0xff]
        %v1283 = vld [vmem:[#allocation9 + $0x2f8] sm:$0xff]
        %v1284 = vld [vmem:[#allocation9 + $0x300] sm:$0xff]
        %v1285 = vld [vmem:[#allocation9 + $0x308] sm:$0xff]
        %v1286 = vld [vmem:[#allocation9 + $0x310] sm:$0xff]
        %v1287 = vld [vmem:[#allocation9 + $0x318] sm:$0xff]
        %v1288 = vld [vmem:[#allocation9 + $0x320] sm:$0xff]
        %v1289 = vld [vmem:[#allocation9 + $0x328] sm:$0xff]
        %v1290 = vld [vmem:[#allocation9 + $0x330] sm:$0xff]
        %v1291 = vld [vmem:[#allocation9 + $0x338] sm:$0xff]
        %v1292 = vld [vmem:[#allocation9 + $0x340] sm:$0xff]
        %v1293 = vld [vmem:[#allocation9 + $0x348] sm:$0xff]
        %v1294 = vld [vmem:[#allocation9 + $0x350] sm:$0xff]
        %v1295 = vld [vmem:[#allocation9 + $0x358] sm:$0xff]
        %v1296 = vld [vmem:[#allocation9 + $0x360] sm:$0xff]
        %v1297 = vld [vmem:[#allocation9 + $0x368] sm:$0xff]
        %v1298 = vld [vmem:[#allocation9 + $0x370] sm:$0xff]
        %v1299 = vld [vmem:[#allocation9 + $0x378] sm:$0xff]
        %v1300 = vld [vmem:[#allocation9 + $0x380] sm:$0xff]
        %v1301 = vld [vmem:[#allocation9 + $0x388] sm:$0xff]
        %v1302 = vld [vmem:[#allocation9 + $0x390] sm:$0xff]
        %v1303 = vld [vmem:[#allocation9 + $0x398] sm:$0xff]
        %v1304 = vld [vmem:[#allocation9 + $0x3a0] sm:$0xff]
        %v1305 = vld [vmem:[#allocation9 + $0x3a8] sm:$0xff]
        %v1306 = vld [vmem:[#allocation9 + $0x3b0] sm:$0xff]
        %v1307 = vld [vmem:[#allocation9 + $0x3b8] sm:$0xff]
        %v1308 = vld [vmem:[#allocation9 + $0x3c0] sm:$0xff]
        %v1309 = vld [vmem:[#allocation9 + $0x3c8] sm:$0xff]
        %v1310 = vld [vmem:[#allocation9 + $0x3d0] sm:$0xff]
        %v1311 = vld [vmem:[#allocation9 + $0x3d8] sm:$0xff]
        %v1312 = vld [vmem:[#allocation9 + $0x3e0] sm:$0xff]
        %v1313 = vld [vmem:[#allocation9 + $0x3e8] sm:$0xff]
        %v1314 = vld [vmem:[#allocation9 + $0x3f0] sm:$0xff]
        %v1315 = vld [vmem:[#allocation9 + $0x3f8] sm:$0xff]
        %v1316 = vld [vmem:[#allocation9 + $0x400] sm:$0xff]
        %v1317 = vld [vmem:[#allocation9 + $0x408] sm:$0xff]
        %v1318 = vld [vmem:[#allocation9 + $0x410] sm:$0xff]
        %v1319 = vld [vmem:[#allocation9 + $0x418] sm:$0xff]
        %v1320 = vld [vmem:[#allocation9 + $0x420] sm:$0xff]
        %v1321 = vld [vmem:[#allocation9 + $0x428] sm:$0xff]
        %v1322 = vld [vmem:[#allocation9 + $0x430] sm:$0xff]
        %v1323 = vld [vmem:[#allocation9 + $0x438] sm:$0xff]
        %v1324 = vld [vmem:[#allocation9 + $0x440] sm:$0xff]
        %v1325 = vld [vmem:[#allocation9 + $0x448] sm:$0xff]
        %v1326 = vld [vmem:[#allocation9 + $0x450] sm:$0xff]
        %v1327 = vld [vmem:[#allocation9 + $0x458] sm:$0xff]
        %v1328 = vld [vmem:[#allocation9 + $0x460] sm:$0xff]
        %v1329 = vld [vmem:[#allocation9 + $0x468] sm:$0xff]
        %v1330 = vld [vmem:[#allocation9 + $0x470] sm:$0xff]
        %v1331 = vld [vmem:[#allocation9 + $0x478] sm:$0xff]
        %v1332 = vld [vmem:[#allocation9 + $0x480] sm:$0xff]
        %v1333 = vld [vmem:[#allocation9 + $0x488] sm:$0xff]
        %v1334 = vld [vmem:[#allocation9 + $0x490] sm:$0xff]
        %v1335 = vld [vmem:[#allocation9 + $0x498] sm:$0xff]
        %v1336 = vld [vmem:[#allocation9 + $0x4a0] sm:$0xff]
        %v1337 = vld [vmem:[#allocation9 + $0x4a8] sm:$0xff]
        %v1338 = vld [vmem:[#allocation9 + $0x4b0] sm:$0xff]
        %v1339 = vld [vmem:[#allocation9 + $0x4b8] sm:$0xff]
        %v1340 = vld [vmem:[#allocation9 + $0x4c0] sm:$0xff]
        %v1341 = vld [vmem:[#allocation9 + $0x4c8] sm:$0xff]
        %v1342 = vld [vmem:[#allocation9 + $0x4d0] sm:$0xff]
        %v1343 = vld [vmem:[#allocation9 + $0x4d8] sm:$0xff]
        %v1344 = vld [vmem:[#allocation9 + $0x4e0] sm:$0xff]
        %v1345 = vld [vmem:[#allocation9 + $0x4e8] sm:$0xff]
        %v1346 = vld [vmem:[#allocation9 + $0x4f0] sm:$0xff]
        %v1347 = vld [vmem:[#allocation9 + $0x4f8] sm:$0xff]
        %v1348 = vld [vmem:[#allocation9 + $0x500] sm:$0xff]
        %v1349 = vld [vmem:[#allocation9 + $0x508] sm:$0xff]
        %v1350 = vld [vmem:[#allocation9 + $0x510] sm:$0xff]
        %v1351 = vld [vmem:[#allocation9 + $0x518] sm:$0xff]
        %v1352 = vld [vmem:[#allocation9 + $0x520] sm:$0xff]
        %v1353 = vld [vmem:[#allocation9 + $0x528] sm:$0xff]
        %v1354 = vld [vmem:[#allocation9 + $0x530] sm:$0xff]
        %v1355 = vld [vmem:[#allocation9 + $0x538] sm:$0xff]
        %v1356 = vld [vmem:[#allocation9 + $0x540] sm:$0xff]
        %v1357 = vld [vmem:[#allocation9 + $0x548] sm:$0xff]
        %v1358 = vld [vmem:[#allocation9 + $0x550] sm:$0xff]
        %v1359 = vld [vmem:[#allocation9 + $0x558] sm:$0xff]
        %v1360 = vld [vmem:[#allocation9 + $0x560] sm:$0xff]
        %v1361 = vld [vmem:[#allocation9 + $0x568] sm:$0xff]
        %v1362 = vld [vmem:[#allocation9 + $0x570] sm:$0xff]
        %v1363 = vld [vmem:[#allocation9 + $0x578] sm:$0xff]
        %v1364 = vld [vmem:[#allocation9 + $0x580] sm:$0xff]
        %v1365 = vld [vmem:[#allocation9 + $0x588] sm:$0xff]
        %v1366 = vld [vmem:[#allocation9 + $0x590] sm:$0xff]
        %v1367 = vld [vmem:[#allocation9 + $0x598] sm:$0xff]
        %v1368 = vld [vmem:[#allocation9 + $0x5a0] sm:$0xff]
        %v1369 = vld [vmem:[#allocation9 + $0x5a8] sm:$0xff]
        %v1370 = vld [vmem:[#allocation9 + $0x5b0] sm:$0xff]
        %v1371 = vld [vmem:[#allocation9 + $0x5b8] sm:$0xff]
        %v1372 = vld [vmem:[#allocation9 + $0x5c0] sm:$0xff]
        %v1373 = vld [vmem:[#allocation9 + $0x5c8] sm:$0xff]
        %v1374 = vld [vmem:[#allocation9 + $0x5d0] sm:$0xff]
        %v1375 = vld [vmem:[#allocation9 + $0x5d8] sm:$0xff]
        %v1376 = vld [vmem:[#allocation9 + $0x5e0] sm:$0xff]
        %v1377 = vld [vmem:[#allocation9 + $0x5e8] sm:$0xff]
        %v1378 = vld [vmem:[#allocation9 + $0x5f0] sm:$0xff]
        %v1379 = vld [vmem:[#allocation9 + $0x5f8] sm:$0xff]
        %v1380 = vld [vmem:[#allocation9 + $0x600] sm:$0xff]
        %v1381 = vld [vmem:[#allocation9 + $0x608] sm:$0xff]
        %v1382 = vld [vmem:[#allocation9 + $0x610] sm:$0xff]
        %v1383 = vld [vmem:[#allocation9 + $0x618] sm:$0xff]
        %v1384 = vld [vmem:[#allocation9 + $0x620] sm:$0xff]
        %v1385 = vld [vmem:[#allocation9 + $0x628] sm:$0xff]
        %v1386 = vld [vmem:[#allocation9 + $0x630] sm:$0xff]
        %v1387 = vld [vmem:[#allocation9 + $0x638] sm:$0xff]
        %v1388 = vld [vmem:[#allocation9 + $0x640] sm:$0xff]
        %v1389 = vld [vmem:[#allocation9 + $0x648] sm:$0xff]
        %v1390 = vld [vmem:[#allocation9 + $0x650] sm:$0xff]
        %v1391 = vld [vmem:[#allocation9 + $0x658] sm:$0xff]
        %v1392 = vld [vmem:[#allocation9 + $0x660] sm:$0xff]
        %v1393 = vld [vmem:[#allocation9 + $0x668] sm:$0xff]
        %v1394 = vld [vmem:[#allocation9 + $0x670] sm:$0xff]
        %v1395 = vld [vmem:[#allocation9 + $0x678] sm:$0xff]
        %v1396 = vld [vmem:[#allocation9 + $0x680] sm:$0xff]
        %v1397 = vld [vmem:[#allocation9 + $0x688] sm:$0xff]
        %v1398 = vld [vmem:[#allocation9 + $0x690] sm:$0xff]
        %v1399 = vld [vmem:[#allocation9 + $0x698] sm:$0xff]
        %v1400 = vld [vmem:[#allocation9 + $0x6a0] sm:$0xff]
        %v1401 = vld [vmem:[#allocation9 + $0x6a8] sm:$0xff]
        %v1402 = vld [vmem:[#allocation9 + $0x6b0] sm:$0xff]
        %v1403 = vld [vmem:[#allocation9 + $0x6b8] sm:$0xff]
        %v1404 = vld [vmem:[#allocation9 + $0x6c0] sm:$0xff]
        %v1405 = vld [vmem:[#allocation9 + $0x6c8] sm:$0xff]
        %v1406 = vld [vmem:[#allocation9 + $0x6d0] sm:$0xff]
        %v1407 = vld [vmem:[#allocation9 + $0x6d8] sm:$0xff]
        %v1408 = vld [vmem:[#allocation9 + $0x6e0] sm:$0xff]
        %v1409 = vld [vmem:[#allocation9 + $0x6e8] sm:$0xff]
        %v1410 = vld [vmem:[#allocation9 + $0x6f0] sm:$0xff]
        %v1411 = vld [vmem:[#allocation9 + $0x6f8] sm:$0xff]
        %v1412 = vld [vmem:[#allocation9 + $0x700] sm:$0xff]
        %v1413 = vld [vmem:[#allocation9 + $0x708] sm:$0xff]
        %v1414 = vld [vmem:[#allocation9 + $0x710] sm:$0xff]
        %v1415 = vld [vmem:[#allocation9 + $0x718] sm:$0xff]
        %v1416 = vld [vmem:[#allocation9 + $0x720] sm:$0xff]
        %v1417 = vld [vmem:[#allocation9 + $0x728] sm:$0xff]
        %v1418 = vld [vmem:[#allocation9 + $0x730] sm:$0xff]
        %v1419 = vld [vmem:[#allocation9 + $0x738] sm:$0xff]
        %v1420 = vld [vmem:[#allocation9 + $0x740] sm:$0xff]
        %v1421 = vld [vmem:[#allocation9 + $0x748] sm:$0xff]
        %v1422 = vld [vmem:[#allocation9 + $0x750] sm:$0xff]
        %v1423 = vld [vmem:[#allocation9 + $0x758] sm:$0xff]
        %v1424 = vld [vmem:[#allocation9 + $0x760] sm:$0xff]
        %v1425 = vld [vmem:[#allocation9 + $0x768] sm:$0xff]
        %v1426 = vld [vmem:[#allocation9 + $0x770] sm:$0xff]
        %v1427 = vld [vmem:[#allocation9 + $0x778] sm:$0xff]
        %v1428 = vld [vmem:[#allocation9 + $0x780] sm:$0xff]
        %v1429 = vld [vmem:[#allocation9 + $0x788] sm:$0xff]
        %v1430 = vld [vmem:[#allocation9 + $0x790] sm:$0xff]
        %v1431 = vld [vmem:[#allocation9 + $0x798] sm:$0xff]
        %v1432 = vld [vmem:[#allocation9 + $0x7a0] sm:$0xff]
        %v1433 = vld [vmem:[#allocation9 + $0x7a8] sm:$0xff]
        %v1434 = vld [vmem:[#allocation9 + $0x7b0] sm:$0xff]
        %v1435 = vld [vmem:[#allocation9 + $0x7b8] sm:$0xff]
        %v1436 = vld [vmem:[#allocation9 + $0x7c0] sm:$0xff]
        %v1437 = vld [vmem:[#allocation9 + $0x7c8] sm:$0xff]
        %v1438 = vld [vmem:[#allocation9 + $0x7d0] sm:$0xff]
        %v1439 = vld [vmem:[#allocation9 + $0x7d8] sm:$0xff]
        %v1440 = vld [vmem:[#allocation9 + $0x7e0] sm:$0xff]
        %v1441 = vld [vmem:[#allocation9 + $0x7e8] sm:$0xff]
        %v1442 = vld [vmem:[#allocation9 + $0x7f0] sm:$0xff]
        %v1443 = vld [vmem:[#allocation9 + $0x7f8] sm:$0xff]
        %v1700 = vunpack.c.l.b16 %v1188
        %v1701 = vunpack.c.h.b16 %v1188
        %v1702 = vunpack.c.l.b16 %v1189
        %v1703 = vunpack.c.h.b16 %v1189
        %v1704 = vunpack.c.l.b16 %v1190
        %v1705 = vunpack.c.h.b16 %v1190
        %v1706 = vunpack.c.l.b16 %v1191
        %v1707 = vunpack.c.h.b16 %v1191
        %v1708 = vunpack.c.l.b16 %v1192
        %v1709 = vunpack.c.h.b16 %v1192
        %v1710 = vunpack.c.l.b16 %v1193
        %v1711 = vunpack.c.h.b16 %v1193
        %v1712 = vunpack.c.l.b16 %v1194
        %v1713 = vunpack.c.h.b16 %v1194
        %v1714 = vunpack.c.l.b16 %v1195
        %v1715 = vunpack.c.h.b16 %v1195
        %v1716 = vunpack.c.l.b16 %v1196
        %v1717 = vunpack.c.h.b16 %v1196
        %v1718 = vunpack.c.l.b16 %v1197
        %v1719 = vunpack.c.h.b16 %v1197
        %v1720 = vunpack.c.l.b16 %v1198
        %v1721 = vunpack.c.h.b16 %v1198
        %v1722 = vunpack.c.l.b16 %v1199
        %v1723 = vunpack.c.h.b16 %v1199
        %v1724 = vunpack.c.l.b16 %v1200
        %v1725 = vunpack.c.h.b16 %v1200
        %v1726 = vunpack.c.l.b16 %v1201
        %v1727 = vunpack.c.h.b16 %v1201
        %v1728 = vunpack.c.l.b16 %v1202
        %v1729 = vunpack.c.h.b16 %v1202
        %v1730 = vunpack.c.l.b16 %v1203
        %v1731 = vunpack.c.h.b16 %v1203
        %v1732 = vunpack.c.l.b16 %v1204
        %v1733 = vunpack.c.h.b16 %v1204
        %v1734 = vunpack.c.l.b16 %v1205
        %v1735 = vunpack.c.h.b16 %v1205
        %v1736 = vunpack.c.l.b16 %v1206
        %v1737 = vunpack.c.h.b16 %v1206
        %v1738 = vunpack.c.l.b16 %v1207
        %v1739 = vunpack.c.h.b16 %v1207
        %v1740 = vunpack.c.l.b16 %v1208
        %v1741 = vunpack.c.h.b16 %v1208
        %v1742 = vunpack.c.l.b16 %v1209
        %v1743 = vunpack.c.h.b16 %v1209
        %v1744 = vunpack.c.l.b16 %v1210
        %v1745 = vunpack.c.h.b16 %v1210
        %v1746 = vunpack.c.l.b16 %v1211
        %v1747 = vunpack.c.h.b16 %v1211
        %v1748 = vunpack.c.l.b16 %v1212
        %v1749 = vunpack.c.h.b16 %v1212
        %v1750 = vunpack.c.l.b16 %v1213
        %v1751 = vunpack.c.h.b16 %v1213
        %v1752 = vunpack.c.l.b16 %v1214
        %v1753 = vunpack.c.h.b16 %v1214
        %v1754 = vunpack.c.l.b16 %v1215
        %v1755 = vunpack.c.h.b16 %v1215
        %v1756 = vunpack.c.l.b16 %v1216
        %v1757 = vunpack.c.h.b16 %v1216
        %v1758 = vunpack.c.l.b16 %v1217
        %v1759 = vunpack.c.h.b16 %v1217
        %v1760 = vunpack.c.l.b16 %v1218
        %v1761 = vunpack.c.h.b16 %v1218
        %v1762 = vunpack.c.l.b16 %v1219
        %v1763 = vunpack.c.h.b16 %v1219
        %v1764 = vunpack.c.l.b16 %v1220
        %v1765 = vunpack.c.h.b16 %v1220
        %v1766 = vunpack.c.l.b16 %v1221
        %v1767 = vunpack.c.h.b16 %v1221
        %v1768 = vunpack.c.l.b16 %v1222
        %v1769 = vunpack.c.h.b16 %v1222
        %v1770 = vunpack.c.l.b16 %v1223
        %v1771 = vunpack.c.h.b16 %v1223
        %v1772 = vunpack.c.l.b16 %v1224
        %v1773 = vunpack.c.h.b16 %v1224
        %v1774 = vunpack.c.l.b16 %v1225
        %v1775 = vunpack.c.h.b16 %v1225
        %v1776 = vunpack.c.l.b16 %v1226
        %v1777 = vunpack.c.h.b16 %v1226
        %v1778 = vunpack.c.l.b16 %v1227
        %v1779 = vunpack.c.h.b16 %v1227
        %v1780 = vunpack.c.l.b16 %v1228
        %v1781 = vunpack.c.h.b16 %v1228
        %v1782 = vunpack.c.l.b16 %v1229
        %v1783 = vunpack.c.h.b16 %v1229
        %v1784 = vunpack.c.l.b16 %v1230
        %v1785 = vunpack.c.h.b16 %v1230
        %v1786 = vunpack.c.l.b16 %v1231
        %v1787 = vunpack.c.h.b16 %v1231
        %v1788 = vunpack.c.l.b16 %v1232
        %v1789 = vunpack.c.h.b16 %v1232
        %v1790 = vunpack.c.l.b16 %v1233
        %v1791 = vunpack.c.h.b16 %v1233
        %v1792 = vunpack.c.l.b16 %v1234
        %v1793 = vunpack.c.h.b16 %v1234
        %v1794 = vunpack.c.l.b16 %v1235
        %v1795 = vunpack.c.h.b16 %v1235
        %v1796 = vunpack.c.l.b16 %v1236
        %v1797 = vunpack.c.h.b16 %v1236
        %v1798 = vunpack.c.l.b16 %v1237
        %v1799 = vunpack.c.h.b16 %v1237
        %v1800 = vunpack.c.l.b16 %v1238
        %v1801 = vunpack.c.h.b16 %v1238
        %v1802 = vunpack.c.l.b16 %v1239
        %v1803 = vunpack.c.h.b16 %v1239
        %v1804 = vunpack.c.l.b16 %v1240
        %v1805 = vunpack.c.h.b16 %v1240
        %v1806 = vunpack.c.l.b16 %v1241
        %v1807 = vunpack.c.h.b16 %v1241
        %v1808 = vunpack.c.l.b16 %v1242
        %v1809 = vunpack.c.h.b16 %v1242
        %v1810 = vunpack.c.l.b16 %v1243
        %v1811 = vunpack.c.h.b16 %v1243
        %v1812 = vunpack.c.l.b16 %v1244
        %v1813 = vunpack.c.h.b16 %v1244
        %v1814 = vunpack.c.l.b16 %v1245
        %v1815 = vunpack.c.h.b16 %v1245
        %v1816 = vunpack.c.l.b16 %v1246
        %v1817 = vunpack.c.h.b16 %v1246
        %v1818 = vunpack.c.l.b16 %v1247
        %v1819 = vunpack.c.h.b16 %v1247
        %v1820 = vunpack.c.l.b16 %v1248
        %v1821 = vunpack.c.h.b16 %v1248
        %v1822 = vunpack.c.l.b16 %v1249
        %v1823 = vunpack.c.h.b16 %v1249
        %v1824 = vunpack.c.l.b16 %v1250
        %v1825 = vunpack.c.h.b16 %v1250
        %v1826 = vunpack.c.l.b16 %v1251
        %v1827 = vunpack.c.h.b16 %v1251
        %v1828 = vunpack.c.l.b16 %v1252
        %v1829 = vunpack.c.h.b16 %v1252
        %v1830 = vunpack.c.l.b16 %v1253
        %v1831 = vunpack.c.h.b16 %v1253
        %v1832 = vunpack.c.l.b16 %v1254
        %v1833 = vunpack.c.h.b16 %v1254
        %v1834 = vunpack.c.l.b16 %v1255
        %v1835 = vunpack.c.h.b16 %v1255
        %v1836 = vunpack.c.l.b16 %v1256
        %v1837 = vunpack.c.h.b16 %v1256
        %v1838 = vunpack.c.l.b16 %v1257
        %v1839 = vunpack.c.h.b16 %v1257
        %v1840 = vunpack.c.l.b16 %v1258
        %v1841 = vunpack.c.h.b16 %v1258
        %v1842 = vunpack.c.l.b16 %v1259
        %v1843 = vunpack.c.h.b16 %v1259
        %v1844 = vunpack.c.l.b16 %v1260
        %v1845 = vunpack.c.h.b16 %v1260
        %v1846 = vunpack.c.l.b16 %v1261
        %v1847 = vunpack.c.h.b16 %v1261
        %v1848 = vunpack.c.l.b16 %v1262
        %v1849 = vunpack.c.h.b16 %v1262
        %v1850 = vunpack.c.l.b16 %v1263
        %v1851 = vunpack.c.h.b16 %v1263
        %v1852 = vunpack.c.l.b16 %v1264
        %v1853 = vunpack.c.h.b16 %v1264
        %v1854 = vunpack.c.l.b16 %v1265
        %v1855 = vunpack.c.h.b16 %v1265
        %v1856 = vunpack.c.l.b16 %v1266
        %v1857 = vunpack.c.h.b16 %v1266
        %v1858 = vunpack.c.l.b16 %v1267
        %v1859 = vunpack.c.h.b16 %v1267
        %v1860 = vunpack.c.l.b16 %v1268
        %v1861 = vunpack.c.h.b16 %v1268
        %v1862 = vunpack.c.l.b16 %v1269
        %v1863 = vunpack.c.h.b16 %v1269
        %v1864 = vunpack.c.l.b16 %v1270
        %v1865 = vunpack.c.h.b16 %v1270
        %v1866 = vunpack.c.l.b16 %v1271
        %v1867 = vunpack.c.h.b16 %v1271
        %v1868 = vunpack.c.l.b16 %v1272
        %v1869 = vunpack.c.h.b16 %v1272
        %v1870 = vunpack.c.l.b16 %v1273
        %v1871 = vunpack.c.h.b16 %v1273
        %v1872 = vunpack.c.l.b16 %v1274
        %v1873 = vunpack.c.h.b16 %v1274
        %v1874 = vunpack.c.l.b16 %v1275
        %v1875 = vunpack.c.h.b16 %v1275
        %v1876 = vunpack.c.l.b16 %v1276
        %v1877 = vunpack.c.h.b16 %v1276
        %v1878 = vunpack.c.l.b16 %v1277
        %v1879 = vunpack.c.h.b16 %v1277
        %v1880 = vunpack.c.l.b16 %v1278
        %v1881 = vunpack.c.h.b16 %v1278
        %v1882 = vunpack.c.l.b16 %v1279
        %v1883 = vunpack.c.h.b16 %v1279
        %v1884 = vunpack.c.l.b16 %v1280
        %v1885 = vunpack.c.h.b16 %v1280
        %v1886 = vunpack.c.l.b16 %v1281
        %v1887 = vunpack.c.h.b16 %v1281
        %v1888 = vunpack.c.l.b16 %v1282
        %v1889 = vunpack.c.h.b16 %v1282
        %v1890 = vunpack.c.l.b16 %v1283
        %v1891 = vunpack.c.h.b16 %v1283
        %v1892 = vunpack.c.l.b16 %v1284
        %v1893 = vunpack.c.h.b16 %v1284
        %v1894 = vunpack.c.l.b16 %v1285
        %v1895 = vunpack.c.h.b16 %v1285
        %v1896 = vunpack.c.l.b16 %v1286
        %v1897 = vunpack.c.h.b16 %v1286
        %v1898 = vunpack.c.l.b16 %v1287
        %v1899 = vunpack.c.h.b16 %v1287
        %v1900 = vunpack.c.l.b16 %v1288
        %v1901 = vunpack.c.h.b16 %v1288
        %v1902 = vunpack.c.l.b16 %v1289
        %v1903 = vunpack.c.h.b16 %v1289
        %v1904 = vunpack.c.l.b16 %v1290
        %v1905 = vunpack.c.h.b16 %v1290
        %v1906 = vunpack.c.l.b16 %v1291
        %v1907 = vunpack.c.h.b16 %v1291
        %v1908 = vunpack.c.l.b16 %v1292
        %v1909 = vunpack.c.h.b16 %v1292
        %v1910 = vunpack.c.l.b16 %v1293
        %v1911 = vunpack.c.h.b16 %v1293
        %v1912 = vunpack.c.l.b16 %v1294
        %v1913 = vunpack.c.h.b16 %v1294
        %v1914 = vunpack.c.l.b16 %v1295
        %v1915 = vunpack.c.h.b16 %v1295
        %v1916 = vunpack.c.l.b16 %v1296
        %v1917 = vunpack.c.h.b16 %v1296
        %v1918 = vunpack.c.l.b16 %v1297
        %v1919 = vunpack.c.h.b16 %v1297
        %v1920 = vunpack.c.l.b16 %v1298
        %v1921 = vunpack.c.h.b16 %v1298
        %v1922 = vunpack.c.l.b16 %v1299
        %v1923 = vunpack.c.h.b16 %v1299
        %v1924 = vunpack.c.l.b16 %v1300
        %v1925 = vunpack.c.h.b16 %v1300
        %v1926 = vunpack.c.l.b16 %v1301
        %v1927 = vunpack.c.h.b16 %v1301
        %v1928 = vunpack.c.l.b16 %v1302
        %v1929 = vunpack.c.h.b16 %v1302
        %v1930 = vunpack.c.l.b16 %v1303
        %v1931 = vunpack.c.h.b16 %v1303
        %v1932 = vunpack.c.l.b16 %v1304
        %v1933 = vunpack.c.h.b16 %v1304
        %v1934 = vunpack.c.l.b16 %v1305
        %v1935 = vunpack.c.h.b16 %v1305
        %v1936 = vunpack.c.l.b16 %v1306
        %v1937 = vunpack.c.h.b16 %v1306
        %v1938 = vunpack.c.l.b16 %v1307
        %v1939 = vunpack.c.h.b16 %v1307
        %v1940 = vunpack.c.l.b16 %v1308
        %v1941 = vunpack.c.h.b16 %v1308
        %v1942 = vunpack.c.l.b16 %v1309
        %v1943 = vunpack.c.h.b16 %v1309
        %v1944 = vunpack.c.l.b16 %v1310
        %v1945 = vunpack.c.h.b16 %v1310
        %v1946 = vunpack.c.l.b16 %v1311
        %v1947 = vunpack.c.h.b16 %v1311
        %v1948 = vunpack.c.l.b16 %v1312
        %v1949 = vunpack.c.h.b16 %v1312
        %v1950 = vunpack.c.l.b16 %v1313
        %v1951 = vunpack.c.h.b16 %v1313
        %v1952 = vunpack.c.l.b16 %v1314
        %v1953 = vunpack.c.h.b16 %v1314
        %v1954 = vunpack.c.l.b16 %v1315
        %v1955 = vunpack.c.h.b16 %v1315
        %v1956 = vunpack.c.l.b16 %v1316
        %v1957 = vunpack.c.h.b16 %v1316
        %v1958 = vunpack.c.l.b16 %v1317
        %v1959 = vunpack.c.h.b16 %v1317
        %v1960 = vunpack.c.l.b16 %v1318
        %v1961 = vunpack.c.h.b16 %v1318
        %v1962 = vunpack.c.l.b16 %v1319
        %v1963 = vunpack.c.h.b16 %v1319
        %v1964 = vunpack.c.l.b16 %v1320
        %v1965 = vunpack.c.h.b16 %v1320
        %v1966 = vunpack.c.l.b16 %v1321
        %v1967 = vunpack.c.h.b16 %v1321
        %v1968 = vunpack.c.l.b16 %v1322
        %v1969 = vunpack.c.h.b16 %v1322
        %v1970 = vunpack.c.l.b16 %v1323
        %v1971 = vunpack.c.h.b16 %v1323
        %v1972 = vunpack.c.l.b16 %v1324
        %v1973 = vunpack.c.h.b16 %v1324
        %v1974 = vunpack.c.l.b16 %v1325
        %v1975 = vunpack.c.h.b16 %v1325
        %v1976 = vunpack.c.l.b16 %v1326
        %v1977 = vunpack.c.h.b16 %v1326
        %v1978 = vunpack.c.l.b16 %v1327
        %v1979 = vunpack.c.h.b16 %v1327
        %v1980 = vunpack.c.l.b16 %v1328
        %v1981 = vunpack.c.h.b16 %v1328
        %v1982 = vunpack.c.l.b16 %v1329
        %v1983 = vunpack.c.h.b16 %v1329
        %v1984 = vunpack.c.l.b16 %v1330
        %v1985 = vunpack.c.h.b16 %v1330
        %v1986 = vunpack.c.l.b16 %v1331
        %v1987 = vunpack.c.h.b16 %v1331
        %v1988 = vunpack.c.l.b16 %v1332
        %v1989 = vunpack.c.h.b16 %v1332
        %v1990 = vunpack.c.l.b16 %v1333
        %v1991 = vunpack.c.h.b16 %v1333
        %v1992 = vunpack.c.l.b16 %v1334
        %v1993 = vunpack.c.h.b16 %v1334
        %v1994 = vunpack.c.l.b16 %v1335
        %v1995 = vunpack.c.h.b16 %v1335
        %v1996 = vunpack.c.l.b16 %v1336
        %v1997 = vunpack.c.h.b16 %v1336
        %v1998 = vunpack.c.l.b16 %v1337
        %v1999 = vunpack.c.h.b16 %v1337
        %v2000 = vunpack.c.l.b16 %v1338
        %v2001 = vunpack.c.h.b16 %v1338
        %v2002 = vunpack.c.l.b16 %v1339
        %v2003 = vunpack.c.h.b16 %v1339
        %v2004 = vunpack.c.l.b16 %v1340
        %v2005 = vunpack.c.h.b16 %v1340
        %v2006 = vunpack.c.l.b16 %v1341
        %v2007 = vunpack.c.h.b16 %v1341
        %v2008 = vunpack.c.l.b16 %v1342
        %v2009 = vunpack.c.h.b16 %v1342
        %v2010 = vunpack.c.l.b16 %v1343
        %v2011 = vunpack.c.h.b16 %v1343
        %v2012 = vunpack.c.l.b16 %v1344
        %v2013 = vunpack.c.h.b16 %v1344
        %v2014 = vunpack.c.l.b16 %v1345
        %v2015 = vunpack.c.h.b16 %v1345
        %v2016 = vunpack.c.l.b16 %v1346
        %v2017 = vunpack.c.h.b16 %v1346
        %v2018 = vunpack.c.l.b16 %v1347
        %v2019 = vunpack.c.h.b16 %v1347
        %v2020 = vunpack.c.l.b16 %v1348
        %v2021 = vunpack.c.h.b16 %v1348
        %v2022 = vunpack.c.l.b16 %v1349
        %v2023 = vunpack.c.h.b16 %v1349
        %v2024 = vunpack.c.l.b16 %v1350
        %v2025 = vunpack.c.h.b16 %v1350
        %v2026 = vunpack.c.l.b16 %v1351
        %v2027 = vunpack.c.h.b16 %v1351
        %v2028 = vunpack.c.l.b16 %v1352
        %v2029 = vunpack.c.h.b16 %v1352
        %v2030 = vunpack.c.l.b16 %v1353
        %v2031 = vunpack.c.h.b16 %v1353
        %v2032 = vunpack.c.l.b16 %v1354
        %v2033 = vunpack.c.h.b16 %v1354
        %v2034 = vunpack.c.l.b16 %v1355
        %v2035 = vunpack.c.h.b16 %v1355
        %v2036 = vunpack.c.l.b16 %v1356
        %v2037 = vunpack.c.h.b16 %v1356
        %v2038 = vunpack.c.l.b16 %v1357
        %v2039 = vunpack.c.h.b16 %v1357
        %v2040 = vunpack.c.l.b16 %v1358
        %v2041 = vunpack.c.h.b16 %v1358
        %v2042 = vunpack.c.l.b16 %v1359
        %v2043 = vunpack.c.h.b16 %v1359
        %v2044 = vunpack.c.l.b16 %v1360
        %v2045 = vunpack.c.h.b16 %v1360
        %v2046 = vunpack.c.l.b16 %v1361
        %v2047 = vunpack.c.h.b16 %v1361
        %v2048 = vunpack.c.l.b16 %v1362
        %v2049 = vunpack.c.h.b16 %v1362
        %v2050 = vunpack.c.l.b16 %v1363
        %v2051 = vunpack.c.h.b16 %v1363
        %v2052 = vunpack.c.l.b16 %v1364
        %v2053 = vunpack.c.h.b16 %v1364
        %v2054 = vunpack.c.l.b16 %v1365
        %v2055 = vunpack.c.h.b16 %v1365
        %v2056 = vunpack.c.l.b16 %v1366
        %v2057 = vunpack.c.h.b16 %v1366
        %v2058 = vunpack.c.l.b16 %v1367
        %v2059 = vunpack.c.h.b16 %v1367
        %v2060 = vunpack.c.l.b16 %v1368
        %v2061 = vunpack.c.h.b16 %v1368
        %v2062 = vunpack.c.l.b16 %v1369
        %v2063 = vunpack.c.h.b16 %v1369
        %v2064 = vunpack.c.l.b16 %v1370
        %v2065 = vunpack.c.h.b16 %v1370
        %v2066 = vunpack.c.l.b16 %v1371
        %v2067 = vunpack.c.h.b16 %v1371
        %v2068 = vunpack.c.l.b16 %v1372
        %v2069 = vunpack.c.h.b16 %v1372
        %v2070 = vunpack.c.l.b16 %v1373
        %v2071 = vunpack.c.h.b16 %v1373
        %v2072 = vunpack.c.l.b16 %v1374
        %v2073 = vunpack.c.h.b16 %v1374
        %v2074 = vunpack.c.l.b16 %v1375
        %v2075 = vunpack.c.h.b16 %v1375
        %v2076 = vunpack.c.l.b16 %v1376
        %v2077 = vunpack.c.h.b16 %v1376
        %v2078 = vunpack.c.l.b16 %v1377
        %v2079 = vunpack.c.h.b16 %v1377
        %v2080 = vunpack.c.l.b16 %v1378
        %v2081 = vunpack.c.h.b16 %v1378
        %v2082 = vunpack.c.l.b16 %v1379
        %v2083 = vunpack.c.h.b16 %v1379
        %v2084 = vunpack.c.l.b16 %v1380
        %v2085 = vunpack.c.h.b16 %v1380
        %v2086 = vunpack.c.l.b16 %v1381
        %v2087 = vunpack.c.h.b16 %v1381
        %v2088 = vunpack.c.l.b16 %v1382
        %v2089 = vunpack.c.h.b16 %v1382
        %v2090 = vunpack.c.l.b16 %v1383
        %v2091 = vunpack.c.h.b16 %v1383
        %v2092 = vunpack.c.l.b16 %v1384
        %v2093 = vunpack.c.h.b16 %v1384
        %v2094 = vunpack.c.l.b16 %v1385
        %v2095 = vunpack.c.h.b16 %v1385
        %v2096 = vunpack.c.l.b16 %v1386
        %v2097 = vunpack.c.h.b16 %v1386
        %v2098 = vunpack.c.l.b16 %v1387
        %v2099 = vunpack.c.h.b16 %v1387
        %v2100 = vunpack.c.l.b16 %v1388
        %v2101 = vunpack.c.h.b16 %v1388
        %v2102 = vunpack.c.l.b16 %v1389
        %v2103 = vunpack.c.h.b16 %v1389
        %v2104 = vunpack.c.l.b16 %v1390
        %v2105 = vunpack.c.h.b16 %v1390
        %v2106 = vunpack.c.l.b16 %v1391
        %v2107 = vunpack.c.h.b16 %v1391
        %v2108 = vunpack.c.l.b16 %v1392
        %v2109 = vunpack.c.h.b16 %v1392
        %v2110 = vunpack.c.l.b16 %v1393
        %v2111 = vunpack.c.h.b16 %v1393
        %v2112 = vunpack.c.l.b16 %v1394
        %v2113 = vunpack.c.h.b16 %v1394
        %v2114 = vunpack.c.l.b16 %v1395
        %v2115 = vunpack.c.h.b16 %v1395
        %v2116 = vunpack.c.l.b16 %v1396
        %v2117 = vunpack.c.h.b16 %v1396
        %v2118 = vunpack.c.l.b16 %v1397
        %v2119 = vunpack.c.h.b16 %v1397
        %v2120 = vunpack.c.l.b16 %v1398
        %v2121 = vunpack.c.h.b16 %v1398
        %v2122 = vunpack.c.l.b16 %v1399
        %v2123 = vunpack.c.h.b16 %v1399
        %v2124 = vunpack.c.l.b16 %v1400
        %v2125 = vunpack.c.h.b16 %v1400
        %v2126 = vunpack.c.l.b16 %v1401
        %v2127 = vunpack.c.h.b16 %v1401
        %v2128 = vunpack.c.l.b16 %v1402
        %v2129 = vunpack.c.h.b16 %v1402
        %v2130 = vunpack.c.l.b16 %v1403
        %v2131 = vunpack.c.h.b16 %v1403
        %v2132 = vunpack.c.l.b16 %v1404
        %v2133 = vunpack.c.h.b16 %v1404
        %v2134 = vunpack.c.l.b16 %v1405
        %v2135 = vunpack.c.h.b16 %v1405
        %v2136 = vunpack.c.l.b16 %v1406
        %v2137 = vunpack.c.h.b16 %v1406
        %v2138 = vunpack.c.l.b16 %v1407
        %v2139 = vunpack.c.h.b16 %v1407
        %v2140 = vunpack.c.l.b16 %v1408
        %v2141 = vunpack.c.h.b16 %v1408
        %v2142 = vunpack.c.l.b16 %v1409
        %v2143 = vunpack.c.h.b16 %v1409
        %v2144 = vunpack.c.l.b16 %v1410
        %v2145 = vunpack.c.h.b16 %v1410
        %v2146 = vunpack.c.l.b16 %v1411
        %v2147 = vunpack.c.h.b16 %v1411
        %v2148 = vunpack.c.l.b16 %v1412
        %v2149 = vunpack.c.h.b16 %v1412
        %v2150 = vunpack.c.l.b16 %v1413
        %v2151 = vunpack.c.h.b16 %v1413
        %v2152 = vunpack.c.l.b16 %v1414
        %v2153 = vunpack.c.h.b16 %v1414
        %v2154 = vunpack.c.l.b16 %v1415
        %v2155 = vunpack.c.h.b16 %v1415
        %v2156 = vunpack.c.l.b16 %v1416
        %v2157 = vunpack.c.h.b16 %v1416
        %v2158 = vunpack.c.l.b16 %v1417
        %v2159 = vunpack.c.h.b16 %v1417
        %v2160 = vunpack.c.l.b16 %v1418
        %v2161 = vunpack.c.h.b16 %v1418
        %v2162 = vunpack.c.l.b16 %v1419
        %v2163 = vunpack.c.h.b16 %v1419
        %v2164 = vunpack.c.l.b16 %v1420
        %v2165 = vunpack.c.h.b16 %v1420
        %v2166 = vunpack.c.l.b16 %v1421
        %v2167 = vunpack.c.h.b16 %v1421
        %v2168 = vunpack.c.l.b16 %v1422
        %v2169 = vunpack.c.h.b16 %v1422
        %v2170 = vunpack.c.l.b16 %v1423
        %v2171 = vunpack.c.h.b16 %v1423
        %v2172 = vunpack.c.l.b16 %v1424
        %v2173 = vunpack.c.h.b16 %v1424
        %v2174 = vunpack.c.l.b16 %v1425
        %v2175 = vunpack.c.h.b16 %v1425
        %v2176 = vunpack.c.l.b16 %v1426
        %v2177 = vunpack.c.h.b16 %v1426
        %v2178 = vunpack.c.l.b16 %v1427
        %v2179 = vunpack.c.h.b16 %v1427
        %v2180 = vunpack.c.l.b16 %v1428
        %v2181 = vunpack.c.h.b16 %v1428
        %v2182 = vunpack.c.l.b16 %v1429
        %v2183 = vunpack.c.h.b16 %v1429
        %v2184 = vunpack.c.l.b16 %v1430
        %v2185 = vunpack.c.h.b16 %v1430
        %v2186 = vunpack.c.l.b16 %v1431
        %v2187 = vunpack.c.h.b16 %v1431
        %v2188 = vunpack.c.l.b16 %v1432
        %v2189 = vunpack.c.h.b16 %v1432
        %v2190 = vunpack.c.l.b16 %v1433
        %v2191 = vunpack.c.h.b16 %v1433
        %v2192 = vunpack.c.l.b16 %v1434
        %v2193 = vunpack.c.h.b16 %v1434
        %v2194 = vunpack.c.l.b16 %v1435
        %v2195 = vunpack.c.h.b16 %v1435
        %v2196 = vunpack.c.l.b16 %v1436
        %v2197 = vunpack.c.h.b16 %v1436
        %v2198 = vunpack.c.l.b16 %v1437
        %v2199 = vunpack.c.h.b16 %v1437
        %v2200 = vunpack.c.l.b16 %v1438
        %v2201 = vunpack.c.h.b16 %v1438
        %v2202 = vunpack.c.l.b16 %v1439
        %v2203 = vunpack.c.h.b16 %v1439
        %v2204 = vunpack.c.l.b16 %v1440
        %v2205 = vunpack.c.h.b16 %v1440
        %v2206 = vunpack.c.l.b16 %v1441
        %v2207 = vunpack.c.h.b16 %v1441
        %v2208 = vunpack.c.l.b16 %v1442
        %v2209 = vunpack.c.h.b16 %v1442
        %v2210 = vunpack.c.l.b16 %v1443
        %v2211 = vunpack.c.h.b16 %v1443
        %v2212 = vpack.c.b16 %v1708, %v1700
        %v2213 = vpack.c.b16 %v1709, %v1701
        %v2214 = vpack.c.b16 %v1710, %v1702
        %v2215 = vpack.c.b16 %v1711, %v1703
        %v2216 = vpack.c.b16 %v1712, %v1704
        %v2217 = vpack.c.b16 %v1713, %v1705
        %v2218 = vpack.c.b16 %v1714, %v1706
        %v2219 = vpack.c.b16 %v1715, %v1707
        %v2220 = vpack.c.b16 %v1724, %v1716
        %v2221 = vpack.c.b16 %v1725, %v1717
        %v2222 = vpack.c.b16 %v1726, %v1718
        %v2223 = vpack.c.b16 %v1727, %v1719
        %v2224 = vpack.c.b16 %v1728, %v1720
        %v2225 = vpack.c.b16 %v1729, %v1721
        %v2226 = vpack.c.b16 %v1730, %v1722
        %v2227 = vpack.c.b16 %v1731, %v1723
        %v2228 = vpack.c.b16 %v1740, %v1732
        %v2229 = vpack.c.b16 %v1741, %v1733
        %v2230 = vpack.c.b16 %v1742, %v1734
        %v2231 = vpack.c.b16 %v1743, %v1735
        %v2232 = vpack.c.b16 %v1744, %v1736
        %v2233 = vpack.c.b16 %v1745, %v1737
        %v2234 = vpack.c.b16 %v1746, %v1738
        %v2235 = vpack.c.b16 %v1747, %v1739
        %v2236 = vpack.c.b16 %v1756, %v1748
        %v2237 = vpack.c.b16 %v1757, %v1749
        %v2238 = vpack.c.b16 %v1758, %v1750
        %v2239 = vpack.c.b16 %v1759, %v1751
        %v2240 = vpack.c.b16 %v1760, %v1752
        %v2241 = vpack.c.b16 %v1761, %v1753
        %v2242 = vpack.c.b16 %v1762, %v1754
        %v2243 = vpack.c.b16 %v1763, %v1755
        %v2244 = vpack.c.b16 %v1772, %v1764
        %v2245 = vpack.c.b16 %v1773, %v1765
        %v2246 = vpack.c.b16 %v1774, %v1766
        %v2247 = vpack.c.b16 %v1775, %v1767
        %v2248 = vpack.c.b16 %v1776, %v1768
        %v2249 = vpack.c.b16 %v1777, %v1769
        %v2250 = vpack.c.b16 %v1778, %v1770
        %v2251 = vpack.c.b16 %v1779, %v1771
        %v2252 = vpack.c.b16 %v1788, %v1780
        %v2253 = vpack.c.b16 %v1789, %v1781
        %v2254 = vpack.c.b16 %v1790, %v1782
        %v2255 = vpack.c.b16 %v1791, %v1783
        %v2256 = vpack.c.b16 %v1792, %v1784
        %v2257 = vpack.c.b16 %v1793, %v1785
        %v2258 = vpack.c.b16 %v1794, %v1786
        %v2259 = vpack.c.b16 %v1795, %v1787
        %v2260 = vpack.c.b16 %v1804, %v1796
        %v2261 = vpack.c.b16 %v1805, %v1797
        %v2262 = vpack.c.b16 %v1806, %v1798
        %v2263 = vpack.c.b16 %v1807, %v1799
        %v2264 = vpack.c.b16 %v1808, %v1800
        %v2265 = vpack.c.b16 %v1809, %v1801
        %v2266 = vpack.c.b16 %v1810, %v1802
        %v2267 = vpack.c.b16 %v1811, %v1803
        %v2268 = vpack.c.b16 %v1820, %v1812
        %v2269 = vpack.c.b16 %v1821, %v1813
        %v2270 = vpack.c.b16 %v1822, %v1814
        %v2271 = vpack.c.b16 %v1823, %v1815
        %v2272 = vpack.c.b16 %v1824, %v1816
        %v2273 = vpack.c.b16 %v1825, %v1817
        %v2274 = vpack.c.b16 %v1826, %v1818
        %v2275 = vpack.c.b16 %v1827, %v1819
        %v2276 = vpack.c.b16 %v1836, %v1828
        %v2277 = vpack.c.b16 %v1837, %v1829
        %v2278 = vpack.c.b16 %v1838, %v1830
        %v2279 = vpack.c.b16 %v1839, %v1831
        %v2280 = vpack.c.b16 %v1840, %v1832
        %v2281 = vpack.c.b16 %v1841, %v1833
        %v2282 = vpack.c.b16 %v1842, %v1834
        %v2283 = vpack.c.b16 %v1843, %v1835
        %v2284 = vpack.c.b16 %v1852, %v1844
        %v2285 = vpack.c.b16 %v1853, %v1845
        %v2286 = vpack.c.b16 %v1854, %v1846
        %v2287 = vpack.c.b16 %v1855, %v1847
        %v2288 = vpack.c.b16 %v1856, %v1848
        %v2289 = vpack.c.b16 %v1857, %v1849
        %v2290 = vpack.c.b16 %v1858, %v1850
        %v2291 = vpack.c.b16 %v1859, %v1851
        %v2292 = vpack.c.b16 %v1868, %v1860
        %v2293 = vpack.c.b16 %v1869, %v1861
        %v2294 = vpack.c.b16 %v1870, %v1862
        %v2295 = vpack.c.b16 %v1871, %v1863
        %v2296 = vpack.c.b16 %v1872, %v1864
        %v2297 = vpack.c.b16 %v1873, %v1865
        %v2298 = vpack.c.b16 %v1874, %v1866
        %v2299 = vpack.c.b16 %v1875, %v1867
        %v2300 = vpack.c.b16 %v1884, %v1876
        %v2301 = vpack.c.b16 %v1885, %v1877
        %v2302 = vpack.c.b16 %v1886, %v1878
        %v2303 = vpack.c.b16 %v1887, %v1879
        %v2304 = vpack.c.b16 %v1888, %v1880
        %v2305 = vpack.c.b16 %v1889, %v1881
        %v2306 = vpack.c.b16 %v1890, %v1882
        %v2307 = vpack.c.b16 %v1891, %v1883
        %v2308 = vpack.c.b16 %v1900, %v1892
        %v2309 = vpack.c.b16 %v1901, %v1893
        %v2310 = vpack.c.b16 %v1902, %v1894
        %v2311 = vpack.c.b16 %v1903, %v1895
        %v2312 = vpack.c.b16 %v1904, %v1896
        %v2313 = vpack.c.b16 %v1905, %v1897
        %v2314 = vpack.c.b16 %v1906, %v1898
        %v2315 = vpack.c.b16 %v1907, %v1899
        %v2316 = vpack.c.b16 %v1916, %v1908
        %v2317 = vpack.c.b16 %v1917, %v1909
        %v2318 = vpack.c.b16 %v1918, %v1910
        %v2319 = vpack.c.b16 %v1919, %v1911
        %v2320 = vpack.c.b16 %v1920, %v1912
        %v2321 = vpack.c.b16 %v1921, %v1913
        %v2322 = vpack.c.b16 %v1922, %v1914
        %v2323 = vpack.c.b16 %v1923, %v1915
        %v2324 = vpack.c.b16 %v1932, %v1924
        %v2325 = vpack.c.b16 %v1933, %v1925
        %v2326 = vpack.c.b16 %v1934, %v1926
        %v2327 = vpack.c.b16 %v1935, %v1927
        %v2328 = vpack.c.b16 %v1936, %v1928
        %v2329 = vpack.c.b16 %v1937, %v1929
        %v2330 = vpack.c.b16 %v1938, %v1930
        %v2331 = vpack.c.b16 %v1939, %v1931
        %v2332 = vpack.c.b16 %v1948, %v1940
        %v2333 = vpack.c.b16 %v1949, %v1941
        %v2334 = vpack.c.b16 %v1950, %v1942
        %v2335 = vpack.c.b16 %v1951, %v1943
        %v2336 = vpack.c.b16 %v1952, %v1944
        %v2337 = vpack.c.b16 %v1953, %v1945
        %v2338 = vpack.c.b16 %v1954, %v1946
        %v2339 = vpack.c.b16 %v1955, %v1947
        %v2340 = vpack.c.b16 %v1964, %v1956
        %v2341 = vpack.c.b16 %v1965, %v1957
        %v2342 = vpack.c.b16 %v1966, %v1958
        %v2343 = vpack.c.b16 %v1967, %v1959
        %v2344 = vpack.c.b16 %v1968, %v1960
        %v2345 = vpack.c.b16 %v1969, %v1961
        %v2346 = vpack.c.b16 %v1970, %v1962
        %v2347 = vpack.c.b16 %v1971, %v1963
        %v2348 = vpack.c.b16 %v1980, %v1972
        %v2349 = vpack.c.b16 %v1981, %v1973
        %v2350 = vpack.c.b16 %v1982, %v1974
        %v2351 = vpack.c.b16 %v1983, %v1975
        %v2352 = vpack.c.b16 %v1984, %v1976
        %v2353 = vpack.c.b16 %v1985, %v1977
        %v2354 = vpack.c.b16 %v1986, %v1978
        %v2355 = vpack.c.b16 %v1987, %v1979
        %v2356 = vpack.c.b16 %v1996, %v1988
        %v2357 = vpack.c.b16 %v1997, %v1989
        %v2358 = vpack.c.b16 %v1998, %v1990
        %v2359 = vpack.c.b16 %v1999, %v1991
        %v2360 = vpack.c.b16 %v2000, %v1992
        %v2361 = vpack.c.b16 %v2001, %v1993
        %v2362 = vpack.c.b16 %v2002, %v1994
        %v2363 = vpack.c.b16 %v2003, %v1995
        %v2364 = vpack.c.b16 %v2012, %v2004
        %v2365 = vpack.c.b16 %v2013, %v2005
        %v2366 = vpack.c.b16 %v2014, %v2006
        %v2367 = vpack.c.b16 %v2015, %v2007
        %v2368 = vpack.c.b16 %v2016, %v2008
        %v2369 = vpack.c.b16 %v2017, %v2009
        %v2370 = vpack.c.b16 %v2018, %v2010
        %v2371 = vpack.c.b16 %v2019, %v2011
        %v2372 = vpack.c.b16 %v2028, %v2020
        %v2373 = vpack.c.b16 %v2029, %v2021
        %v2374 = vpack.c.b16 %v2030, %v2022
        %v2375 = vpack.c.b16 %v2031, %v2023
        %v2376 = vpack.c.b16 %v2032, %v2024
        %v2377 = vpack.c.b16 %v2033, %v2025
        %v2378 = vpack.c.b16 %v2034, %v2026
        %v2379 = vpack.c.b16 %v2035, %v2027
        %v2380 = vpack.c.b16 %v2044, %v2036
        %v2381 = vpack.c.b16 %v2045, %v2037
        %v2382 = vpack.c.b16 %v2046, %v2038
        %v2383 = vpack.c.b16 %v2047, %v2039
        %v2384 = vpack.c.b16 %v2048, %v2040
        %v2385 = vpack.c.b16 %v2049, %v2041
        %v2386 = vpack.c.b16 %v2050, %v2042
        %v2387 = vpack.c.b16 %v2051, %v2043
        %v2388 = vpack.c.b16 %v2060, %v2052
        %v2389 = vpack.c.b16 %v2061, %v2053
        %v2390 = vpack.c.b16 %v2062, %v2054
        %v2391 = vpack.c.b16 %v2063, %v2055
        %v2392 = vpack.c.b16 %v2064, %v2056
        %v2393 = vpack.c.b16 %v2065, %v2057
        %v2394 = vpack.c.b16 %v2066, %v2058
        %v2395 = vpack.c.b16 %v2067, %v2059
        %v2396 = vpack.c.b16 %v2076, %v2068
        %v2397 = vpack.c.b16 %v2077, %v2069
        %v2398 = vpack.c.b16 %v2078, %v2070
        %v2399 = vpack.c.b16 %v2079, %v2071
        %v2400 = vpack.c.b16 %v2080, %v2072
        %v2401 = vpack.c.b16 %v2081, %v2073
        %v2402 = vpack.c.b16 %v2082, %v2074
        %v2403 = vpack.c.b16 %v2083, %v2075
        %v2404 = vpack.c.b16 %v2092, %v2084
        %v2405 = vpack.c.b16 %v2093, %v2085
        %v2406 = vpack.c.b16 %v2094, %v2086
        %v2407 = vpack.c.b16 %v2095, %v2087
        %v2408 = vpack.c.b16 %v2096, %v2088
        %v2409 = vpack.c.b16 %v2097, %v2089
        %v2410 = vpack.c.b16 %v2098, %v2090
        %v2411 = vpack.c.b16 %v2099, %v2091
        %v2412 = vpack.c.b16 %v2108, %v2100
        %v2413 = vpack.c.b16 %v2109, %v2101
        %v2414 = vpack.c.b16 %v2110, %v2102
        %v2415 = vpack.c.b16 %v2111, %v2103
        %v2416 = vpack.c.b16 %v2112, %v2104
        %v2417 = vpack.c.b16 %v2113, %v2105
        %v2418 = vpack.c.b16 %v2114, %v2106
        %v2419 = vpack.c.b16 %v2115, %v2107
        %v2420 = vpack.c.b16 %v2124, %v2116
        %v2421 = vpack.c.b16 %v2125, %v2117
        %v2422 = vpack.c.b16 %v2126, %v2118
        %v2423 = vpack.c.b16 %v2127, %v2119
        %v2424 = vpack.c.b16 %v2128, %v2120
        %v2425 = vpack.c.b16 %v2129, %v2121
        %v2426 = vpack.c.b16 %v2130, %v2122
        %v2427 = vpack.c.b16 %v2131, %v2123
        %v2428 = vpack.c.b16 %v2140, %v2132
        %v2429 = vpack.c.b16 %v2141, %v2133
        %v2430 = vpack.c.b16 %v2142, %v2134
        %v2431 = vpack.c.b16 %v2143, %v2135
        %v2432 = vpack.c.b16 %v2144, %v2136
        %v2433 = vpack.c.b16 %v2145, %v2137
        %v2434 = vpack.c.b16 %v2146, %v2138
        %v2435 = vpack.c.b16 %v2147, %v2139
        %v2436 = vpack.c.b16 %v2156, %v2148
        %v2437 = vpack.c.b16 %v2157, %v2149
        %v2438 = vpack.c.b16 %v2158, %v2150
        %v2439 = vpack.c.b16 %v2159, %v2151
        %v2440 = vpack.c.b16 %v2160, %v2152
        %v2441 = vpack.c.b16 %v2161, %v2153
        %v2442 = vpack.c.b16 %v2162, %v2154
        %v2443 = vpack.c.b16 %v2163, %v2155
        %v2444 = vpack.c.b16 %v2172, %v2164
        %v2445 = vpack.c.b16 %v2173, %v2165
        %v2446 = vpack.c.b16 %v2174, %v2166
        %v2447 = vpack.c.b16 %v2175, %v2167
        %v2448 = vpack.c.b16 %v2176, %v2168
        %v2449 = vpack.c.b16 %v2177, %v2169
        %v2450 = vpack.c.b16 %v2178, %v2170
        %v2451 = vpack.c.b16 %v2179, %v2171
        %v2452 = vpack.c.b16 %v2188, %v2180
        %v2453 = vpack.c.b16 %v2189, %v2181
        %v2454 = vpack.c.b16 %v2190, %v2182
        %v2455 = vpack.c.b16 %v2191, %v2183
        %v2456 = vpack.c.b16 %v2192, %v2184
        %v2457 = vpack.c.b16 %v2193, %v2185
        %v2458 = vpack.c.b16 %v2194, %v2186
        %v2459 = vpack.c.b16 %v2195, %v2187
        %v2460 = vpack.c.b16 %v2204, %v2196
        %v2461 = vpack.c.b16 %v2205, %v2197
        %v2462 = vpack.c.b16 %v2206, %v2198
        %v2463 = vpack.c.b16 %v2207, %v2199
        %v2464 = vpack.c.b16 %v2208, %v2200
        %v2465 = vpack.c.b16 %v2209, %v2201
        %v2466 = vpack.c.b16 %v2210, %v2202
        %v2467 = vpack.c.b16 %v2211, %v2203
        %2724 = vmatprep.subr.bf16.mxu0 %v2213
        %2725 = vmatpush1.bf16.msra.mxu0 %v2212
        %2726 = vmatprep.subr.bf16.mxu0 %v2221
        %2727 = vmatpush1.bf16.msra.mxu0 %v2220
        %2728 = vmatprep.subr.bf16.mxu0 %v2229
        %2729 = vmatpush1.bf16.msra.mxu0 %v2228
        %2730 = vmatprep.subr.bf16.mxu0 %v2237
        %2731 = vmatpush1.bf16.msra.mxu0 %v2236
        %2732 = vmatprep.subr.bf16.mxu0 %v2245
        %2733 = vmatpush1.bf16.msra.mxu0 %v2244
        %2734 = vmatprep.subr.bf16.mxu0 %v2253
        %2735 = vmatpush1.bf16.msra.mxu0 %v2252
        %2736 = vmatprep.subr.bf16.mxu0 %v2261
        %2737 = vmatpush1.bf16.msra.mxu0 %v2260
        %2738 = vmatprep.subr.bf16.mxu0 %v2269
        %2739 = vmatpush1.bf16.msra.mxu0 %v2268
        %2740 = vmatprep.subr.bf16.mxu0 %v2277
        %2741 = vmatpush1.bf16.msra.mxu0 %v2276
        %2742 = vmatprep.subr.bf16.mxu0 %v2285
        %2743 = vmatpush1.bf16.msra.mxu0 %v2284
        %2744 = vmatprep.subr.bf16.mxu0 %v2293
        %2745 = vmatpush1.bf16.msra.mxu0 %v2292
        %2746 = vmatprep.subr.bf16.mxu0 %v2301
        %2747 = vmatpush1.bf16.msra.mxu0 %v2300
        %2748 = vmatprep.subr.bf16.mxu0 %v2309
        %2749 = vmatpush1.bf16.msra.mxu0 %v2308
        %2750 = vmatprep.subr.bf16.mxu0 %v2317
        %2751 = vmatpush1.bf16.msra.mxu0 %v2316
        %2752 = vmatprep.subr.bf16.mxu0 %v2325
        %2753 = vmatpush1.bf16.msra.mxu0 %v2324
        %2754 = vmatprep.subr.bf16.mxu0 %v2333
        %2755 = vmatpush1.bf16.msra.mxu0 %v2332
        %2756 = vmatprep.mubr.bf16.mxu0 %v1185
        %2757 = vmatmul.mubr.bf16.gmra.mrb[0].mxu0 %v1184
        %v2758 = vpop.f32.mrb[0].mxu0
        %v2759 = vadd.f32 0.0, %v2758
        %v2760 = vpop.f32.mrb[0].mxu0
        %v2761 = vadd.f32 0.0, %v2760
        %v2762 = vpop.f32.mrb[0].mxu0
        %v2763 = vadd.f32 0.0, %v2762
        %v2764 = vpop.f32.mrb[0].mxu0
        %v2765 = vadd.f32 0.0, %v2764
        %2766 = vdwg.mxu0
        %2767 = vmatprep.subr.bf16.mxu0 %v2341
        %2768 = vmatpush1.bf16.msra.mxu0 %v2340
        %2769 = vmatprep.subr.bf16.mxu0 %v2349
        %2770 = vmatpush1.bf16.msra.mxu0 %v2348
        %2771 = vmatprep.subr.bf16.mxu0 %v2357
        %2772 = vmatpush1.bf16.msra.mxu0 %v2356
        %2773 = vmatprep.subr.bf16.mxu0 %v2365
        %2774 = vmatpush1.bf16.msra.mxu0 %v2364
        %2775 = vmatprep.subr.bf16.mxu0 %v2373
        %2776 = vmatpush1.bf16.msra.mxu0 %v2372
        %2777 = vmatprep.subr.bf16.mxu0 %v2381
        %2778 = vmatpush1.bf16.msra.mxu0 %v2380
        %2779 = vmatprep.subr.bf16.mxu0 %v2389
        %2780 = vmatpush1.bf16.msra.mxu0 %v2388
        %2781 = vmatprep.subr.bf16.mxu0 %v2397
        %2782 = vmatpush1.bf16.msra.mxu0 %v2396
        %2783 = vmatprep.subr.bf16.mxu0 %v2405
        %2784 = vmatpush1.bf16.msra.mxu0 %v2404
        %2785 = vmatprep.subr.bf16.mxu0 %v2413
        %2786 = vmatpush1.bf16.msra.mxu0 %v2412
        %2787 = vmatprep.subr.bf16.mxu0 %v2421
        %2788 = vmatpush1.bf16.msra.mxu0 %v2420
        %2789 = vmatprep.subr.bf16.mxu0 %v2429
        %2790 = vmatpush1.bf16.msra.mxu0 %v2428
        %2791 = vmatprep.subr.bf16.mxu0 %v2437
        %2792 = vmatpush1.bf16.msra.mxu0 %v2436
        %2793 = vmatprep.subr.bf16.mxu0 %v2445
        %2794 = vmatpush1.bf16.msra.mxu0 %v2444
        %2795 = vmatprep.subr.bf16.mxu0 %v2453
        %2796 = vmatpush1.bf16.msra.mxu0 %v2452
        %2797 = vmatprep.subr.bf16.mxu0 %v2461
        %2798 = vmatpush1.bf16.msra.mxu0 %v2460
        %2799 = vmatprep.mubr.bf16.mxu0 %v1187
        %2800 = vmatmul.mubr.bf16.gmra.mrb[0].mxu0 %v1186
        %v2801 = vpop.f32.mrb[0].mxu0
        %v2802 = vadd.f32 %v2759, %v2801
        %v2803 = vpop.f32.mrb[0].mxu0
        %v2804 = vadd.f32 %v2761, %v2803
        %v2805 = vpop.f32.mrb[0].mxu0
        %v2806 = vadd.f32 %v2763, %v2805
        %v2807 = vpop.f32.mrb[0].mxu0
        %v2808 = vadd.f32 %v2765, %v2807
        %2809 = vdwg.mxu0
        %2810 = vmatprep.subr.bf16.mxu0 %v2215
        %2811 = vmatpush1.bf16.msra.mxu0 %v2214
        %2812 = vmatprep.subr.bf16.mxu0 %v2223
        %2813 = vmatpush1.bf16.msra.mxu0 %v2222
        %2814 = vmatprep.subr.bf16.mxu0 %v2231
        %2815 = vmatpush1.bf16.msra.mxu0 %v2230
        %2816 = vmatprep.subr.bf16.mxu0 %v2239
        %2817 = vmatpush1.bf16.msra.mxu0 %v2238
        %2818 = vmatprep.subr.bf16.mxu0 %v2247
        %2819 = vmatpush1.bf16.msra.mxu0 %v2246
        %2820 = vmatprep.subr.bf16.mxu0 %v2255
        %2821 = vmatpush1.bf16.msra.mxu0 %v2254
        %2822 = vmatprep.subr.bf16.mxu0 %v2263
        %2823 = vmatpush1.bf16.msra.mxu0 %v2262
        %2824 = vmatprep.subr.bf16.mxu0 %v2271
        %2825 = vmatpush1.bf16.msra.mxu0 %v2270
        %2826 = vmatprep.subr.bf16.mxu0 %v2279
        %2827 = vmatpush1.bf16.msra.mxu0 %v2278
        %2828 = vmatprep.subr.bf16.mxu0 %v2287
        %2829 = vmatpush1.bf16.msra.mxu0 %v2286
        %2830 = vmatprep.subr.bf16.mxu0 %v2295
        %2831 = vmatpush1.bf16.msra.mxu0 %v2294
        %2832 = vmatprep.subr.bf16.mxu0 %v2303
        %2833 = vmatpush1.bf16.msra.mxu0 %v2302
        %2834 = vmatprep.subr.bf16.mxu0 %v2311
        %2835 = vmatpush1.bf16.msra.mxu0 %v2310
        %2836 = vmatprep.subr.bf16.mxu0 %v2319
        %2837 = vmatpush1.bf16.msra.mxu0 %v2318
        %2838 = vmatprep.subr.bf16.mxu0 %v2327
        %2839 = vmatpush1.bf16.msra.mxu0 %v2326
        %2840 = vmatprep.subr.bf16.mxu0 %v2335
        %2841 = vmatpush1.bf16.msra.mxu0 %v2334
        %2842 = vmatprep.mubr.bf16.mxu0 %v1185
        %2843 = vmatmul.mubr.bf16.gmra.mrb[0].mxu0 %v1184
        %v2844 = vpop.f32.mrb[0].mxu0
        %v2845 = vadd.f32 0.0, %v2844
        %v2846 = vpop.f32.mrb[0].mxu0
        %v2847 = vadd.f32 0.0, %v2846
        %v2848 = vpop.f32.mrb[0].mxu0
        %v2849 = vadd.f32 0.0, %v2848
        %v2850 = vpop.f32.mrb[0].mxu0
        %v2851 = vadd.f32 0.0, %v2850
        %2852 = vdwg.mxu0
        %2853 = vmatprep.subr.bf16.mxu0 %v2343
        %2854 = vmatpush1.bf16.msra.mxu0 %v2342
        %2855 = vmatprep.subr.bf16.mxu0 %v2351
        %2856 = vmatpush1.bf16.msra.mxu0 %v2350
        %2857 = vmatprep.subr.bf16.mxu0 %v2359
        %2858 = vmatpush1.bf16.msra.mxu0 %v2358
        %2859 = vmatprep.subr.bf16.mxu0 %v2367
        %2860 = vmatpush1.bf16.msra.mxu0 %v2366
        %2861 = vmatprep.subr.bf16.mxu0 %v2375
        %2862 = vmatpush1.bf16.msra.mxu0 %v2374
        %2863 = vmatprep.subr.bf16.mxu0 %v2383
        %2864 = vmatpush1.bf16.msra.mxu0 %v2382
        %2865 = vmatprep.subr.bf16.mxu0 %v2391
        %2866 = vmatpush1.bf16.msra.mxu0 %v2390
        %2867 = vmatprep.subr.bf16.mxu0 %v2399
        %2868 = vmatpush1.bf16.msra.mxu0 %v2398
        %2869 = vmatprep.subr.bf16.mxu0 %v2407
        %2870 = vmatpush1.bf16.msra.mxu0 %v2406
        %2871 = vmatprep.subr.bf16.mxu0 %v2415
        %2872 = vmatpush1.bf16.msra.mxu0 %v2414
        %2873 = vmatprep.subr.bf16.mxu0 %v2423
        %2874 = vmatpush1.bf16.msra.mxu0 %v2422
        %2875 = vmatprep.subr.bf16.mxu0 %v2431
        %2876 = vmatpush1.bf16.msra.mxu0 %v2430
        %2877 = vmatprep.subr.bf16.mxu0 %v2439
        %2878 = vmatpush1.bf16.msra.mxu0 %v2438
        %2879 = vmatprep.subr.bf16.mxu0 %v2447
        %2880 = vmatpush1.bf16.msra.mxu0 %v2446
        %2881 = vmatprep.subr.bf16.mxu0 %v2455
        %2882 = vmatpush1.bf16.msra.mxu0 %v2454
        %2883 = vmatprep.subr.bf16.mxu0 %v2463
        %2884 = vmatpush1.bf16.msra.mxu0 %v2462
        %2885 = vmatprep.mubr.bf16.mxu0 %v1187
        %2886 = vmatmul.mubr.bf16.gmra.mrb[0].mxu0 %v1186
        %v2887 = vpop.f32.mrb[0].mxu0
        %v2888 = vadd.f32 %v2845, %v2887
        %v2889 = vpop.f32.mrb[0].mxu0
        %v2890 = vadd.f32 %v2847, %v2889
        %v2891 = vpop.f32.mrb[0].mxu0
        %v2892 = vadd.f32 %v2849, %v2891
        %v2893 = vpop.f32.mrb[0].mxu0
        %v2894 = vadd.f32 %v2851, %v2893
        %2895 = vdwg.mxu0
        %2896 = vmatprep.subr.bf16.mxu0 %v2217
        %2897 = vmatpush1.bf16.msra.mxu0 %v2216
        %2898 = vmatprep.subr.bf16.mxu0 %v2225
        %2899 = vmatpush1.bf16.msra.mxu0 %v2224
        %2900 = vmatprep.subr.bf16.mxu0 %v2233
        %2901 = vmatpush1.bf16.msra.mxu0 %v2232
        %2902 = vmatprep.subr.bf16.mxu0 %v2241
        %2903 = vmatpush1.bf16.msra.mxu0 %v2240
        %2904 = vmatprep.subr.bf16.mxu0 %v2249
        %2905 = vmatpush1.bf16.msra.mxu0 %v2248
        %2906 = vmatprep.subr.bf16.mxu0 %v2257
        %2907 = vmatpush1.bf16.msra.mxu0 %v2256
        %2908 = vmatprep.subr.bf16.mxu0 %v2265
        %2909 = vmatpush1.bf16.msra.mxu0 %v2264
        %2910 = vmatprep.subr.bf16.mxu0 %v2273
        %2911 = vmatpush1.bf16.msra.mxu0 %v2272
        %2912 = vmatprep.subr.bf16.mxu0 %v2281
        %2913 = vmatpush1.bf16.msra.mxu0 %v2280
        %2914 = vmatprep.subr.bf16.mxu0 %v2289
        %2915 = vmatpush1.bf16.msra.mxu0 %v2288
        %2916 = vmatprep.subr.bf16.mxu0 %v2297
        %2917 = vmatpush1.bf16.msra.mxu0 %v2296
        %2918 = vmatprep.subr.bf16.mxu0 %v2305
        %2919 = vmatpush1.bf16.msra.mxu0 %v2304
        %2920 = vmatprep.subr.bf16.mxu0 %v2313
        %2921 = vmatpush1.bf16.msra.mxu0 %v2312
        %2922 = vmatprep.subr.bf16.mxu0 %v2321
        %2923 = vmatpush1.bf16.msra.mxu0 %v2320
        %2924 = vmatprep.subr.bf16.mxu0 %v2329
        %2925 = vmatpush1.bf16.msra.mxu0 %v2328
        %2926 = vmatprep.subr.bf16.mxu0 %v2337
        %2927 = vmatpush1.bf16.msra.mxu0 %v2336
        %2928 = vmatprep.mubr.bf16.mxu0 %v1185
        %2929 = vmatmul.mubr.bf16.gmra.mrb[0].mxu0 %v1184
        %v2930 = vpop.f32.mrb[0].mxu0
        %v2931 = vadd.f32 0.0, %v2930
        %v2932 = vpop.f32.mrb[0].mxu0
        %v2933 = vadd.f32 0.0, %v2932
        %v2934 = vpop.f32.mrb[0].mxu0
        %v2935 = vadd.f32 0.0, %v2934
        %v2936 = vpop.f32.mrb[0].mxu0
        %v2937 = vadd.f32 0.0, %v2936
        %2938 = vdwg.mxu0
        %2939 = vmatprep.subr.bf16.mxu0 %v2345
        %2940 = vmatpush1.bf16.msra.mxu0 %v2344
        %2941 = vmatprep.subr.bf16.mxu0 %v2353
        %2942 = vmatpush1.bf16.msra.mxu0 %v2352
        %2943 = vmatprep.subr.bf16.mxu0 %v2361
        %2944 = vmatpush1.bf16.msra.mxu0 %v2360
        %2945 = vmatprep.subr.bf16.mxu0 %v2369
        %2946 = vmatpush1.bf16.msra.mxu0 %v2368
        %2947 = vmatprep.subr.bf16.mxu0 %v2377
        %2948 = vmatpush1.bf16.msra.mxu0 %v2376
        %2949 = vmatprep.subr.bf16.mxu0 %v2385
        %2950 = vmatpush1.bf16.msra.mxu0 %v2384
        %2951 = vmatprep.subr.bf16.mxu0 %v2393
        %2952 = vmatpush1.bf16.msra.mxu0 %v2392
        %2953 = vmatprep.subr.bf16.mxu0 %v2401
        %2954 = vmatpush1.bf16.msra.mxu0 %v2400
        %2955 = vmatprep.subr.bf16.mxu0 %v2409
        %2956 = vmatpush1.bf16.msra.mxu0 %v2408
        %2957 = vmatprep.subr.bf16.mxu0 %v2417
        %2958 = vmatpush1.bf16.msra.mxu0 %v2416
        %2959 = vmatprep.subr.bf16.mxu0 %v2425
        %2960 = vmatpush1.bf16.msra.mxu0 %v2424
        %2961 = vmatprep.subr.bf16.mxu0 %v2433
        %2962 = vmatpush1.bf16.msra.mxu0 %v2432
        %2963 = vmatprep.subr.bf16.mxu0 %v2441
        %2964 = vmatpush1.bf16.msra.mxu0 %v2440
        %2965 = vmatprep.subr.bf16.mxu0 %v2449
        %2966 = vmatpush1.bf16.msra.mxu0 %v2448
        %2967 = vmatprep.subr.bf16.mxu0 %v2457
        %2968 = vmatpush1.bf16.msra.mxu0 %v2456
        %2969 = vmatprep.subr.bf16.mxu0 %v2465
        %2970 = vmatpush1.bf16.msra.mxu0 %v2464
        %2971 = vmatprep.mubr.bf16.mxu0 %v1187
        %2972 = vmatmul.mubr.bf16.gmra.mrb[0].mxu0 %v1186
        %v2973 = vpop.f32.mrb[0].mxu0
        %v2974 = vadd.f32 %v2931, %v2973
        %v2975 = vpop.f32.mrb[0].mxu0
        %v2976 = vadd.f32 %v2933, %v2975
        %v2977 = vpop.f32.mrb[0].mxu0
        %v2978 = vadd.f32 %v2935, %v2977
        %v2979 = vpop.f32.mrb[0].mxu0
        %v2980 = vadd.f32 %v2937, %v2979
        %2981 = vdwg.mxu0
        %2982 = vmatprep.subr.bf16.mxu0 %v2219
        %2983 = vmatpush1.bf16.msra.mxu0 %v2218
        %2984 = vmatprep.subr.bf16.mxu0 %v2227
        %2985 = vmatpush1.bf16.msra.mxu0 %v2226
        %2986 = vmatprep.subr.bf16.mxu0 %v2235
        %2987 = vmatpush1.bf16.msra.mxu0 %v2234
        %2988 = vmatprep.subr.bf16.mxu0 %v2243
        %2989 = vmatpush1.bf16.msra.mxu0 %v2242
        %2990 = vmatprep.subr.bf16.mxu0 %v2251
        %2991 = vmatpush1.bf16.msra.mxu0 %v2250
        %2992 = vmatprep.subr.bf16.mxu0 %v2259
        %2993 = vmatpush1.bf16.msra.mxu0 %v2258
        %2994 = vmatprep.subr.bf16.mxu0 %v2267
        %2995 = vmatpush1.bf16.msra.mxu0 %v2266
        %2996 = vmatprep.subr.bf16.mxu0 %v2275
        %2997 = vmatpush1.bf16.msra.mxu0 %v2274
        %2998 = vmatprep.subr.bf16.mxu0 %v2283
        %2999 = vmatpush1.bf16.msra.mxu0 %v2282
        %3000 = vmatprep.subr.bf16.mxu0 %v2291
        %3001 = vmatpush1.bf16.msra.mxu0 %v2290
        %3002 = vmatprep.subr.bf16.mxu0 %v2299
        %3003 = vmatpush1.bf16.msra.mxu0 %v2298
        %3004 = vmatprep.subr.bf16.mxu0 %v2307
        %3005 = vmatpush1.bf16.msra.mxu0 %v2306
        %3006 = vmatprep.subr.bf16.mxu0 %v2315
        %3007 = vmatpush1.bf16.msra.mxu0 %v2314
        %3008 = vmatprep.subr.bf16.mxu0 %v2323
        %3009 = vmatpush1.bf16.msra.mxu0 %v2322
        %3010 = vmatprep.subr.bf16.mxu0 %v2331
        %3011 = vmatpush1.bf16.msra.mxu0 %v2330
        %3012 = vmatprep.subr.bf16.mxu0 %v2339
        %3013 = vmatpush1.bf16.msra.mxu0 %v2338
        %3014 = vmatprep.mubr.bf16.mxu0 %v1185
        %3015 = vmatmul.mubr.bf16.gmra.mrb[0].mxu0 %v1184
        %v3016 = vpop.f32.mrb[0].mxu0
        %v3017 = vadd.f32 0.0, %v3016
        %v3018 = vpop.f32.mrb[0].mxu0
        %v3019 = vadd.f32 0.0, %v3018
        %v3020 = vpop.f32.mrb[0].mxu0
        %v3021 = vadd.f32 0.0, %v3020
        %v3022 = vpop.f32.mrb[0].mxu0
        %v3023 = vadd.f32 0.0, %v3022
        %3024 = vdwg.mxu0
        %3025 = vmatprep.subr.bf16.mxu0 %v2347
        %3026 = vmatpush1.bf16.msra.mxu0 %v2346
        %3027 = vmatprep.subr.bf16.mxu0 %v2355
        %3028 = vmatpush1.bf16.msra.mxu0 %v2354
        %3029 = vmatprep.subr.bf16.mxu0 %v2363
        %3030 = vmatpush1.bf16.msra.mxu0 %v2362
        %3031 = vmatprep.subr.bf16.mxu0 %v2371
        %3032 = vmatpush1.bf16.msra.mxu0 %v2370
        %3033 = vmatprep.subr.bf16.mxu0 %v2379
        %3034 = vmatpush1.bf16.msra.mxu0 %v2378
        %3035 = vmatprep.subr.bf16.mxu0 %v2387
        %3036 = vmatpush1.bf16.msra.mxu0 %v2386
        %3037 = vmatprep.subr.bf16.mxu0 %v2395
        %3038 = vmatpush1.bf16.msra.mxu0 %v2394
        %3039 = vmatprep.subr.bf16.mxu0 %v2403
        %3040 = vmatpush1.bf16.msra.mxu0 %v2402
        %3041 = vmatprep.subr.bf16.mxu0 %v2411
        %3042 = vmatpush1.bf16.msra.mxu0 %v2410
        %3043 = vmatprep.subr.bf16.mxu0 %v2419
        %3044 = vmatpush1.bf16.msra.mxu0 %v2418
        %3045 = vmatprep.subr.bf16.mxu0 %v2427
        %3046 = vmatpush1.bf16.msra.mxu0 %v2426
        %3047 = vmatprep.subr.bf16.mxu0 %v2435
        %3048 = vmatpush1.bf16.msra.mxu0 %v2434
        %3049 = vmatprep.subr.bf16.mxu0 %v2443
        %3050 = vmatpush1.bf16.msra.mxu0 %v2442
        %3051 = vmatprep.subr.bf16.mxu0 %v2451
        %3052 = vmatpush1.bf16.msra.mxu0 %v2450
        %3053 = vmatprep.subr.bf16.mxu0 %v2459
        %3054 = vmatpush1.bf16.msra.mxu0 %v2458
        %3055 = vmatprep.subr.bf16.mxu0 %v2467
        %3056 = vmatpush1.bf16.msra.mxu0 %v2466
        %3057 = vmatprep.mubr.bf16.mxu0 %v1187
        %3058 = vmatmul.mubr.bf16.gmra.mrb[0].mxu0 %v1186
        %v3059 = vpop.f32.mrb[0].mxu0
        %v3060 = vadd.f32 %v3017, %v3059
        %v3061 = vpop.f32.mrb[0].mxu0
        %v3062 = vadd.f32 %v3019, %v3061
        %v3063 = vpop.f32.mrb[0].mxu0
        %v3064 = vadd.f32 %v3021, %v3063
        %v3065 = vpop.f32.mrb[0].mxu0
        %v3066 = vadd.f32 %v3023, %v3065
        %3067 = vdwg.mxu0
        %v3068 = vpack.c.bf16 %v2806, %v2802
        %v3069 = vpack.c.bf16 %v2808, %v2804
        %v3070 = vpack.c.bf16 %v2892, %v2888
        %v3071 = vpack.c.bf16 %v2894, %v2890
        %v3072 = vpack.c.bf16 %v2978, %v2974
        %v3073 = vpack.c.bf16 %v2980, %v2976
        %v3074 = vpack.c.bf16 %v3064, %v3060
        %v3075 = vpack.c.bf16 %v3066, %v3062
        %v3076 = vld [vmem:[#allocation10] sm:$0xff]
        %v3078 = vcombine.high %v3076, %v3076
        %v3080 = vunpack.c.l.s4 1966171168
        %v3081 = vunpack.c.0.s8 %v3080
        %v3082 = vlaneseq
        %v3083 = vshrl.u32 %v3082, 7
        %v3084 = vsub.s32 %v3081, %v3083
        %v3085 = vrot.slane %v3076, %v3084
        %v3087 = vunpack.c.l.s4 1966171168
        %v3088 = vunpack.c.0.s8 %v3087
        %v3089 = vlaneseq
        %v3090 = vshrl.u32 %v3089, 7
        %v3091 = vsub.s32 %v3088, %v3090
        %v3092 = vrot.slane %v3078, %v3091
        %v3093 = vcombine.high %v3085, %v3085
        %v3094 = vcombine.high %v3092, %v3092
        %v3096 = vunpack.c.l.s4 1966171168
        %v3097 = vunpack.c.0.s8 %v3096
        %v3098 = vlaneseq
        %v3099 = vshrl.u32 %v3098, 7
        %v3100 = vsub.s32 %v3097, %v3099
        %v3101 = vrot.slane %v3085, %v3100
        %v3103 = vunpack.c.l.s4 1966171168
        %v3104 = vunpack.c.0.s8 %v3103
        %v3105 = vlaneseq
        %v3106 = vshrl.u32 %v3105, 7
        %v3107 = vsub.s32 %v3104, %v3106
        %v3108 = vrot.slane %v3092, %v3107
        %v3110 = vunpack.c.l.s4 1966171168
        %v3111 = vunpack.c.0.s8 %v3110
        %v3112 = vlaneseq
        %v3113 = vshrl.u32 %v3112, 7
        %v3114 = vsub.s32 %v3111, %v3113
        %v3115 = vrot.slane %v3093, %v3114
        %v3117 = vunpack.c.l.s4 1966171168
        %v3118 = vunpack.c.0.s8 %v3117
        %v3119 = vlaneseq
        %v3120 = vshrl.u32 %v3119, 7
        %v3121 = vsub.s32 %v3118, %v3120
        %v3122 = vrot.slane %v3094, %v3121
        %v3123 = vcombine.high %v3101, %v3101
        %v3124 = vcombine.high %v3108, %v3108
        %v3125 = vcombine.high %v3115, %v3115
        %v3126 = vcombine.high %v3122, %v3122
        %v3128 = vpack.i.b16 %v3101, %v3101
        %v3130 = vlaneseq
        %v3131 = vshrl.u32 %v3130, 7
        %v3132 = vsub.s32 0, %v3131
        %v3133 = vrot.slane %v3128, %v3132
        %v3135 = vpack.i.b16 %v3115, %v3115
        %v3137 = vlaneseq
        %v3138 = vshrl.u32 %v3137, 7
        %v3139 = vsub.s32 0, %v3138
        %v3140 = vrot.slane %v3135, %v3139
        %v3142 = vpack.i.b16 %v3123, %v3123
        %v3144 = vlaneseq
        %v3145 = vshrl.u32 %v3144, 7
        %v3146 = vsub.s32 0, %v3145
        %v3147 = vrot.slane %v3142, %v3146
        %v3149 = vpack.i.b16 %v3125, %v3125
        %v3151 = vlaneseq
        %v3152 = vshrl.u32 %v3151, 7
        %v3153 = vsub.s32 0, %v3152
        %v3154 = vrot.slane %v3149, %v3153
        %v3156 = vpack.i.b16 %v3108, %v3108
        %v3158 = vlaneseq
        %v3159 = vshrl.u32 %v3158, 7
        %v3160 = vsub.s32 0, %v3159
        %v3161 = vrot.slane %v3156, %v3160
        %v3163 = vpack.i.b16 %v3122, %v3122
        %v3165 = vlaneseq
        %v3166 = vshrl.u32 %v3165, 7
        %v3167 = vsub.s32 0, %v3166
        %v3168 = vrot.slane %v3163, %v3167
        %v3170 = vpack.i.b16 %v3124, %v3124
        %v3172 = vlaneseq
        %v3173 = vshrl.u32 %v3172, 7
        %v3174 = vsub.s32 0, %v3173
        %v3175 = vrot.slane %v3170, %v3174
        %v3177 = vpack.i.b16 %v3126, %v3126
        %v3179 = vlaneseq
        %v3180 = vshrl.u32 %v3179, 7
        %v3181 = vsub.s32 0, %v3180
        %v3182 = vrot.slane %v3177, %v3181
        %v3183 = vadd.bf16 %v3068, %v3133
        %v3184 = vadd.bf16 %v3069, %v3140
        %v3185 = vadd.bf16 %v3070, %v3147
        %v3186 = vadd.bf16 %v3071, %v3154
        %v3187 = vadd.bf16 %v3072, %v3161
        %v3188 = vadd.bf16 %v3073, %v3168
        %v3189 = vadd.bf16 %v3074, %v3175
        %v3190 = vadd.bf16 %v3075, %v3182
        %vm3191 = vcmp.gt.bf16.partialorder %v3183, 0
        %vm3192 = vcmp.gt.bf16.partialorder %v3184, 0
        %vm3193 = vcmp.gt.bf16.partialorder %v3185, 0
        %vm3194 = vcmp.gt.bf16.partialorder %v3186, 0
        %vm3195 = vcmp.gt.bf16.partialorder %v3187, 0
        %vm3196 = vcmp.gt.bf16.partialorder %v3188, 0
        %vm3197 = vcmp.gt.bf16.partialorder %v3189, 0
        %vm3198 = vcmp.gt.bf16.partialorder %v3190, 0
        %v3199 = vmul.bf16 %v3183, 1045249613
        %v3200 = vmul.bf16 %v3184, 1045249613
        %v3201 = vmul.bf16 %v3185, 1045249613
        %v3202 = vmul.bf16 %v3186, 1045249613
        %v3203 = vmul.bf16 %v3187, 1045249613
        %v3204 = vmul.bf16 %v3188, 1045249613
        %v3205 = vmul.bf16 %v3189, 1045249613
        %v3206 = vmul.bf16 %v3190, 1045249613
        %v3207 = vsel %vm3191, %v3183, %v3199
        %v3208 = vsel %vm3192, %v3184, %v3200
        %v3209 = vsel %vm3193, %v3185, %v3201
        %v3210 = vsel %vm3194, %v3186, %v3202
        %v3211 = vsel %vm3195, %v3187, %v3203
        %v3212 = vsel %vm3196, %v3188, %v3204
        %v3213 = vsel %vm3197, %v3189, %v3205
        %v3214 = vsel %vm3198, %v3190, %v3206
        %v3215 = vld [vmem:[#allocation12] sm:$0xff]
        %v3216 = vld [vmem:[#allocation12 + $0x8] sm:$0xff]
        %v3217 = vld [vmem:[#allocation12 + $0x10] sm:$0xff]
        %v3218 = vld [vmem:[#allocation12 + $0x18] sm:$0xf]
        %v3219 = vld [vmem:[#allocation12 + $0x1c] sm:$0xff]
        %v3220 = vld [vmem:[#allocation12 + $0x24] sm:$0xff]
        %v3221 = vld [vmem:[#allocation12 + $0x2c] sm:$0xff]
        %v3222 = vld [vmem:[#allocation12 + $0x34] sm:$0xf]
        %v3223 = vld [vmem:[#allocation12 + $0x38] sm:$0xff]
        %v3224 = vld [vmem:[#allocation12 + $0x40] sm:$0xff]
        %v3225 = vld [vmem:[#allocation12 + $0x48] sm:$0xff]
        %v3226 = vld [vmem:[#allocation12 + $0x50] sm:$0xf]
        %v3227 = vld [vmem:[#allocation12 + $0x54] sm:$0xff]
        %v3228 = vld [vmem:[#allocation12 + $0x5c] sm:$0xff]
        %v3229 = vld [vmem:[#allocation12 + $0x64] sm:$0xff]
        %v3230 = vld [vmem:[#allocation12 + $0x6c] sm:$0xf]
        %v3231 = vld [vmem:[#allocation12 + $0x70] sm:$0xff]
        %v3232 = vld [vmem:[#allocation12 + $0x78] sm:$0xff]
        %v3233 = vld [vmem:[#allocation12 + $0x80] sm:$0xff]
        %v3234 = vld [vmem:[#allocation12 + $0x88] sm:$0xf]
        %v3235 = vld [vmem:[#allocation12 + $0x8c] sm:$0xff]
        %v3236 = vld [vmem:[#allocation12 + $0x94] sm:$0xff]
        %v3237 = vld [vmem:[#allocation12 + $0x9c] sm:$0xff]
        %v3238 = vld [vmem:[#allocation12 + $0xa4] sm:$0xf]
        %v3239 = vld [vmem:[#allocation12 + $0xa8] sm:$0xff]
        %v3240 = vld [vmem:[#allocation12 + $0xb0] sm:$0xff]
        %v3241 = vld [vmem:[#allocation12 + $0xb8] sm:$0xff]
        %v3242 = vld [vmem:[#allocation12 + $0xc0] sm:$0xf]
        %v3243 = vld [vmem:[#allocation12 + $0xc4] sm:$0xff]
        %v3244 = vld [vmem:[#allocation12 + $0xcc] sm:$0xff]
        %v3245 = vld [vmem:[#allocation12 + $0xd4] sm:$0xff]
        %v3246 = vld [vmem:[#allocation12 + $0xdc] sm:$0xf]
        %v3247 = vld [vmem:[#allocation12 + $0xe0] sm:$0xff]
        %v3248 = vld [vmem:[#allocation12 + $0xe8] sm:$0xff]
        %v3249 = vld [vmem:[#allocation12 + $0xf0] sm:$0xff]
        %v3250 = vld [vmem:[#allocation12 + $0xf8] sm:$0xf]
        %v3251 = vld [vmem:[#allocation12 + $0xfc] sm:$0xff]
        %v3252 = vld [vmem:[#allocation12 + $0x104] sm:$0xff]
        %v3253 = vld [vmem:[#allocation12 + $0x10c] sm:$0xff]
        %v3254 = vld [vmem:[#allocation12 + $0x114] sm:$0xf]
        %v3255 = vld [vmem:[#allocation12 + $0x118] sm:$0xff]
        %v3256 = vld [vmem:[#allocation12 + $0x120] sm:$0xff]
        %v3257 = vld [vmem:[#allocation12 + $0x128] sm:$0xff]
        %v3258 = vld [vmem:[#allocation12 + $0x130] sm:$0xf]
        %v3259 = vld [vmem:[#allocation12 + $0x134] sm:$0xff]
        %v3260 = vld [vmem:[#allocation12 + $0x13c] sm:$0xff]
        %v3261 = vld [vmem:[#allocation12 + $0x144] sm:$0xff]
        %v3262 = vld [vmem:[#allocation12 + $0x14c] sm:$0xf]
        %v3263 = vld [vmem:[#allocation12 + $0x150] sm:$0xff]
        %v3264 = vld [vmem:[#allocation12 + $0x158] sm:$0xff]
        %v3265 = vld [vmem:[#allocation12 + $0x160] sm:$0xff]
        %v3266 = vld [vmem:[#allocation12 + $0x168] sm:$0xf]
        %v3267 = vld [vmem:[#allocation12 + $0x16c] sm:$0xff]
        %v3268 = vld [vmem:[#allocation12 + $0x174] sm:$0xff]
        %v3269 = vld [vmem:[#allocation12 + $0x17c] sm:$0xff]
        %v3270 = vld [vmem:[#allocation12 + $0x184] sm:$0xf]
        %v3271 = vld [vmem:[#allocation12 + $0x188] sm:$0xff]
        %v3272 = vld [vmem:[#allocation12 + $0x190] sm:$0xff]
        %v3273 = vld [vmem:[#allocation12 + $0x198] sm:$0xff]
        %v3274 = vld [vmem:[#allocation12 + $0x1a0] sm:$0xf]
        %v3275 = vld [vmem:[#allocation12 + $0x1a4] sm:$0xff]
        %v3276 = vld [vmem:[#allocation12 + $0x1ac] sm:$0xff]
        %v3277 = vld [vmem:[#allocation12 + $0x1b4] sm:$0xff]
        %v3278 = vld [vmem:[#allocation12 + $0x1bc] sm:$0xf]
        %v3279 = vld [vmem:[#allocation12 + $0x1c0] sm:$0xff]
        %v3280 = vld [vmem:[#allocation12 + $0x1c8] sm:$0xff]
        %v3281 = vld [vmem:[#allocation12 + $0x1d0] sm:$0xff]
        %v3282 = vld [vmem:[#allocation12 + $0x1d8] sm:$0xf]
        %v3283 = vld [vmem:[#allocation12 + $0x1dc] sm:$0xff]
        %v3284 = vld [vmem:[#allocation12 + $0x1e4] sm:$0xff]
        %v3285 = vld [vmem:[#allocation12 + $0x1ec] sm:$0xff]
        %v3286 = vld [vmem:[#allocation12 + $0x1f4] sm:$0xf]
        %v3287 = vld [vmem:[#allocation12 + $0x1f8] sm:$0xff]
        %v3288 = vld [vmem:[#allocation12 + $0x200] sm:$0xff]
        %v3289 = vld [vmem:[#allocation12 + $0x208] sm:$0xff]
        %v3290 = vld [vmem:[#allocation12 + $0x210] sm:$0xf]
        %v3291 = vld [vmem:[#allocation12 + $0x214] sm:$0xff]
        %v3292 = vld [vmem:[#allocation12 + $0x21c] sm:$0xff]
        %v3293 = vld [vmem:[#allocation12 + $0x224] sm:$0xff]
        %v3294 = vld [vmem:[#allocation12 + $0x22c] sm:$0xf]
        %v3295 = vld [vmem:[#allocation12 + $0x230] sm:$0xff]
        %v3296 = vld [vmem:[#allocation12 + $0x238] sm:$0xff]
        %v3297 = vld [vmem:[#allocation12 + $0x240] sm:$0xff]
        %v3298 = vld [vmem:[#allocation12 + $0x248] sm:$0xf]
        %v3299 = vld [vmem:[#allocation12 + $0x24c] sm:$0xff]
        %v3300 = vld [vmem:[#allocation12 + $0x254] sm:$0xff]
        %v3301 = vld [vmem:[#allocation12 + $0x25c] sm:$0xff]
        %v3302 = vld [vmem:[#allocation12 + $0x264] sm:$0xf]
        %v3303 = vld [vmem:[#allocation12 + $0x268] sm:$0xff]
        %v3304 = vld [vmem:[#allocation12 + $0x270] sm:$0xff]
        %v3305 = vld [vmem:[#allocation12 + $0x278] sm:$0xff]
        %v3306 = vld [vmem:[#allocation12 + $0x280] sm:$0xf]
        %v3307 = vld [vmem:[#allocation12 + $0x284] sm:$0xff]
        %v3308 = vld [vmem:[#allocation12 + $0x28c] sm:$0xff]
        %v3309 = vld [vmem:[#allocation12 + $0x294] sm:$0xff]
        %v3310 = vld [vmem:[#allocation12 + $0x29c] sm:$0xf]
        %v3311 = vld [vmem:[#allocation12 + $0x2a0] sm:$0xff]
        %v3312 = vld [vmem:[#allocation12 + $0x2a8] sm:$0xff]
        %v3313 = vld [vmem:[#allocation12 + $0x2b0] sm:$0xff]
        %v3314 = vld [vmem:[#allocation12 + $0x2b8] sm:$0xf]
        %v3315 = vld [vmem:[#allocation12 + $0x2bc] sm:$0xff]
        %v3316 = vld [vmem:[#allocation12 + $0x2c4] sm:$0xff]
        %v3317 = vld [vmem:[#allocation12 + $0x2cc] sm:$0xff]
        %v3318 = vld [vmem:[#allocation12 + $0x2d4] sm:$0xf]
        %v3319 = vld [vmem:[#allocation12 + $0x2d8] sm:$0xff]
        %v3320 = vld [vmem:[#allocation12 + $0x2e0] sm:$0xff]
        %v3321 = vld [vmem:[#allocation12 + $0x2e8] sm:$0xff]
        %v3322 = vld [vmem:[#allocation12 + $0x2f0] sm:$0xf]
        %v3323 = vld [vmem:[#allocation12 + $0x2f4] sm:$0xff]
        %v3324 = vld [vmem:[#allocation12 + $0x2fc] sm:$0xff]
        %v3325 = vld [vmem:[#allocation12 + $0x304] sm:$0xff]
        %v3326 = vld [vmem:[#allocation12 + $0x30c] sm:$0xf]
        %v3327 = vld [vmem:[#allocation12 + $0x310] sm:$0xff]
        %v3328 = vld [vmem:[#allocation12 + $0x318] sm:$0xff]
        %v3329 = vld [vmem:[#allocation12 + $0x320] sm:$0xff]
        %v3330 = vld [vmem:[#allocation12 + $0x328] sm:$0xf]
        %v3331 = vld [vmem:[#allocation12 + $0x32c] sm:$0xff]
        %v3332 = vld [vmem:[#allocation12 + $0x334] sm:$0xff]
        %v3333 = vld [vmem:[#allocation12 + $0x33c] sm:$0xff]
        %v3334 = vld [vmem:[#allocation12 + $0x344] sm:$0xf]
        %v3335 = vld [vmem:[#allocation12 + $0x348] sm:$0xff]
        %v3336 = vld [vmem:[#allocation12 + $0x350] sm:$0xff]
        %v3337 = vld [vmem:[#allocation12 + $0x358] sm:$0xff]
        %v3338 = vld [vmem:[#allocation12 + $0x360] sm:$0xf]
        %v3339 = vld [vmem:[#allocation12 + $0x364] sm:$0xff]
        %v3340 = vld [vmem:[#allocation12 + $0x36c] sm:$0xff]
        %v3341 = vld [vmem:[#allocation12 + $0x374] sm:$0xff]
        %v3342 = vld [vmem:[#allocation12 + $0x37c] sm:$0xf]
        %v3343 = vld [vmem:[#allocation12 + $0x380] sm:$0xff]
        %v3344 = vld [vmem:[#allocation12 + $0x388] sm:$0xff]
        %v3345 = vld [vmem:[#allocation12 + $0x390] sm:$0xff]
        %v3346 = vld [vmem:[#allocation12 + $0x398] sm:$0xf]
        %v3347 = vld [vmem:[#allocation12 + $0x39c] sm:$0xff]
        %v3348 = vld [vmem:[#allocation12 + $0x3a4] sm:$0xff]
        %v3349 = vld [vmem:[#allocation12 + $0x3ac] sm:$0xff]
        %v3350 = vld [vmem:[#allocation12 + $0x3b4] sm:$0xf]
        %v3351 = vld [vmem:[#allocation12 + $0x3b8] sm:$0xff]
        %v3352 = vld [vmem:[#allocation12 + $0x3c0] sm:$0xff]
        %v3353 = vld [vmem:[#allocation12 + $0x3c8] sm:$0xff]
        %v3354 = vld [vmem:[#allocation12 + $0x3d0] sm:$0xf]
        %v3355 = vld [vmem:[#allocation12 + $0x3d4] sm:$0xff]
        %v3356 = vld [vmem:[#allocation12 + $0x3dc] sm:$0xff]
        %v3357 = vld [vmem:[#allocation12 + $0x3e4] sm:$0xff]
        %v3358 = vld [vmem:[#allocation12 + $0x3ec] sm:$0xf]
        %v3359 = vld [vmem:[#allocation12 + $0x3f0] sm:$0xff]
        %v3360 = vld [vmem:[#allocation12 + $0x3f8] sm:$0xff]
        %v3361 = vld [vmem:[#allocation12 + $0x400] sm:$0xff]
        %v3362 = vld [vmem:[#allocation12 + $0x408] sm:$0xf]
        %v3363 = vld [vmem:[#allocation12 + $0x40c] sm:$0xff]
        %v3364 = vld [vmem:[#allocation12 + $0x414] sm:$0xff]
        %v3365 = vld [vmem:[#allocation12 + $0x41c] sm:$0xff]
        %v3366 = vld [vmem:[#allocation12 + $0x424] sm:$0xf]
        %v3367 = vld [vmem:[#allocation12 + $0x428] sm:$0xff]
        %v3368 = vld [vmem:[#allocation12 + $0x430] sm:$0xff]
        %v3369 = vld [vmem:[#allocation12 + $0x438] sm:$0xff]
        %v3370 = vld [vmem:[#allocation12 + $0x440] sm:$0xf]
        %v3371 = vld [vmem:[#allocation12 + $0x444] sm:$0xff]
        %v3372 = vld [vmem:[#allocation12 + $0x44c] sm:$0xff]
        %v3373 = vld [vmem:[#allocation12 + $0x454] sm:$0xff]
        %v3374 = vld [vmem:[#allocation12 + $0x45c] sm:$0xf]
        %v3375 = vld [vmem:[#allocation12 + $0x460] sm:$0xff]
        %v3376 = vld [vmem:[#allocation12 + $0x468] sm:$0xff]
        %v3377 = vld [vmem:[#allocation12 + $0x470] sm:$0xff]
        %v3378 = vld [vmem:[#allocation12 + $0x478] sm:$0xf]
        %v3379 = vld [vmem:[#allocation12 + $0x47c] sm:$0xff]
        %v3380 = vld [vmem:[#allocation12 + $0x484] sm:$0xff]
        %v3381 = vld [vmem:[#allocation12 + $0x48c] sm:$0xff]
        %v3382 = vld [vmem:[#allocation12 + $0x494] sm:$0xf]
        %v3383 = vld [vmem:[#allocation12 + $0x498] sm:$0xff]
        %v3384 = vld [vmem:[#allocation12 + $0x4a0] sm:$0xff]
        %v3385 = vld [vmem:[#allocation12 + $0x4a8] sm:$0xff]
        %v3386 = vld [vmem:[#allocation12 + $0x4b0] sm:$0xf]
        %v3387 = vld [vmem:[#allocation12 + $0x4b4] sm:$0xff]
        %v3388 = vld [vmem:[#allocation12 + $0x4bc] sm:$0xff]
        %v3389 = vld [vmem:[#allocation12 + $0x4c4] sm:$0xff]
        %v3390 = vld [vmem:[#allocation12 + $0x4cc] sm:$0xf]
        %v3391 = vld [vmem:[#allocation12 + $0x4d0] sm:$0xff]
        %v3392 = vld [vmem:[#allocation12 + $0x4d8] sm:$0xff]
        %v3393 = vld [vmem:[#allocation12 + $0x4e0] sm:$0xff]
        %v3394 = vld [vmem:[#allocation12 + $0x4e8] sm:$0xf]
        %v3395 = vld [vmem:[#allocation12 + $0x4ec] sm:$0xff]
        %v3396 = vld [vmem:[#allocation12 + $0x4f4] sm:$0xff]
        %v3397 = vld [vmem:[#allocation12 + $0x4fc] sm:$0xff]
        %v3398 = vld [vmem:[#allocation12 + $0x504] sm:$0xf]
        %v3399 = vld [vmem:[#allocation12 + $0x508] sm:$0xff]
        %v3400 = vld [vmem:[#allocation12 + $0x510] sm:$0xff]
        %v3401 = vld [vmem:[#allocation12 + $0x518] sm:$0xff]
        %v3402 = vld [vmem:[#allocation12 + $0x520] sm:$0xf]
        %v3403 = vld [vmem:[#allocation12 + $0x524] sm:$0xff]
        %v3404 = vld [vmem:[#allocation12 + $0x52c] sm:$0xff]
        %v3405 = vld [vmem:[#allocation12 + $0x534] sm:$0xff]
        %v3406 = vld [vmem:[#allocation12 + $0x53c] sm:$0xf]
        %v3407 = vld [vmem:[#allocation12 + $0x540] sm:$0xff]
        %v3408 = vld [vmem:[#allocation12 + $0x548] sm:$0xff]
        %v3409 = vld [vmem:[#allocation12 + $0x550] sm:$0xff]
        %v3410 = vld [vmem:[#allocation12 + $0x558] sm:$0xf]
        %v3411 = vld [vmem:[#allocation12 + $0x55c] sm:$0xff]
        %v3412 = vld [vmem:[#allocation12 + $0x564] sm:$0xff]
        %v3413 = vld [vmem:[#allocation12 + $0x56c] sm:$0xff]
        %v3414 = vld [vmem:[#allocation12 + $0x574] sm:$0xf]
        %v3415 = vld [vmem:[#allocation12 + $0x578] sm:$0xff]
        %v3416 = vld [vmem:[#allocation12 + $0x580] sm:$0xff]
        %v3417 = vld [vmem:[#allocation12 + $0x588] sm:$0xff]
        %v3418 = vld [vmem:[#allocation12 + $0x590] sm:$0xf]
        %v3419 = vld [vmem:[#allocation12 + $0x594] sm:$0xff]
        %v3420 = vld [vmem:[#allocation12 + $0x59c] sm:$0xff]
        %v3421 = vld [vmem:[#allocation12 + $0x5a4] sm:$0xff]
        %v3422 = vld [vmem:[#allocation12 + $0x5ac] sm:$0xf]
        %v3423 = vld [vmem:[#allocation12 + $0x5b0] sm:$0xff]
        %v3424 = vld [vmem:[#allocation12 + $0x5b8] sm:$0xff]
        %v3425 = vld [vmem:[#allocation12 + $0x5c0] sm:$0xff]
        %v3426 = vld [vmem:[#allocation12 + $0x5c8] sm:$0xf]
        %v3427 = vld [vmem:[#allocation12 + $0x5cc] sm:$0xff]
        %v3428 = vld [vmem:[#allocation12 + $0x5d4] sm:$0xff]
        %v3429 = vld [vmem:[#allocation12 + $0x5dc] sm:$0xff]
        %v3430 = vld [vmem:[#allocation12 + $0x5e4] sm:$0xf]
        %v3431 = vld [vmem:[#allocation12 + $0x5e8] sm:$0xff]
        %v3432 = vld [vmem:[#allocation12 + $0x5f0] sm:$0xff]
        %v3433 = vld [vmem:[#allocation12 + $0x5f8] sm:$0xff]
        %v3434 = vld [vmem:[#allocation12 + $0x600] sm:$0xf]
        %v3435 = vld [vmem:[#allocation12 + $0x604] sm:$0xff]
        %v3436 = vld [vmem:[#allocation12 + $0x60c] sm:$0xff]
        %v3437 = vld [vmem:[#allocation12 + $0x614] sm:$0xff]
        %v3438 = vld [vmem:[#allocation12 + $0x61c] sm:$0xf]
        %v3439 = vld [vmem:[#allocation12 + $0x620] sm:$0xff]
        %v3440 = vld [vmem:[#allocation12 + $0x628] sm:$0xff]
        %v3441 = vld [vmem:[#allocation12 + $0x630] sm:$0xff]
        %v3442 = vld [vmem:[#allocation12 + $0x638] sm:$0xf]
        %v3443 = vld [vmem:[#allocation12 + $0x63c] sm:$0xff]
        %v3444 = vld [vmem:[#allocation12 + $0x644] sm:$0xff]
        %v3445 = vld [vmem:[#allocation12 + $0x64c] sm:$0xff]
        %v3446 = vld [vmem:[#allocation12 + $0x654] sm:$0xf]
        %v3447 = vld [vmem:[#allocation12 + $0x658] sm:$0xff]
        %v3448 = vld [vmem:[#allocation12 + $0x660] sm:$0xff]
        %v3449 = vld [vmem:[#allocation12 + $0x668] sm:$0xff]
        %v3450 = vld [vmem:[#allocation12 + $0x670] sm:$0xf]
        %v3451 = vld [vmem:[#allocation12 + $0x674] sm:$0xff]
        %v3452 = vld [vmem:[#allocation12 + $0x67c] sm:$0xff]
        %v3453 = vld [vmem:[#allocation12 + $0x684] sm:$0xff]
        %v3454 = vld [vmem:[#allocation12 + $0x68c] sm:$0xf]
        %v3455 = vld [vmem:[#allocation12 + $0x690] sm:$0xff]
        %v3456 = vld [vmem:[#allocation12 + $0x698] sm:$0xff]
        %v3457 = vld [vmem:[#allocation12 + $0x6a0] sm:$0xff]
        %v3458 = vld [vmem:[#allocation12 + $0x6a8] sm:$0xf]
        %v3459 = vld [vmem:[#allocation12 + $0x6ac] sm:$0xff]
        %v3460 = vld [vmem:[#allocation12 + $0x6b4] sm:$0xff]
        %v3461 = vld [vmem:[#allocation12 + $0x6bc] sm:$0xff]
        %v3462 = vld [vmem:[#allocation12 + $0x6c4] sm:$0xf]
        %v3463 = vld [vmem:[#allocation12 + $0x6c8] sm:$0xff]
        %v3464 = vld [vmem:[#allocation12 + $0x6d0] sm:$0xff]
        %v3465 = vld [vmem:[#allocation12 + $0x6d8] sm:$0xff]
        %v3466 = vld [vmem:[#allocation12 + $0x6e0] sm:$0xf]
        %v3467 = vld [vmem:[#allocation12 + $0x6e4] sm:$0xff]
        %v3468 = vld [vmem:[#allocation12 + $0x6ec] sm:$0xff]
        %v3469 = vld [vmem:[#allocation12 + $0x6f4] sm:$0xff]
        %v3470 = vld [vmem:[#allocation12 + $0x6fc] sm:$0xf]
        %v3471 = vld [vmem:[#allocation12 + $0x700] sm:$0xff]
        %v3472 = vld [vmem:[#allocation12 + $0x708] sm:$0xff]
        %v3473 = vld [vmem:[#allocation12 + $0x710] sm:$0xff]
        %v3474 = vld [vmem:[#allocation12 + $0x718] sm:$0xf]
        %v3475 = vld [vmem:[#allocation12 + $0x71c] sm:$0xff]
        %v3476 = vld [vmem:[#allocation12 + $0x724] sm:$0xff]
        %v3477 = vld [vmem:[#allocation12 + $0x72c] sm:$0xff]
        %v3478 = vld [vmem:[#allocation12 + $0x734] sm:$0xf]
        %v3479 = vld [vmem:[#allocation12 + $0x738] sm:$0xff]
        %v3480 = vld [vmem:[#allocation12 + $0x740] sm:$0xff]
        %v3481 = vld [vmem:[#allocation12 + $0x748] sm:$0xff]
        %v3482 = vld [vmem:[#allocation12 + $0x750] sm:$0xf]
        %v3483 = vld [vmem:[#allocation12 + $0x754] sm:$0xff]
        %v3484 = vld [vmem:[#allocation12 + $0x75c] sm:$0xff]
        %v3485 = vld [vmem:[#allocation12 + $0x764] sm:$0xff]
        %v3486 = vld [vmem:[#allocation12 + $0x76c] sm:$0xf]
        %v3487 = vld [vmem:[#allocation12 + $0x770] sm:$0xff]
        %v3488 = vld [vmem:[#allocation12 + $0x778] sm:$0xff]
        %v3489 = vld [vmem:[#allocation12 + $0x780] sm:$0xff]
        %v3490 = vld [vmem:[#allocation12 + $0x788] sm:$0xf]
        %v3491 = vld [vmem:[#allocation12 + $0x78c] sm:$0xff]
        %v3492 = vld [vmem:[#allocation12 + $0x794] sm:$0xff]
        %v3493 = vld [vmem:[#allocation12 + $0x79c] sm:$0xff]
        %v3494 = vld [vmem:[#allocation12 + $0x7a4] sm:$0xf]
        %v3495 = vld [vmem:[#allocation12 + $0x7a8] sm:$0xff]
        %v3496 = vld [vmem:[#allocation12 + $0x7b0] sm:$0xff]
        %v3497 = vld [vmem:[#allocation12 + $0x7b8] sm:$0xff]
        %v3498 = vld [vmem:[#allocation12 + $0x7c0] sm:$0xf]
        %v3499 = vld [vmem:[#allocation12 + $0x7c4] sm:$0xff]
        %v3500 = vld [vmem:[#allocation12 + $0x7cc] sm:$0xff]
        %v3501 = vld [vmem:[#allocation12 + $0x7d4] sm:$0xff]
        %v3502 = vld [vmem:[#allocation12 + $0x7dc] sm:$0xf]
        %v3503 = vld [vmem:[#allocation12 + $0x7e0] sm:$0xff]
        %v3504 = vld [vmem:[#allocation12 + $0x7e8] sm:$0xff]
        %v3505 = vld [vmem:[#allocation12 + $0x7f0] sm:$0xff]
        %v3506 = vld [vmem:[#allocation12 + $0x7f8] sm:$0xf]
        %v3507 = vld [vmem:[#allocation12 + $0x7fc] sm:$0xff]
        %v3508 = vld [vmem:[#allocation12 + $0x804] sm:$0xff]
        %v3509 = vld [vmem:[#allocation12 + $0x80c] sm:$0xff]
        %v3510 = vld [vmem:[#allocation12 + $0x814] sm:$0xf]
        %v3511 = vld [vmem:[#allocation12 + $0x818] sm:$0xff]
        %v3512 = vld [vmem:[#allocation12 + $0x820] sm:$0xff]
        %v3513 = vld [vmem:[#allocation12 + $0x828] sm:$0xff]
        %v3514 = vld [vmem:[#allocation12 + $0x830] sm:$0xf]
        %v3515 = vld [vmem:[#allocation12 + $0x834] sm:$0xff]
        %v3516 = vld [vmem:[#allocation12 + $0x83c] sm:$0xff]
        %v3517 = vld [vmem:[#allocation12 + $0x844] sm:$0xff]
        %v3518 = vld [vmem:[#allocation12 + $0x84c] sm:$0xf]
        %v3519 = vld [vmem:[#allocation12 + $0x850] sm:$0xff]
        %v3520 = vld [vmem:[#allocation12 + $0x858] sm:$0xff]
        %v3521 = vld [vmem:[#allocation12 + $0x860] sm:$0xff]
        %v3522 = vld [vmem:[#allocation12 + $0x868] sm:$0xf]
        %v3523 = vld [vmem:[#allocation12 + $0x86c] sm:$0xff]
        %v3524 = vld [vmem:[#allocation12 + $0x874] sm:$0xff]
        %v3525 = vld [vmem:[#allocation12 + $0x87c] sm:$0xff]
        %v3526 = vld [vmem:[#allocation12 + $0x884] sm:$0xf]
        %v3527 = vld [vmem:[#allocation12 + $0x888] sm:$0xff]
        %v3528 = vld [vmem:[#allocation12 + $0x890] sm:$0xff]
        %v3529 = vld [vmem:[#allocation12 + $0x898] sm:$0xff]
        %v3530 = vld [vmem:[#allocation12 + $0x8a0] sm:$0xf]
        %v3531 = vld [vmem:[#allocation12 + $0x8a4] sm:$0xff]
        %v3532 = vld [vmem:[#allocation12 + $0x8ac] sm:$0xff]
        %v3533 = vld [vmem:[#allocation12 + $0x8b4] sm:$0xff]
        %v3534 = vld [vmem:[#allocation12 + $0x8bc] sm:$0xf]
        %v3535 = vld [vmem:[#allocation12 + $0x8c0] sm:$0xff]
        %v3536 = vld [vmem:[#allocation12 + $0x8c8] sm:$0xff]
        %v3537 = vld [vmem:[#allocation12 + $0x8d0] sm:$0xff]
        %v3538 = vld [vmem:[#allocation12 + $0x8d8] sm:$0xf]
        %v3539 = vld [vmem:[#allocation12 + $0x8dc] sm:$0xff]
        %v3540 = vld [vmem:[#allocation12 + $0x8e4] sm:$0xff]
        %v3541 = vld [vmem:[#allocation12 + $0x8ec] sm:$0xff]
        %v3542 = vld [vmem:[#allocation12 + $0x8f4] sm:$0xf]
        %v3543 = vld [vmem:[#allocation12 + $0x8f8] sm:$0xff]
        %v3544 = vld [vmem:[#allocation12 + $0x900] sm:$0xff]
        %v3545 = vld [vmem:[#allocation12 + $0x908] sm:$0xff]
        %v3546 = vld [vmem:[#allocation12 + $0x910] sm:$0xf]
        %v3547 = vld [vmem:[#allocation12 + $0x914] sm:$0xff]
        %v3548 = vld [vmem:[#allocation12 + $0x91c] sm:$0xff]
        %v3549 = vld [vmem:[#allocation12 + $0x924] sm:$0xff]
        %v3550 = vld [vmem:[#allocation12 + $0x92c] sm:$0xf]
        %v3551 = vld [vmem:[#allocation12 + $0x930] sm:$0xff]
        %v3552 = vld [vmem:[#allocation12 + $0x938] sm:$0xff]
        %v3553 = vld [vmem:[#allocation12 + $0x940] sm:$0xff]
        %v3554 = vld [vmem:[#allocation12 + $0x948] sm:$0xf]
        %v3555 = vld [vmem:[#allocation12 + $0x94c] sm:$0xff]
        %v3556 = vld [vmem:[#allocation12 + $0x954] sm:$0xff]
        %v3557 = vld [vmem:[#allocation12 + $0x95c] sm:$0xff]
        %v3558 = vld [vmem:[#allocation12 + $0x964] sm:$0xf]
        %v3559 = vld [vmem:[#allocation12 + $0x968] sm:$0xff]
        %v3560 = vld [vmem:[#allocation12 + $0x970] sm:$0xff]
        %v3561 = vld [vmem:[#allocation12 + $0x978] sm:$0xff]
        %v3562 = vld [vmem:[#allocation12 + $0x980] sm:$0xf]
        %v3563 = vld [vmem:[#allocation12 + $0x984] sm:$0xff]
        %v3564 = vld [vmem:[#allocation12 + $0x98c] sm:$0xff]
        %v3565 = vld [vmem:[#allocation12 + $0x994] sm:$0xff]
        %v3566 = vld [vmem:[#allocation12 + $0x99c] sm:$0xf]
        %v3567 = vld [vmem:[#allocation12 + $0x9a0] sm:$0xff]
        %v3568 = vld [vmem:[#allocation12 + $0x9a8] sm:$0xff]
        %v3569 = vld [vmem:[#allocation12 + $0x9b0] sm:$0xff]
        %v3570 = vld [vmem:[#allocation12 + $0x9b8] sm:$0xf]
        %v3571 = vld [vmem:[#allocation12 + $0x9bc] sm:$0xff]
        %v3572 = vld [vmem:[#allocation12 + $0x9c4] sm:$0xff]
        %v3573 = vld [vmem:[#allocation12 + $0x9cc] sm:$0xff]
        %v3574 = vld [vmem:[#allocation12 + $0x9d4] sm:$0xf]
        %v3575 = vld [vmem:[#allocation12 + $0x9d8] sm:$0xff]
        %v3576 = vld [vmem:[#allocation12 + $0x9e0] sm:$0xff]
        %v3577 = vld [vmem:[#allocation12 + $0x9e8] sm:$0xff]
        %v3578 = vld [vmem:[#allocation12 + $0x9f0] sm:$0xf]
        %v3579 = vld [vmem:[#allocation12 + $0x9f4] sm:$0xff]
        %v3580 = vld [vmem:[#allocation12 + $0x9fc] sm:$0xff]
        %v3581 = vld [vmem:[#allocation12 + $0xa04] sm:$0xff]
        %v3582 = vld [vmem:[#allocation12 + $0xa0c] sm:$0xf]
        %v3583 = vld [vmem:[#allocation12 + $0xa10] sm:$0xff]
        %v3584 = vld [vmem:[#allocation12 + $0xa18] sm:$0xff]
        %v3585 = vld [vmem:[#allocation12 + $0xa20] sm:$0xff]
        %v3586 = vld [vmem:[#allocation12 + $0xa28] sm:$0xf]
        %v3587 = vld [vmem:[#allocation12 + $0xa2c] sm:$0xff]
        %v3588 = vld [vmem:[#allocation12 + $0xa34] sm:$0xff]
        %v3589 = vld [vmem:[#allocation12 + $0xa3c] sm:$0xff]
        %v3590 = vld [vmem:[#allocation12 + $0xa44] sm:$0xf]
        %v3591 = vld [vmem:[#allocation12 + $0xa48] sm:$0xff]
        %v3592 = vld [vmem:[#allocation12 + $0xa50] sm:$0xff]
        %v3593 = vld [vmem:[#allocation12 + $0xa58] sm:$0xff]
        %v3594 = vld [vmem:[#allocation12 + $0xa60] sm:$0xf]
        %v3595 = vld [vmem:[#allocation12 + $0xa64] sm:$0xff]
        %v3596 = vld [vmem:[#allocation12 + $0xa6c] sm:$0xff]
        %v3597 = vld [vmem:[#allocation12 + $0xa74] sm:$0xff]
        %v3598 = vld [vmem:[#allocation12 + $0xa7c] sm:$0xf]
        %v3599 = vld [vmem:[#allocation12 + $0xa80] sm:$0xff]
        %v3600 = vld [vmem:[#allocation12 + $0xa88] sm:$0xff]
        %v3601 = vld [vmem:[#allocation12 + $0xa90] sm:$0xff]
        %v3602 = vld [vmem:[#allocation12 + $0xa98] sm:$0xf]
        %v3603 = vld [vmem:[#allocation12 + $0xa9c] sm:$0xff]
        %v3604 = vld [vmem:[#allocation12 + $0xaa4] sm:$0xff]
        %v3605 = vld [vmem:[#allocation12 + $0xaac] sm:$0xff]
        %v3606 = vld [vmem:[#allocation12 + $0xab4] sm:$0xf]
        %v3607 = vld [vmem:[#allocation12 + $0xab8] sm:$0xff]
        %v3608 = vld [vmem:[#allocation12 + $0xac0] sm:$0xff]
        %v3609 = vld [vmem:[#allocation12 + $0xac8] sm:$0xff]
        %v3610 = vld [vmem:[#allocation12 + $0xad0] sm:$0xf]
        %v3611 = vld [vmem:[#allocation12 + $0xad4] sm:$0xff]
        %v3612 = vld [vmem:[#allocation12 + $0xadc] sm:$0xff]
        %v3613 = vld [vmem:[#allocation12 + $0xae4] sm:$0xff]
        %v3614 = vld [vmem:[#allocation12 + $0xaec] sm:$0xf]
        %v3615 = vld [vmem:[#allocation12 + $0xaf0] sm:$0xff]
        %v3616 = vld [vmem:[#allocation12 + $0xaf8] sm:$0xff]
        %v3617 = vld [vmem:[#allocation12 + $0xb00] sm:$0xff]
        %v3618 = vld [vmem:[#allocation12 + $0xb08] sm:$0xf]
        %v3619 = vld [vmem:[#allocation12 + $0xb0c] sm:$0xff]
        %v3620 = vld [vmem:[#allocation12 + $0xb14] sm:$0xff]
        %v3621 = vld [vmem:[#allocation12 + $0xb1c] sm:$0xff]
        %v3622 = vld [vmem:[#allocation12 + $0xb24] sm:$0xf]
        %v3623 = vld [vmem:[#allocation12 + $0xb28] sm:$0xff]
        %v3624 = vld [vmem:[#allocation12 + $0xb30] sm:$0xff]
        %v3625 = vld [vmem:[#allocation12 + $0xb38] sm:$0xff]
        %v3626 = vld [vmem:[#allocation12 + $0xb40] sm:$0xf]
        %v3627 = vld [vmem:[#allocation12 + $0xb44] sm:$0xff]
        %v3628 = vld [vmem:[#allocation12 + $0xb4c] sm:$0xff]
        %v3629 = vld [vmem:[#allocation12 + $0xb54] sm:$0xff]
        %v3630 = vld [vmem:[#allocation12 + $0xb5c] sm:$0xf]
        %v3631 = vld [vmem:[#allocation12 + $0xb60] sm:$0xff]
        %v3632 = vld [vmem:[#allocation12 + $0xb68] sm:$0xff]
        %v3633 = vld [vmem:[#allocation12 + $0xb70] sm:$0xff]
        %v3634 = vld [vmem:[#allocation12 + $0xb78] sm:$0xf]
        %v3635 = vld [vmem:[#allocation12 + $0xb7c] sm:$0xff]
        %v3636 = vld [vmem:[#allocation12 + $0xb84] sm:$0xff]
        %v3637 = vld [vmem:[#allocation12 + $0xb8c] sm:$0xff]
        %v3638 = vld [vmem:[#allocation12 + $0xb94] sm:$0xf]
        %v3639 = vld [vmem:[#allocation12 + $0xb98] sm:$0xff]
        %v3640 = vld [vmem:[#allocation12 + $0xba0] sm:$0xff]
        %v3641 = vld [vmem:[#allocation12 + $0xba8] sm:$0xff]
        %v3642 = vld [vmem:[#allocation12 + $0xbb0] sm:$0xf]
        %v3643 = vld [vmem:[#allocation12 + $0xbb4] sm:$0xff]
        %v3644 = vld [vmem:[#allocation12 + $0xbbc] sm:$0xff]
        %v3645 = vld [vmem:[#allocation12 + $0xbc4] sm:$0xff]
        %v3646 = vld [vmem:[#allocation12 + $0xbcc] sm:$0xf]
        %v3647 = vld [vmem:[#allocation12 + $0xbd0] sm:$0xff]
        %v3648 = vld [vmem:[#allocation12 + $0xbd8] sm:$0xff]
        %v3649 = vld [vmem:[#allocation12 + $0xbe0] sm:$0xff]
        %v3650 = vld [vmem:[#allocation12 + $0xbe8] sm:$0xf]
        %v3651 = vld [vmem:[#allocation12 + $0xbec] sm:$0xff]
        %v3652 = vld [vmem:[#allocation12 + $0xbf4] sm:$0xff]
        %v3653 = vld [vmem:[#allocation12 + $0xbfc] sm:$0xff]
        %v3654 = vld [vmem:[#allocation12 + $0xc04] sm:$0xf]
        %v3655 = vld [vmem:[#allocation12 + $0xc08] sm:$0xff]
        %v3656 = vld [vmem:[#allocation12 + $0xc10] sm:$0xff]
        %v3657 = vld [vmem:[#allocation12 + $0xc18] sm:$0xff]
        %v3658 = vld [vmem:[#allocation12 + $0xc20] sm:$0xf]
        %v3659 = vld [vmem:[#allocation12 + $0xc24] sm:$0xff]
        %v3660 = vld [vmem:[#allocation12 + $0xc2c] sm:$0xff]
        %v3661 = vld [vmem:[#allocation12 + $0xc34] sm:$0xff]
        %v3662 = vld [vmem:[#allocation12 + $0xc3c] sm:$0xf]
        %v3663 = vld [vmem:[#allocation12 + $0xc40] sm:$0xff]
        %v3664 = vld [vmem:[#allocation12 + $0xc48] sm:$0xff]
        %v3665 = vld [vmem:[#allocation12 + $0xc50] sm:$0xff]
        %v3666 = vld [vmem:[#allocation12 + $0xc58] sm:$0xf]
        %v3667 = vld [vmem:[#allocation12 + $0xc5c] sm:$0xff]
        %v3668 = vld [vmem:[#allocation12 + $0xc64] sm:$0xff]
        %v3669 = vld [vmem:[#allocation12 + $0xc6c] sm:$0xff]
        %v3670 = vld [vmem:[#allocation12 + $0xc74] sm:$0xf]
        %v3671 = vld [vmem:[#allocation12 + $0xc78] sm:$0xff]
        %v3672 = vld [vmem:[#allocation12 + $0xc80] sm:$0xff]
        %v3673 = vld [vmem:[#allocation12 + $0xc88] sm:$0xff]
        %v3674 = vld [vmem:[#allocation12 + $0xc90] sm:$0xf]
        %v3675 = vld [vmem:[#allocation12 + $0xc94] sm:$0xff]
        %v3676 = vld [vmem:[#allocation12 + $0xc9c] sm:$0xff]
        %v3677 = vld [vmem:[#allocation12 + $0xca4] sm:$0xff]
        %v3678 = vld [vmem:[#allocation12 + $0xcac] sm:$0xf]
        %v3679 = vld [vmem:[#allocation12 + $0xcb0] sm:$0xff]
        %v3680 = vld [vmem:[#allocation12 + $0xcb8] sm:$0xff]
        %v3681 = vld [vmem:[#allocation12 + $0xcc0] sm:$0xff]
        %v3682 = vld [vmem:[#allocation12 + $0xcc8] sm:$0xf]
        %v3683 = vld [vmem:[#allocation12 + $0xccc] sm:$0xff]
        %v3684 = vld [vmem:[#allocation12 + $0xcd4] sm:$0xff]
        %v3685 = vld [vmem:[#allocation12 + $0xcdc] sm:$0xff]
        %v3686 = vld [vmem:[#allocation12 + $0xce4] sm:$0xf]
        %v3687 = vld [vmem:[#allocation12 + $0xce8] sm:$0xff]
        %v3688 = vld [vmem:[#allocation12 + $0xcf0] sm:$0xff]
        %v3689 = vld [vmem:[#allocation12 + $0xcf8] sm:$0xff]
        %v3690 = vld [vmem:[#allocation12 + $0xd00] sm:$0xf]
        %v3691 = vld [vmem:[#allocation12 + $0xd04] sm:$0xff]
        %v3692 = vld [vmem:[#allocation12 + $0xd0c] sm:$0xff]
        %v3693 = vld [vmem:[#allocation12 + $0xd14] sm:$0xff]
        %v3694 = vld [vmem:[#allocation12 + $0xd1c] sm:$0xf]
        %v3695 = vld [vmem:[#allocation12 + $0xd20] sm:$0xff]
        %v3696 = vld [vmem:[#allocation12 + $0xd28] sm:$0xff]
        %v3697 = vld [vmem:[#allocation12 + $0xd30] sm:$0xff]
        %v3698 = vld [vmem:[#allocation12 + $0xd38] sm:$0xf]
        %v3699 = vld [vmem:[#allocation12 + $0xd3c] sm:$0xff]
        %v3700 = vld [vmem:[#allocation12 + $0xd44] sm:$0xff]
        %v3701 = vld [vmem:[#allocation12 + $0xd4c] sm:$0xff]
        %v3702 = vld [vmem:[#allocation12 + $0xd54] sm:$0xf]
        %v3703 = vld [vmem:[#allocation12 + $0xd58] sm:$0xff]
        %v3704 = vld [vmem:[#allocation12 + $0xd60] sm:$0xff]
        %v3705 = vld [vmem:[#allocation12 + $0xd68] sm:$0xff]
        %v3706 = vld [vmem:[#allocation12 + $0xd70] sm:$0xf]
        %v3707 = vld [vmem:[#allocation12 + $0xd74] sm:$0xff]
        %v3708 = vld [vmem:[#allocation12 + $0xd7c] sm:$0xff]
        %v3709 = vld [vmem:[#allocation12 + $0xd84] sm:$0xff]
        %v3710 = vld [vmem:[#allocation12 + $0xd8c] sm:$0xf]
        %v3711 = vld [vmem:[#allocation12 + $0xd90] sm:$0xff]
        %v3712 = vld [vmem:[#allocation12 + $0xd98] sm:$0xff]
        %v3713 = vld [vmem:[#allocation12 + $0xda0] sm:$0xff]
        %v3714 = vld [vmem:[#allocation12 + $0xda8] sm:$0xf]
        %v3715 = vld [vmem:[#allocation12 + $0xdac] sm:$0xff]
        %v3716 = vld [vmem:[#allocation12 + $0xdb4] sm:$0xff]
        %v3717 = vld [vmem:[#allocation12 + $0xdbc] sm:$0xff]
        %v3718 = vld [vmem:[#allocation12 + $0xdc4] sm:$0xf]
        %v3719 = vld [vmem:[#allocation12 + $0xdc8] sm:$0xff]
        %v3720 = vld [vmem:[#allocation12 + $0xdd0] sm:$0xff]
        %v3721 = vld [vmem:[#allocation12 + $0xdd8] sm:$0xff]
        %v3722 = vld [vmem:[#allocation12 + $0xde0] sm:$0xf]
        %v3723 = vld [vmem:[#allocation12 + $0xde4] sm:$0xff]
        %v3724 = vld [vmem:[#allocation12 + $0xdec] sm:$0xff]
        %v3725 = vld [vmem:[#allocation12 + $0xdf4] sm:$0xff]
        %v3726 = vld [vmem:[#allocation12 + $0xdfc] sm:$0xf]
        %v3727 = vld [vmem:[#allocation13] sm:$0xff]
        %v3729 = vlaneseq
        %v3730 = vshrl.u32 %v3729, 7
        %v3731 = vsub.s32 0, %v3730
        %v3732 = vrot.slane %v3727, %v3731
        %v3733 = vlaneseq
        %v3734 = vshrl.u32 %v3733, 7
        %v3735 = vsub.s32 1, %v3734
        %v3736 = vrot.slane %v3727, %v3735
        %v3737 = vlaneseq
        %v3738 = vshrl.u32 %v3737, 7
        %v3739 = vsub.s32 2, %v3738
        %v3740 = vrot.slane %v3727, %v3739
        %v3741 = vlaneseq
        %v3742 = vshrl.u32 %v3741, 7
        %v3743 = vsub.s32 3, %v3742
        %v3744 = vrot.slane %v3727, %v3743
        %v3745 = vlaneseq
        %v3746 = vshrl.u32 %v3745, 7
        %v3747 = vsub.s32 4, %v3746
        %v3748 = vrot.slane %v3727, %v3747
        %v3749 = vlaneseq
        %v3750 = vshrl.u32 %v3749, 7
        %v3751 = vsub.s32 5, %v3750
        %v3752 = vrot.slane %v3727, %v3751
        %v3753 = vlaneseq
        %v3754 = vshrl.u32 %v3753, 7
        %v3755 = vsub.s32 6, %v3754
        %v3756 = vrot.slane %v3727, %v3755
        %v4276 = vunpack.c.l.b16 %v3215
        %v4277 = vunpack.c.h.b16 %v3215
        %v4278 = vunpack.c.l.b16 %v3216
        %v4279 = vunpack.c.h.b16 %v3216
        %v4280 = vunpack.c.l.b16 %v3217
        %v4281 = vunpack.c.h.b16 %v3217
        %v4282 = vunpack.c.l.b16 %v3218
        %v4283 = vunpack.c.l.b16 %v3219
        %v4284 = vunpack.c.h.b16 %v3219
        %v4285 = vunpack.c.l.b16 %v3220
        %v4286 = vunpack.c.h.b16 %v3220
        %v4287 = vunpack.c.l.b16 %v3221
        %v4288 = vunpack.c.h.b16 %v3221
        %v4289 = vunpack.c.l.b16 %v3222
        %v4290 = vunpack.c.l.b16 %v3223
        %v4291 = vunpack.c.h.b16 %v3223
        %v4292 = vunpack.c.l.b16 %v3224
        %v4293 = vunpack.c.h.b16 %v3224
        %v4294 = vunpack.c.l.b16 %v3225
        %v4295 = vunpack.c.h.b16 %v3225
        %v4296 = vunpack.c.l.b16 %v3226
        %v4297 = vunpack.c.l.b16 %v3227
        %v4298 = vunpack.c.h.b16 %v3227
        %v4299 = vunpack.c.l.b16 %v3228
        %v4300 = vunpack.c.h.b16 %v3228
        %v4301 = vunpack.c.l.b16 %v3229
        %v4302 = vunpack.c.h.b16 %v3229
        %v4303 = vunpack.c.l.b16 %v3230
        %v4304 = vunpack.c.l.b16 %v3231
        %v4305 = vunpack.c.h.b16 %v3231
        %v4306 = vunpack.c.l.b16 %v3232
        %v4307 = vunpack.c.h.b16 %v3232
        %v4308 = vunpack.c.l.b16 %v3233
        %v4309 = vunpack.c.h.b16 %v3233
        %v4310 = vunpack.c.l.b16 %v3234
        %v4311 = vunpack.c.l.b16 %v3235
        %v4312 = vunpack.c.h.b16 %v3235
        %v4313 = vunpack.c.l.b16 %v3236
        %v4314 = vunpack.c.h.b16 %v3236
        %v4315 = vunpack.c.l.b16 %v3237
        %v4316 = vunpack.c.h.b16 %v3237
        %v4317 = vunpack.c.l.b16 %v3238
        %v4318 = vunpack.c.l.b16 %v3239
        %v4319 = vunpack.c.h.b16 %v3239
        %v4320 = vunpack.c.l.b16 %v3240
        %v4321 = vunpack.c.h.b16 %v3240
        %v4322 = vunpack.c.l.b16 %v3241
        %v4323 = vunpack.c.h.b16 %v3241
        %v4324 = vunpack.c.l.b16 %v3242
        %v4325 = vunpack.c.l.b16 %v3243
        %v4326 = vunpack.c.h.b16 %v3243
        %v4327 = vunpack.c.l.b16 %v3244
        %v4328 = vunpack.c.h.b16 %v3244
        %v4329 = vunpack.c.l.b16 %v3245
        %v4330 = vunpack.c.h.b16 %v3245
        %v4331 = vunpack.c.l.b16 %v3246
        %v4332 = vunpack.c.l.b16 %v3247
        %v4333 = vunpack.c.h.b16 %v3247
        %v4334 = vunpack.c.l.b16 %v3248
        %v4335 = vunpack.c.h.b16 %v3248
        %v4336 = vunpack.c.l.b16 %v3249
        %v4337 = vunpack.c.h.b16 %v3249
        %v4338 = vunpack.c.l.b16 %v3250
        %v4339 = vunpack.c.l.b16 %v3251
        %v4340 = vunpack.c.h.b16 %v3251
        %v4341 = vunpack.c.l.b16 %v3252
        %v4342 = vunpack.c.h.b16 %v3252
        %v4343 = vunpack.c.l.b16 %v3253
        %v4344 = vunpack.c.h.b16 %v3253
        %v4345 = vunpack.c.l.b16 %v3254
        %v4346 = vunpack.c.l.b16 %v3255
        %v4347 = vunpack.c.h.b16 %v3255
        %v4348 = vunpack.c.l.b16 %v3256
        %v4349 = vunpack.c.h.b16 %v3256
        %v4350 = vunpack.c.l.b16 %v3257
        %v4351 = vunpack.c.h.b16 %v3257
        %v4352 = vunpack.c.l.b16 %v3258
        %v4353 = vunpack.c.l.b16 %v3259
        %v4354 = vunpack.c.h.b16 %v3259
        %v4355 = vunpack.c.l.b16 %v3260
        %v4356 = vunpack.c.h.b16 %v3260
        %v4357 = vunpack.c.l.b16 %v3261
        %v4358 = vunpack.c.h.b16 %v3261
        %v4359 = vunpack.c.l.b16 %v3262
        %v4360 = vunpack.c.l.b16 %v3263
        %v4361 = vunpack.c.h.b16 %v3263
        %v4362 = vunpack.c.l.b16 %v3264
        %v4363 = vunpack.c.h.b16 %v3264
        %v4364 = vunpack.c.l.b16 %v3265
        %v4365 = vunpack.c.h.b16 %v3265
        %v4366 = vunpack.c.l.b16 %v3266
        %v4367 = vunpack.c.l.b16 %v3267
        %v4368 = vunpack.c.h.b16 %v3267
        %v4369 = vunpack.c.l.b16 %v3268
        %v4370 = vunpack.c.h.b16 %v3268
        %v4371 = vunpack.c.l.b16 %v3269
        %v4372 = vunpack.c.h.b16 %v3269
        %v4373 = vunpack.c.l.b16 %v3270
        %v4374 = vunpack.c.l.b16 %v3271
        %v4375 = vunpack.c.h.b16 %v3271
        %v4376 = vunpack.c.l.b16 %v3272
        %v4377 = vunpack.c.h.b16 %v3272
        %v4378 = vunpack.c.l.b16 %v3273
        %v4379 = vunpack.c.h.b16 %v3273
        %v4380 = vunpack.c.l.b16 %v3274
        %v4381 = vunpack.c.l.b16 %v3275
        %v4382 = vunpack.c.h.b16 %v3275
        %v4383 = vunpack.c.l.b16 %v3276
        %v4384 = vunpack.c.h.b16 %v3276
        %v4385 = vunpack.c.l.b16 %v3277
        %v4386 = vunpack.c.h.b16 %v3277
        %v4387 = vunpack.c.l.b16 %v3278
        %v4388 = vunpack.c.l.b16 %v3279
        %v4389 = vunpack.c.h.b16 %v3279
        %v4390 = vunpack.c.l.b16 %v3280
        %v4391 = vunpack.c.h.b16 %v3280
        %v4392 = vunpack.c.l.b16 %v3281
        %v4393 = vunpack.c.h.b16 %v3281
        %v4394 = vunpack.c.l.b16 %v3282
        %v4395 = vunpack.c.l.b16 %v3283
        %v4396 = vunpack.c.h.b16 %v3283
        %v4397 = vunpack.c.l.b16 %v3284
        %v4398 = vunpack.c.h.b16 %v3284
        %v4399 = vunpack.c.l.b16 %v3285
        %v4400 = vunpack.c.h.b16 %v3285
        %v4401 = vunpack.c.l.b16 %v3286
        %v4402 = vunpack.c.l.b16 %v3287
        %v4403 = vunpack.c.h.b16 %v3287
        %v4404 = vunpack.c.l.b16 %v3288
        %v4405 = vunpack.c.h.b16 %v3288
        %v4406 = vunpack.c.l.b16 %v3289
        %v4407 = vunpack.c.h.b16 %v3289
        %v4408 = vunpack.c.l.b16 %v3290
        %v4409 = vunpack.c.l.b16 %v3291
        %v4410 = vunpack.c.h.b16 %v3291
        %v4411 = vunpack.c.l.b16 %v3292
        %v4412 = vunpack.c.h.b16 %v3292
        %v4413 = vunpack.c.l.b16 %v3293
        %v4414 = vunpack.c.h.b16 %v3293
        %v4415 = vunpack.c.l.b16 %v3294
        %v4416 = vunpack.c.l.b16 %v3295
        %v4417 = vunpack.c.h.b16 %v3295
        %v4418 = vunpack.c.l.b16 %v3296
        %v4419 = vunpack.c.h.b16 %v3296
        %v4420 = vunpack.c.l.b16 %v3297
        %v4421 = vunpack.c.h.b16 %v3297
        %v4422 = vunpack.c.l.b16 %v3298
        %v4423 = vunpack.c.l.b16 %v3299
        %v4424 = vunpack.c.h.b16 %v3299
        %v4425 = vunpack.c.l.b16 %v3300
        %v4426 = vunpack.c.h.b16 %v3300
        %v4427 = vunpack.c.l.b16 %v3301
        %v4428 = vunpack.c.h.b16 %v3301
        %v4429 = vunpack.c.l.b16 %v3302
        %v4430 = vunpack.c.l.b16 %v3303
        %v4431 = vunpack.c.h.b16 %v3303
        %v4432 = vunpack.c.l.b16 %v3304
        %v4433 = vunpack.c.h.b16 %v3304
        %v4434 = vunpack.c.l.b16 %v3305
        %v4435 = vunpack.c.h.b16 %v3305
        %v4436 = vunpack.c.l.b16 %v3306
        %v4437 = vunpack.c.l.b16 %v3307
        %v4438 = vunpack.c.h.b16 %v3307
        %v4439 = vunpack.c.l.b16 %v3308
        %v4440 = vunpack.c.h.b16 %v3308
        %v4441 = vunpack.c.l.b16 %v3309
        %v4442 = vunpack.c.h.b16 %v3309
        %v4443 = vunpack.c.l.b16 %v3310
        %v4444 = vunpack.c.l.b16 %v3311
        %v4445 = vunpack.c.h.b16 %v3311
        %v4446 = vunpack.c.l.b16 %v3312
        %v4447 = vunpack.c.h.b16 %v3312
        %v4448 = vunpack.c.l.b16 %v3313
        %v4449 = vunpack.c.h.b16 %v3313
        %v4450 = vunpack.c.l.b16 %v3314
        %v4451 = vunpack.c.l.b16 %v3315
        %v4452 = vunpack.c.h.b16 %v3315
        %v4453 = vunpack.c.l.b16 %v3316
        %v4454 = vunpack.c.h.b16 %v3316
        %v4455 = vunpack.c.l.b16 %v3317
        %v4456 = vunpack.c.h.b16 %v3317
        %v4457 = vunpack.c.l.b16 %v3318
        %v4458 = vunpack.c.l.b16 %v3319
        %v4459 = vunpack.c.h.b16 %v3319
        %v4460 = vunpack.c.l.b16 %v3320
        %v4461 = vunpack.c.h.b16 %v3320
        %v4462 = vunpack.c.l.b16 %v3321
        %v4463 = vunpack.c.h.b16 %v3321
        %v4464 = vunpack.c.l.b16 %v3322
        %v4465 = vunpack.c.l.b16 %v3323
        %v4466 = vunpack.c.h.b16 %v3323
        %v4467 = vunpack.c.l.b16 %v3324
        %v4468 = vunpack.c.h.b16 %v3324
        %v4469 = vunpack.c.l.b16 %v3325
        %v4470 = vunpack.c.h.b16 %v3325
        %v4471 = vunpack.c.l.b16 %v3326
        %v4472 = vunpack.c.l.b16 %v3327
        %v4473 = vunpack.c.h.b16 %v3327
        %v4474 = vunpack.c.l.b16 %v3328
        %v4475 = vunpack.c.h.b16 %v3328
        %v4476 = vunpack.c.l.b16 %v3329
        %v4477 = vunpack.c.h.b16 %v3329
        %v4478 = vunpack.c.l.b16 %v3330
        %v4479 = vunpack.c.l.b16 %v3331
        %v4480 = vunpack.c.h.b16 %v3331
        %v4481 = vunpack.c.l.b16 %v3332
        %v4482 = vunpack.c.h.b16 %v3332
        %v4483 = vunpack.c.l.b16 %v3333
        %v4484 = vunpack.c.h.b16 %v3333
        %v4485 = vunpack.c.l.b16 %v3334
        %v4486 = vunpack.c.l.b16 %v3335
        %v4487 = vunpack.c.h.b16 %v3335
        %v4488 = vunpack.c.l.b16 %v3336
        %v4489 = vunpack.c.h.b16 %v3336
        %v4490 = vunpack.c.l.b16 %v3337
        %v4491 = vunpack.c.h.b16 %v3337
        %v4492 = vunpack.c.l.b16 %v3338
        %v4493 = vunpack.c.l.b16 %v3339
        %v4494 = vunpack.c.h.b16 %v3339
        %v4495 = vunpack.c.l.b16 %v3340
        %v4496 = vunpack.c.h.b16 %v3340
        %v4497 = vunpack.c.l.b16 %v3341
        %v4498 = vunpack.c.h.b16 %v3341
        %v4499 = vunpack.c.l.b16 %v3342
        %v4500 = vunpack.c.l.b16 %v3343
        %v4501 = vunpack.c.h.b16 %v3343
        %v4502 = vunpack.c.l.b16 %v3344
        %v4503 = vunpack.c.h.b16 %v3344
        %v4504 = vunpack.c.l.b16 %v3345
        %v4505 = vunpack.c.h.b16 %v3345
        %v4506 = vunpack.c.l.b16 %v3346
        %v4507 = vunpack.c.l.b16 %v3347
        %v4508 = vunpack.c.h.b16 %v3347
        %v4509 = vunpack.c.l.b16 %v3348
        %v4510 = vunpack.c.h.b16 %v3348
        %v4511 = vunpack.c.l.b16 %v3349
        %v4512 = vunpack.c.h.b16 %v3349
        %v4513 = vunpack.c.l.b16 %v3350
        %v4514 = vunpack.c.l.b16 %v3351
        %v4515 = vunpack.c.h.b16 %v3351
        %v4516 = vunpack.c.l.b16 %v3352
        %v4517 = vunpack.c.h.b16 %v3352
        %v4518 = vunpack.c.l.b16 %v3353
        %v4519 = vunpack.c.h.b16 %v3353
        %v4520 = vunpack.c.l.b16 %v3354
        %v4521 = vunpack.c.l.b16 %v3355
        %v4522 = vunpack.c.h.b16 %v3355
        %v4523 = vunpack.c.l.b16 %v3356
        %v4524 = vunpack.c.h.b16 %v3356
        %v4525 = vunpack.c.l.b16 %v3357
        %v4526 = vunpack.c.h.b16 %v3357
        %v4527 = vunpack.c.l.b16 %v3358
        %v4528 = vunpack.c.l.b16 %v3359
        %v4529 = vunpack.c.h.b16 %v3359
        %v4530 = vunpack.c.l.b16 %v3360
        %v4531 = vunpack.c.h.b16 %v3360
        %v4532 = vunpack.c.l.b16 %v3361
        %v4533 = vunpack.c.h.b16 %v3361
        %v4534 = vunpack.c.l.b16 %v3362
        %v4535 = vunpack.c.l.b16 %v3363
        %v4536 = vunpack.c.h.b16 %v3363
        %v4537 = vunpack.c.l.b16 %v3364
        %v4538 = vunpack.c.h.b16 %v3364
        %v4539 = vunpack.c.l.b16 %v3365
        %v4540 = vunpack.c.h.b16 %v3365
        %v4541 = vunpack.c.l.b16 %v3366
        %v4542 = vunpack.c.l.b16 %v3367
        %v4543 = vunpack.c.h.b16 %v3367
        %v4544 = vunpack.c.l.b16 %v3368
        %v4545 = vunpack.c.h.b16 %v3368
        %v4546 = vunpack.c.l.b16 %v3369
        %v4547 = vunpack.c.h.b16 %v3369
        %v4548 = vunpack.c.l.b16 %v3370
        %v4549 = vunpack.c.l.b16 %v3371
        %v4550 = vunpack.c.h.b16 %v3371
        %v4551 = vunpack.c.l.b16 %v3372
        %v4552 = vunpack.c.h.b16 %v3372
        %v4553 = vunpack.c.l.b16 %v3373
        %v4554 = vunpack.c.h.b16 %v3373
        %v4555 = vunpack.c.l.b16 %v3374
        %v4556 = vunpack.c.l.b16 %v3375
        %v4557 = vunpack.c.h.b16 %v3375
        %v4558 = vunpack.c.l.b16 %v3376
        %v4559 = vunpack.c.h.b16 %v3376
        %v4560 = vunpack.c.l.b16 %v3377
        %v4561 = vunpack.c.h.b16 %v3377
        %v4562 = vunpack.c.l.b16 %v3378
        %v4563 = vunpack.c.l.b16 %v3379
        %v4564 = vunpack.c.h.b16 %v3379
        %v4565 = vunpack.c.l.b16 %v3380
        %v4566 = vunpack.c.h.b16 %v3380
        %v4567 = vunpack.c.l.b16 %v3381
        %v4568 = vunpack.c.h.b16 %v3381
        %v4569 = vunpack.c.l.b16 %v3382
        %v4570 = vunpack.c.l.b16 %v3383
        %v4571 = vunpack.c.h.b16 %v3383
        %v4572 = vunpack.c.l.b16 %v3384
        %v4573 = vunpack.c.h.b16 %v3384
        %v4574 = vunpack.c.l.b16 %v3385
        %v4575 = vunpack.c.h.b16 %v3385
        %v4576 = vunpack.c.l.b16 %v3386
        %v4577 = vunpack.c.l.b16 %v3387
        %v4578 = vunpack.c.h.b16 %v3387
        %v4579 = vunpack.c.l.b16 %v3388
        %v4580 = vunpack.c.h.b16 %v3388
        %v4581 = vunpack.c.l.b16 %v3389
        %v4582 = vunpack.c.h.b16 %v3389
        %v4583 = vunpack.c.l.b16 %v3390
        %v4584 = vunpack.c.l.b16 %v3391
        %v4585 = vunpack.c.h.b16 %v3391
        %v4586 = vunpack.c.l.b16 %v3392
        %v4587 = vunpack.c.h.b16 %v3392
        %v4588 = vunpack.c.l.b16 %v3393
        %v4589 = vunpack.c.h.b16 %v3393
        %v4590 = vunpack.c.l.b16 %v3394
        %v4591 = vunpack.c.l.b16 %v3395
        %v4592 = vunpack.c.h.b16 %v3395
        %v4593 = vunpack.c.l.b16 %v3396
        %v4594 = vunpack.c.h.b16 %v3396
        %v4595 = vunpack.c.l.b16 %v3397
        %v4596 = vunpack.c.h.b16 %v3397
        %v4597 = vunpack.c.l.b16 %v3398
        %v4598 = vunpack.c.l.b16 %v3399
        %v4599 = vunpack.c.h.b16 %v3399
        %v4600 = vunpack.c.l.b16 %v3400
        %v4601 = vunpack.c.h.b16 %v3400
        %v4602 = vunpack.c.l.b16 %v3401
        %v4603 = vunpack.c.h.b16 %v3401
        %v4604 = vunpack.c.l.b16 %v3402
        %v4605 = vunpack.c.l.b16 %v3403
        %v4606 = vunpack.c.h.b16 %v3403
        %v4607 = vunpack.c.l.b16 %v3404
        %v4608 = vunpack.c.h.b16 %v3404
        %v4609 = vunpack.c.l.b16 %v3405
        %v4610 = vunpack.c.h.b16 %v3405
        %v4611 = vunpack.c.l.b16 %v3406
        %v4612 = vunpack.c.l.b16 %v3407
        %v4613 = vunpack.c.h.b16 %v3407
        %v4614 = vunpack.c.l.b16 %v3408
        %v4615 = vunpack.c.h.b16 %v3408
        %v4616 = vunpack.c.l.b16 %v3409
        %v4617 = vunpack.c.h.b16 %v3409
        %v4618 = vunpack.c.l.b16 %v3410
        %v4619 = vunpack.c.l.b16 %v3411
        %v4620 = vunpack.c.h.b16 %v3411
        %v4621 = vunpack.c.l.b16 %v3412
        %v4622 = vunpack.c.h.b16 %v3412
        %v4623 = vunpack.c.l.b16 %v3413
        %v4624 = vunpack.c.h.b16 %v3413
        %v4625 = vunpack.c.l.b16 %v3414
        %v4626 = vunpack.c.l.b16 %v3415
        %v4627 = vunpack.c.h.b16 %v3415
        %v4628 = vunpack.c.l.b16 %v3416
        %v4629 = vunpack.c.h.b16 %v3416
        %v4630 = vunpack.c.l.b16 %v3417
        %v4631 = vunpack.c.h.b16 %v3417
        %v4632 = vunpack.c.l.b16 %v3418
        %v4633 = vunpack.c.l.b16 %v3419
        %v4634 = vunpack.c.h.b16 %v3419
        %v4635 = vunpack.c.l.b16 %v3420
        %v4636 = vunpack.c.h.b16 %v3420
        %v4637 = vunpack.c.l.b16 %v3421
        %v4638 = vunpack.c.h.b16 %v3421
        %v4639 = vunpack.c.l.b16 %v3422
        %v4640 = vunpack.c.l.b16 %v3423
        %v4641 = vunpack.c.h.b16 %v3423
        %v4642 = vunpack.c.l.b16 %v3424
        %v4643 = vunpack.c.h.b16 %v3424
        %v4644 = vunpack.c.l.b16 %v3425
        %v4645 = vunpack.c.h.b16 %v3425
        %v4646 = vunpack.c.l.b16 %v3426
        %v4647 = vunpack.c.l.b16 %v3427
        %v4648 = vunpack.c.h.b16 %v3427
        %v4649 = vunpack.c.l.b16 %v3428
        %v4650 = vunpack.c.h.b16 %v3428
        %v4651 = vunpack.c.l.b16 %v3429
        %v4652 = vunpack.c.h.b16 %v3429
        %v4653 = vunpack.c.l.b16 %v3430
        %v4654 = vunpack.c.l.b16 %v3431
        %v4655 = vunpack.c.h.b16 %v3431
        %v4656 = vunpack.c.l.b16 %v3432
        %v4657 = vunpack.c.h.b16 %v3432
        %v4658 = vunpack.c.l.b16 %v3433
        %v4659 = vunpack.c.h.b16 %v3433
        %v4660 = vunpack.c.l.b16 %v3434
        %v4661 = vunpack.c.l.b16 %v3435
        %v4662 = vunpack.c.h.b16 %v3435
        %v4663 = vunpack.c.l.b16 %v3436
        %v4664 = vunpack.c.h.b16 %v3436
        %v4665 = vunpack.c.l.b16 %v3437
        %v4666 = vunpack.c.h.b16 %v3437
        %v4667 = vunpack.c.l.b16 %v3438
        %v4668 = vunpack.c.l.b16 %v3439
        %v4669 = vunpack.c.h.b16 %v3439
        %v4670 = vunpack.c.l.b16 %v3440
        %v4671 = vunpack.c.h.b16 %v3440
        %v4672 = vunpack.c.l.b16 %v3441
        %v4673 = vunpack.c.h.b16 %v3441
        %v4674 = vunpack.c.l.b16 %v3442
        %v4675 = vunpack.c.l.b16 %v3443
        %v4676 = vunpack.c.h.b16 %v3443
        %v4677 = vunpack.c.l.b16 %v3444
        %v4678 = vunpack.c.h.b16 %v3444
        %v4679 = vunpack.c.l.b16 %v3445
        %v4680 = vunpack.c.h.b16 %v3445
        %v4681 = vunpack.c.l.b16 %v3446
        %v4682 = vunpack.c.l.b16 %v3447
        %v4683 = vunpack.c.h.b16 %v3447
        %v4684 = vunpack.c.l.b16 %v3448
        %v4685 = vunpack.c.h.b16 %v3448
        %v4686 = vunpack.c.l.b16 %v3449
        %v4687 = vunpack.c.h.b16 %v3449
        %v4688 = vunpack.c.l.b16 %v3450
        %v4689 = vunpack.c.l.b16 %v3451
        %v4690 = vunpack.c.h.b16 %v3451
        %v4691 = vunpack.c.l.b16 %v3452
        %v4692 = vunpack.c.h.b16 %v3452
        %v4693 = vunpack.c.l.b16 %v3453
        %v4694 = vunpack.c.h.b16 %v3453
        %v4695 = vunpack.c.l.b16 %v3454
        %v4696 = vunpack.c.l.b16 %v3455
        %v4697 = vunpack.c.h.b16 %v3455
        %v4698 = vunpack.c.l.b16 %v3456
        %v4699 = vunpack.c.h.b16 %v3456
        %v4700 = vunpack.c.l.b16 %v3457
        %v4701 = vunpack.c.h.b16 %v3457
        %v4702 = vunpack.c.l.b16 %v3458
        %v4703 = vunpack.c.l.b16 %v3459
        %v4704 = vunpack.c.h.b16 %v3459
        %v4705 = vunpack.c.l.b16 %v3460
        %v4706 = vunpack.c.h.b16 %v3460
        %v4707 = vunpack.c.l.b16 %v3461
        %v4708 = vunpack.c.h.b16 %v3461
        %v4709 = vunpack.c.l.b16 %v3462
        %v4710 = vunpack.c.l.b16 %v3463
        %v4711 = vunpack.c.h.b16 %v3463
        %v4712 = vunpack.c.l.b16 %v3464
        %v4713 = vunpack.c.h.b16 %v3464
        %v4714 = vunpack.c.l.b16 %v3465
        %v4715 = vunpack.c.h.b16 %v3465
        %v4716 = vunpack.c.l.b16 %v3466
        %v4717 = vunpack.c.l.b16 %v3467
        %v4718 = vunpack.c.h.b16 %v3467
        %v4719 = vunpack.c.l.b16 %v3468
        %v4720 = vunpack.c.h.b16 %v3468
        %v4721 = vunpack.c.l.b16 %v3469
        %v4722 = vunpack.c.h.b16 %v3469
        %v4723 = vunpack.c.l.b16 %v3470
        %v4724 = vunpack.c.l.b16 %v3471
        %v4725 = vunpack.c.h.b16 %v3471
        %v4726 = vunpack.c.l.b16 %v3472
        %v4727 = vunpack.c.h.b16 %v3472
        %v4728 = vunpack.c.l.b16 %v3473
        %v4729 = vunpack.c.h.b16 %v3473
        %v4730 = vunpack.c.l.b16 %v3474
        %v4731 = vunpack.c.l.b16 %v3475
        %v4732 = vunpack.c.h.b16 %v3475
        %v4733 = vunpack.c.l.b16 %v3476
        %v4734 = vunpack.c.h.b16 %v3476
        %v4735 = vunpack.c.l.b16 %v3477
        %v4736 = vunpack.c.h.b16 %v3477
        %v4737 = vunpack.c.l.b16 %v3478
        %v4738 = vunpack.c.l.b16 %v3479
        %v4739 = vunpack.c.h.b16 %v3479
        %v4740 = vunpack.c.l.b16 %v3480
        %v4741 = vunpack.c.h.b16 %v3480
        %v4742 = vunpack.c.l.b16 %v3481
        %v4743 = vunpack.c.h.b16 %v3481
        %v4744 = vunpack.c.l.b16 %v3482
        %v4745 = vunpack.c.l.b16 %v3483
        %v4746 = vunpack.c.h.b16 %v3483
        %v4747 = vunpack.c.l.b16 %v3484
        %v4748 = vunpack.c.h.b16 %v3484
        %v4749 = vunpack.c.l.b16 %v3485
        %v4750 = vunpack.c.h.b16 %v3485
        %v4751 = vunpack.c.l.b16 %v3486
        %v4752 = vunpack.c.l.b16 %v3487
        %v4753 = vunpack.c.h.b16 %v3487
        %v4754 = vunpack.c.l.b16 %v3488
        %v4755 = vunpack.c.h.b16 %v3488
        %v4756 = vunpack.c.l.b16 %v3489
        %v4757 = vunpack.c.h.b16 %v3489
        %v4758 = vunpack.c.l.b16 %v3490
        %v4759 = vunpack.c.l.b16 %v3491
        %v4760 = vunpack.c.h.b16 %v3491
        %v4761 = vunpack.c.l.b16 %v3492
        %v4762 = vunpack.c.h.b16 %v3492
        %v4763 = vunpack.c.l.b16 %v3493
        %v4764 = vunpack.c.h.b16 %v3493
        %v4765 = vunpack.c.l.b16 %v3494
        %v4766 = vunpack.c.l.b16 %v3495
        %v4767 = vunpack.c.h.b16 %v3495
        %v4768 = vunpack.c.l.b16 %v3496
        %v4769 = vunpack.c.h.b16 %v3496
        %v4770 = vunpack.c.l.b16 %v3497
        %v4771 = vunpack.c.h.b16 %v3497
        %v4772 = vunpack.c.l.b16 %v3498
        %v4773 = vunpack.c.l.b16 %v3499
        %v4774 = vunpack.c.h.b16 %v3499
        %v4775 = vunpack.c.l.b16 %v3500
        %v4776 = vunpack.c.h.b16 %v3500
        %v4777 = vunpack.c.l.b16 %v3501
        %v4778 = vunpack.c.h.b16 %v3501
        %v4779 = vunpack.c.l.b16 %v3502
        %v4780 = vunpack.c.l.b16 %v3503
        %v4781 = vunpack.c.h.b16 %v3503
        %v4782 = vunpack.c.l.b16 %v3504
        %v4783 = vunpack.c.h.b16 %v3504
        %v4784 = vunpack.c.l.b16 %v3505
        %v4785 = vunpack.c.h.b16 %v3505
        %v4786 = vunpack.c.l.b16 %v3506
        %v4787 = vunpack.c.l.b16 %v3507
        %v4788 = vunpack.c.h.b16 %v3507
        %v4789 = vunpack.c.l.b16 %v3508
        %v4790 = vunpack.c.h.b16 %v3508
        %v4791 = vunpack.c.l.b16 %v3509
        %v4792 = vunpack.c.h.b16 %v3509
        %v4793 = vunpack.c.l.b16 %v3510
        %v4794 = vunpack.c.l.b16 %v3511
        %v4795 = vunpack.c.h.b16 %v3511
        %v4796 = vunpack.c.l.b16 %v3512
        %v4797 = vunpack.c.h.b16 %v3512
        %v4798 = vunpack.c.l.b16 %v3513
        %v4799 = vunpack.c.h.b16 %v3513
        %v4800 = vunpack.c.l.b16 %v3514
        %v4801 = vunpack.c.l.b16 %v3515
        %v4802 = vunpack.c.h.b16 %v3515
        %v4803 = vunpack.c.l.b16 %v3516
        %v4804 = vunpack.c.h.b16 %v3516
        %v4805 = vunpack.c.l.b16 %v3517
        %v4806 = vunpack.c.h.b16 %v3517
        %v4807 = vunpack.c.l.b16 %v3518
        %v4808 = vunpack.c.l.b16 %v3519
        %v4809 = vunpack.c.h.b16 %v3519
        %v4810 = vunpack.c.l.b16 %v3520
        %v4811 = vunpack.c.h.b16 %v3520
        %v4812 = vunpack.c.l.b16 %v3521
        %v4813 = vunpack.c.h.b16 %v3521
        %v4814 = vunpack.c.l.b16 %v3522
        %v4815 = vunpack.c.l.b16 %v3523
        %v4816 = vunpack.c.h.b16 %v3523
        %v4817 = vunpack.c.l.b16 %v3524
        %v4818 = vunpack.c.h.b16 %v3524
        %v4819 = vunpack.c.l.b16 %v3525
        %v4820 = vunpack.c.h.b16 %v3525
        %v4821 = vunpack.c.l.b16 %v3526
        %v4822 = vunpack.c.l.b16 %v3527
        %v4823 = vunpack.c.h.b16 %v3527
        %v4824 = vunpack.c.l.b16 %v3528
        %v4825 = vunpack.c.h.b16 %v3528
        %v4826 = vunpack.c.l.b16 %v3529
        %v4827 = vunpack.c.h.b16 %v3529
        %v4828 = vunpack.c.l.b16 %v3530
        %v4829 = vunpack.c.l.b16 %v3531
        %v4830 = vunpack.c.h.b16 %v3531
        %v4831 = vunpack.c.l.b16 %v3532
        %v4832 = vunpack.c.h.b16 %v3532
        %v4833 = vunpack.c.l.b16 %v3533
        %v4834 = vunpack.c.h.b16 %v3533
        %v4835 = vunpack.c.l.b16 %v3534
        %v4836 = vunpack.c.l.b16 %v3535
        %v4837 = vunpack.c.h.b16 %v3535
        %v4838 = vunpack.c.l.b16 %v3536
        %v4839 = vunpack.c.h.b16 %v3536
        %v4840 = vunpack.c.l.b16 %v3537
        %v4841 = vunpack.c.h.b16 %v3537
        %v4842 = vunpack.c.l.b16 %v3538
        %v4843 = vunpack.c.l.b16 %v3539
        %v4844 = vunpack.c.h.b16 %v3539
        %v4845 = vunpack.c.l.b16 %v3540
        %v4846 = vunpack.c.h.b16 %v3540
        %v4847 = vunpack.c.l.b16 %v3541
        %v4848 = vunpack.c.h.b16 %v3541
        %v4849 = vunpack.c.l.b16 %v3542
        %v4850 = vunpack.c.l.b16 %v3543
        %v4851 = vunpack.c.h.b16 %v3543
        %v4852 = vunpack.c.l.b16 %v3544
        %v4853 = vunpack.c.h.b16 %v3544
        %v4854 = vunpack.c.l.b16 %v3545
        %v4855 = vunpack.c.h.b16 %v3545
        %v4856 = vunpack.c.l.b16 %v3546
        %v4857 = vunpack.c.l.b16 %v3547
        %v4858 = vunpack.c.h.b16 %v3547
        %v4859 = vunpack.c.l.b16 %v3548
        %v4860 = vunpack.c.h.b16 %v3548
        %v4861 = vunpack.c.l.b16 %v3549
        %v4862 = vunpack.c.h.b16 %v3549
        %v4863 = vunpack.c.l.b16 %v3550
        %v4864 = vunpack.c.l.b16 %v3551
        %v4865 = vunpack.c.h.b16 %v3551
        %v4866 = vunpack.c.l.b16 %v3552
        %v4867 = vunpack.c.h.b16 %v3552
        %v4868 = vunpack.c.l.b16 %v3553
        %v4869 = vunpack.c.h.b16 %v3553
        %v4870 = vunpack.c.l.b16 %v3554
        %v4871 = vunpack.c.l.b16 %v3555
        %v4872 = vunpack.c.h.b16 %v3555
        %v4873 = vunpack.c.l.b16 %v3556
        %v4874 = vunpack.c.h.b16 %v3556
        %v4875 = vunpack.c.l.b16 %v3557
        %v4876 = vunpack.c.h.b16 %v3557
        %v4877 = vunpack.c.l.b16 %v3558
        %v4878 = vunpack.c.l.b16 %v3559
        %v4879 = vunpack.c.h.b16 %v3559
        %v4880 = vunpack.c.l.b16 %v3560
        %v4881 = vunpack.c.h.b16 %v3560
        %v4882 = vunpack.c.l.b16 %v3561
        %v4883 = vunpack.c.h.b16 %v3561
        %v4884 = vunpack.c.l.b16 %v3562
        %v4885 = vunpack.c.l.b16 %v3563
        %v4886 = vunpack.c.h.b16 %v3563
        %v4887 = vunpack.c.l.b16 %v3564
        %v4888 = vunpack.c.h.b16 %v3564
        %v4889 = vunpack.c.l.b16 %v3565
        %v4890 = vunpack.c.h.b16 %v3565
        %v4891 = vunpack.c.l.b16 %v3566
        %v4892 = vunpack.c.l.b16 %v3567
        %v4893 = vunpack.c.h.b16 %v3567
        %v4894 = vunpack.c.l.b16 %v3568
        %v4895 = vunpack.c.h.b16 %v3568
        %v4896 = vunpack.c.l.b16 %v3569
        %v4897 = vunpack.c.h.b16 %v3569
        %v4898 = vunpack.c.l.b16 %v3570
        %v4899 = vunpack.c.l.b16 %v3571
        %v4900 = vunpack.c.h.b16 %v3571
        %v4901 = vunpack.c.l.b16 %v3572
        %v4902 = vunpack.c.h.b16 %v3572
        %v4903 = vunpack.c.l.b16 %v3573
        %v4904 = vunpack.c.h.b16 %v3573
        %v4905 = vunpack.c.l.b16 %v3574
        %v4906 = vunpack.c.l.b16 %v3575
        %v4907 = vunpack.c.h.b16 %v3575
        %v4908 = vunpack.c.l.b16 %v3576
        %v4909 = vunpack.c.h.b16 %v3576
        %v4910 = vunpack.c.l.b16 %v3577
        %v4911 = vunpack.c.h.b16 %v3577
        %v4912 = vunpack.c.l.b16 %v3578
        %v4913 = vunpack.c.l.b16 %v3579
        %v4914 = vunpack.c.h.b16 %v3579
        %v4915 = vunpack.c.l.b16 %v3580
        %v4916 = vunpack.c.h.b16 %v3580
        %v4917 = vunpack.c.l.b16 %v3581
        %v4918 = vunpack.c.h.b16 %v3581
        %v4919 = vunpack.c.l.b16 %v3582
        %v4920 = vunpack.c.l.b16 %v3583
        %v4921 = vunpack.c.h.b16 %v3583
        %v4922 = vunpack.c.l.b16 %v3584
        %v4923 = vunpack.c.h.b16 %v3584
        %v4924 = vunpack.c.l.b16 %v3585
        %v4925 = vunpack.c.h.b16 %v3585
        %v4926 = vunpack.c.l.b16 %v3586
        %v4927 = vunpack.c.l.b16 %v3587
        %v4928 = vunpack.c.h.b16 %v3587
        %v4929 = vunpack.c.l.b16 %v3588
        %v4930 = vunpack.c.h.b16 %v3588
        %v4931 = vunpack.c.l.b16 %v3589
        %v4932 = vunpack.c.h.b16 %v3589
        %v4933 = vunpack.c.l.b16 %v3590
        %v4934 = vunpack.c.l.b16 %v3591
        %v4935 = vunpack.c.h.b16 %v3591
        %v4936 = vunpack.c.l.b16 %v3592
        %v4937 = vunpack.c.h.b16 %v3592
        %v4938 = vunpack.c.l.b16 %v3593
        %v4939 = vunpack.c.h.b16 %v3593
        %v4940 = vunpack.c.l.b16 %v3594
        %v4941 = vunpack.c.l.b16 %v3595
        %v4942 = vunpack.c.h.b16 %v3595
        %v4943 = vunpack.c.l.b16 %v3596
        %v4944 = vunpack.c.h.b16 %v3596
        %v4945 = vunpack.c.l.b16 %v3597
        %v4946 = vunpack.c.h.b16 %v3597
        %v4947 = vunpack.c.l.b16 %v3598
        %v4948 = vunpack.c.l.b16 %v3599
        %v4949 = vunpack.c.h.b16 %v3599
        %v4950 = vunpack.c.l.b16 %v3600
        %v4951 = vunpack.c.h.b16 %v3600
        %v4952 = vunpack.c.l.b16 %v3601
        %v4953 = vunpack.c.h.b16 %v3601
        %v4954 = vunpack.c.l.b16 %v3602
        %v4955 = vunpack.c.l.b16 %v3603
        %v4956 = vunpack.c.h.b16 %v3603
        %v4957 = vunpack.c.l.b16 %v3604
        %v4958 = vunpack.c.h.b16 %v3604
        %v4959 = vunpack.c.l.b16 %v3605
        %v4960 = vunpack.c.h.b16 %v3605
        %v4961 = vunpack.c.l.b16 %v3606
        %v4962 = vunpack.c.l.b16 %v3607
        %v4963 = vunpack.c.h.b16 %v3607
        %v4964 = vunpack.c.l.b16 %v3608
        %v4965 = vunpack.c.h.b16 %v3608
        %v4966 = vunpack.c.l.b16 %v3609
        %v4967 = vunpack.c.h.b16 %v3609
        %v4968 = vunpack.c.l.b16 %v3610
        %v4969 = vunpack.c.l.b16 %v3611
        %v4970 = vunpack.c.h.b16 %v3611
        %v4971 = vunpack.c.l.b16 %v3612
        %v4972 = vunpack.c.h.b16 %v3612
        %v4973 = vunpack.c.l.b16 %v3613
        %v4974 = vunpack.c.h.b16 %v3613
        %v4975 = vunpack.c.l.b16 %v3614
        %v4976 = vunpack.c.l.b16 %v3615
        %v4977 = vunpack.c.h.b16 %v3615
        %v4978 = vunpack.c.l.b16 %v3616
        %v4979 = vunpack.c.h.b16 %v3616
        %v4980 = vunpack.c.l.b16 %v3617
        %v4981 = vunpack.c.h.b16 %v3617
        %v4982 = vunpack.c.l.b16 %v3618
        %v4983 = vunpack.c.l.b16 %v3619
        %v4984 = vunpack.c.h.b16 %v3619
        %v4985 = vunpack.c.l.b16 %v3620
        %v4986 = vunpack.c.h.b16 %v3620
        %v4987 = vunpack.c.l.b16 %v3621
        %v4988 = vunpack.c.h.b16 %v3621
        %v4989 = vunpack.c.l.b16 %v3622
        %v4990 = vunpack.c.l.b16 %v3623
        %v4991 = vunpack.c.h.b16 %v3623
        %v4992 = vunpack.c.l.b16 %v3624
        %v4993 = vunpack.c.h.b16 %v3624
        %v4994 = vunpack.c.l.b16 %v3625
        %v4995 = vunpack.c.h.b16 %v3625
        %v4996 = vunpack.c.l.b16 %v3626
        %v4997 = vunpack.c.l.b16 %v3627
        %v4998 = vunpack.c.h.b16 %v3627
        %v4999 = vunpack.c.l.b16 %v3628
        %v5000 = vunpack.c.h.b16 %v3628
        %v5001 = vunpack.c.l.b16 %v3629
        %v5002 = vunpack.c.h.b16 %v3629
        %v5003 = vunpack.c.l.b16 %v3630
        %v5004 = vunpack.c.l.b16 %v3631
        %v5005 = vunpack.c.h.b16 %v3631
        %v5006 = vunpack.c.l.b16 %v3632
        %v5007 = vunpack.c.h.b16 %v3632
        %v5008 = vunpack.c.l.b16 %v3633
        %v5009 = vunpack.c.h.b16 %v3633
        %v5010 = vunpack.c.l.b16 %v3634
        %v5011 = vunpack.c.l.b16 %v3635
        %v5012 = vunpack.c.h.b16 %v3635
        %v5013 = vunpack.c.l.b16 %v3636
        %v5014 = vunpack.c.h.b16 %v3636
        %v5015 = vunpack.c.l.b16 %v3637
        %v5016 = vunpack.c.h.b16 %v3637
        %v5017 = vunpack.c.l.b16 %v3638
        %v5018 = vunpack.c.l.b16 %v3639
        %v5019 = vunpack.c.h.b16 %v3639
        %v5020 = vunpack.c.l.b16 %v3640
        %v5021 = vunpack.c.h.b16 %v3640
        %v5022 = vunpack.c.l.b16 %v3641
        %v5023 = vunpack.c.h.b16 %v3641
        %v5024 = vunpack.c.l.b16 %v3642
        %v5025 = vunpack.c.l.b16 %v3643
        %v5026 = vunpack.c.h.b16 %v3643
        %v5027 = vunpack.c.l.b16 %v3644
        %v5028 = vunpack.c.h.b16 %v3644
        %v5029 = vunpack.c.l.b16 %v3645
        %v5030 = vunpack.c.h.b16 %v3645
        %v5031 = vunpack.c.l.b16 %v3646
        %v5032 = vunpack.c.l.b16 %v3647
        %v5033 = vunpack.c.h.b16 %v3647
        %v5034 = vunpack.c.l.b16 %v3648
        %v5035 = vunpack.c.h.b16 %v3648
        %v5036 = vunpack.c.l.b16 %v3649
        %v5037 = vunpack.c.h.b16 %v3649
        %v5038 = vunpack.c.l.b16 %v3650
        %v5039 = vunpack.c.l.b16 %v3651
        %v5040 = vunpack.c.h.b16 %v3651
        %v5041 = vunpack.c.l.b16 %v3652
        %v5042 = vunpack.c.h.b16 %v3652
        %v5043 = vunpack.c.l.b16 %v3653
        %v5044 = vunpack.c.h.b16 %v3653
        %v5045 = vunpack.c.l.b16 %v3654
        %v5046 = vunpack.c.l.b16 %v3655
        %v5047 = vunpack.c.h.b16 %v3655
        %v5048 = vunpack.c.l.b16 %v3656
        %v5049 = vunpack.c.h.b16 %v3656
        %v5050 = vunpack.c.l.b16 %v3657
        %v5051 = vunpack.c.h.b16 %v3657
        %v5052 = vunpack.c.l.b16 %v3658
        %v5053 = vunpack.c.l.b16 %v3659
        %v5054 = vunpack.c.h.b16 %v3659
        %v5055 = vunpack.c.l.b16 %v3660
        %v5056 = vunpack.c.h.b16 %v3660
        %v5057 = vunpack.c.l.b16 %v3661
        %v5058 = vunpack.c.h.b16 %v3661
        %v5059 = vunpack.c.l.b16 %v3662
        %v5060 = vunpack.c.l.b16 %v3663
        %v5061 = vunpack.c.h.b16 %v3663
        %v5062 = vunpack.c.l.b16 %v3664
        %v5063 = vunpack.c.h.b16 %v3664
        %v5064 = vunpack.c.l.b16 %v3665
        %v5065 = vunpack.c.h.b16 %v3665
        %v5066 = vunpack.c.l.b16 %v3666
        %v5067 = vunpack.c.l.b16 %v3667
        %v5068 = vunpack.c.h.b16 %v3667
        %v5069 = vunpack.c.l.b16 %v3668
        %v5070 = vunpack.c.h.b16 %v3668
        %v5071 = vunpack.c.l.b16 %v3669
        %v5072 = vunpack.c.h.b16 %v3669
        %v5073 = vunpack.c.l.b16 %v3670
        %v5074 = vunpack.c.l.b16 %v3671
        %v5075 = vunpack.c.h.b16 %v3671
        %v5076 = vunpack.c.l.b16 %v3672
        %v5077 = vunpack.c.h.b16 %v3672
        %v5078 = vunpack.c.l.b16 %v3673
        %v5079 = vunpack.c.h.b16 %v3673
        %v5080 = vunpack.c.l.b16 %v3674
        %v5081 = vunpack.c.l.b16 %v3675
        %v5082 = vunpack.c.h.b16 %v3675
        %v5083 = vunpack.c.l.b16 %v3676
        %v5084 = vunpack.c.h.b16 %v3676
        %v5085 = vunpack.c.l.b16 %v3677
        %v5086 = vunpack.c.h.b16 %v3677
        %v5087 = vunpack.c.l.b16 %v3678
        %v5088 = vunpack.c.l.b16 %v3679
        %v5089 = vunpack.c.h.b16 %v3679
        %v5090 = vunpack.c.l.b16 %v3680
        %v5091 = vunpack.c.h.b16 %v3680
        %v5092 = vunpack.c.l.b16 %v3681
        %v5093 = vunpack.c.h.b16 %v3681
        %v5094 = vunpack.c.l.b16 %v3682
        %v5095 = vunpack.c.l.b16 %v3683
        %v5096 = vunpack.c.h.b16 %v3683
        %v5097 = vunpack.c.l.b16 %v3684
        %v5098 = vunpack.c.h.b16 %v3684
        %v5099 = vunpack.c.l.b16 %v3685
        %v5100 = vunpack.c.h.b16 %v3685
        %v5101 = vunpack.c.l.b16 %v3686
        %v5102 = vunpack.c.l.b16 %v3687
        %v5103 = vunpack.c.h.b16 %v3687
        %v5104 = vunpack.c.l.b16 %v3688
        %v5105 = vunpack.c.h.b16 %v3688
        %v5106 = vunpack.c.l.b16 %v3689
        %v5107 = vunpack.c.h.b16 %v3689
        %v5108 = vunpack.c.l.b16 %v3690
        %v5109 = vunpack.c.l.b16 %v3691
        %v5110 = vunpack.c.h.b16 %v3691
        %v5111 = vunpack.c.l.b16 %v3692
        %v5112 = vunpack.c.h.b16 %v3692
        %v5113 = vunpack.c.l.b16 %v3693
        %v5114 = vunpack.c.h.b16 %v3693
        %v5115 = vunpack.c.l.b16 %v3694
        %v5116 = vunpack.c.l.b16 %v3695
        %v5117 = vunpack.c.h.b16 %v3695
        %v5118 = vunpack.c.l.b16 %v3696
        %v5119 = vunpack.c.h.b16 %v3696
        %v5120 = vunpack.c.l.b16 %v3697
        %v5121 = vunpack.c.h.b16 %v3697
        %v5122 = vunpack.c.l.b16 %v3698
        %v5123 = vunpack.c.l.b16 %v3699
        %v5124 = vunpack.c.h.b16 %v3699
        %v5125 = vunpack.c.l.b16 %v3700
        %v5126 = vunpack.c.h.b16 %v3700
        %v5127 = vunpack.c.l.b16 %v3701
        %v5128 = vunpack.c.h.b16 %v3701
        %v5129 = vunpack.c.l.b16 %v3702
        %v5130 = vunpack.c.l.b16 %v3703
        %v5131 = vunpack.c.h.b16 %v3703
        %v5132 = vunpack.c.l.b16 %v3704
        %v5133 = vunpack.c.h.b16 %v3704
        %v5134 = vunpack.c.l.b16 %v3705
        %v5135 = vunpack.c.h.b16 %v3705
        %v5136 = vunpack.c.l.b16 %v3706
        %v5137 = vunpack.c.l.b16 %v3707
        %v5138 = vunpack.c.h.b16 %v3707
        %v5139 = vunpack.c.l.b16 %v3708
        %v5140 = vunpack.c.h.b16 %v3708
        %v5141 = vunpack.c.l.b16 %v3709
        %v5142 = vunpack.c.h.b16 %v3709
        %v5143 = vunpack.c.l.b16 %v3710
        %v5144 = vunpack.c.l.b16 %v3711
        %v5145 = vunpack.c.h.b16 %v3711
        %v5146 = vunpack.c.l.b16 %v3712
        %v5147 = vunpack.c.h.b16 %v3712
        %v5148 = vunpack.c.l.b16 %v3713
        %v5149 = vunpack.c.h.b16 %v3713
        %v5150 = vunpack.c.l.b16 %v3714
        %v5151 = vunpack.c.l.b16 %v3715
        %v5152 = vunpack.c.h.b16 %v3715
        %v5153 = vunpack.c.l.b16 %v3716
        %v5154 = vunpack.c.h.b16 %v3716
        %v5155 = vunpack.c.l.b16 %v3717
        %v5156 = vunpack.c.h.b16 %v3717
        %v5157 = vunpack.c.l.b16 %v3718
        %v5158 = vunpack.c.l.b16 %v3719
        %v5159 = vunpack.c.h.b16 %v3719
        %v5160 = vunpack.c.l.b16 %v3720
        %v5161 = vunpack.c.h.b16 %v3720
        %v5162 = vunpack.c.l.b16 %v3721
        %v5163 = vunpack.c.h.b16 %v3721
        %v5164 = vunpack.c.l.b16 %v3722
        %v5165 = vunpack.c.l.b16 %v3723
        %v5166 = vunpack.c.h.b16 %v3723
        %v5167 = vunpack.c.l.b16 %v3724
        %v5168 = vunpack.c.h.b16 %v3724
        %v5169 = vunpack.c.l.b16 %v3725
        %v5170 = vunpack.c.h.b16 %v3725
        %v5171 = vunpack.c.l.b16 %v3726
        %v5172 = vpack.c.b16 %v4283, %v4276
        %v5173 = vpack.c.b16 %v4284, %v4277
        %v5174 = vpack.c.b16 %v4285, %v4278
        %v5175 = vpack.c.b16 %v4286, %v4279
        %v5176 = vpack.c.b16 %v4287, %v4280
        %v5177 = vpack.c.b16 %v4288, %v4281
        %v5178 = vpack.c.b16 %v4289, %v4282
        %v5179 = vpack.c.b16 %v4297, %v4290
        %v5180 = vpack.c.b16 %v4298, %v4291
        %v5181 = vpack.c.b16 %v4299, %v4292
        %v5182 = vpack.c.b16 %v4300, %v4293
        %v5183 = vpack.c.b16 %v4301, %v4294
        %v5184 = vpack.c.b16 %v4302, %v4295
        %v5185 = vpack.c.b16 %v4303, %v4296
        %v5186 = vpack.c.b16 %v4311, %v4304
        %v5187 = vpack.c.b16 %v4312, %v4305
        %v5188 = vpack.c.b16 %v4313, %v4306
        %v5189 = vpack.c.b16 %v4314, %v4307
        %v5190 = vpack.c.b16 %v4315, %v4308
        %v5191 = vpack.c.b16 %v4316, %v4309
        %v5192 = vpack.c.b16 %v4317, %v4310
        %v5193 = vpack.c.b16 %v4325, %v4318
        %v5194 = vpack.c.b16 %v4326, %v4319
        %v5195 = vpack.c.b16 %v4327, %v4320
        %v5196 = vpack.c.b16 %v4328, %v4321
        %v5197 = vpack.c.b16 %v4329, %v4322
        %v5198 = vpack.c.b16 %v4330, %v4323
        %v5199 = vpack.c.b16 %v4331, %v4324
        %v5200 = vpack.c.b16 %v4339, %v4332
        %v5201 = vpack.c.b16 %v4340, %v4333
        %v5202 = vpack.c.b16 %v4341, %v4334
        %v5203 = vpack.c.b16 %v4342, %v4335
        %v5204 = vpack.c.b16 %v4343, %v4336
        %v5205 = vpack.c.b16 %v4344, %v4337
        %v5206 = vpack.c.b16 %v4345, %v4338
        %v5207 = vpack.c.b16 %v4353, %v4346
        %v5208 = vpack.c.b16 %v4354, %v4347
        %v5209 = vpack.c.b16 %v4355, %v4348
        %v5210 = vpack.c.b16 %v4356, %v4349
        %v5211 = vpack.c.b16 %v4357, %v4350
        %v5212 = vpack.c.b16 %v4358, %v4351
        %v5213 = vpack.c.b16 %v4359, %v4352
        %v5214 = vpack.c.b16 %v4367, %v4360
        %v5215 = vpack.c.b16 %v4368, %v4361
        %v5216 = vpack.c.b16 %v4369, %v4362
        %v5217 = vpack.c.b16 %v4370, %v4363
        %v5218 = vpack.c.b16 %v4371, %v4364
        %v5219 = vpack.c.b16 %v4372, %v4365
        %v5220 = vpack.c.b16 %v4373, %v4366
        %v5221 = vpack.c.b16 %v4381, %v4374
        %v5222 = vpack.c.b16 %v4382, %v4375
        %v5223 = vpack.c.b16 %v4383, %v4376
        %v5224 = vpack.c.b16 %v4384, %v4377
        %v5225 = vpack.c.b16 %v4385, %v4378
        %v5226 = vpack.c.b16 %v4386, %v4379
        %v5227 = vpack.c.b16 %v4387, %v4380
        %v5228 = vpack.c.b16 %v4395, %v4388
        %v5229 = vpack.c.b16 %v4396, %v4389
        %v5230 = vpack.c.b16 %v4397, %v4390
        %v5231 = vpack.c.b16 %v4398, %v4391
        %v5232 = vpack.c.b16 %v4399, %v4392
        %v5233 = vpack.c.b16 %v4400, %v4393
        %v5234 = vpack.c.b16 %v4401, %v4394
        %v5235 = vpack.c.b16 %v4409, %v4402
        %v5236 = vpack.c.b16 %v4410, %v4403
        %v5237 = vpack.c.b16 %v4411, %v4404
        %v5238 = vpack.c.b16 %v4412, %v4405
        %v5239 = vpack.c.b16 %v4413, %v4406
        %v5240 = vpack.c.b16 %v4414, %v4407
        %v5241 = vpack.c.b16 %v4415, %v4408
        %v5242 = vpack.c.b16 %v4423, %v4416
        %v5243 = vpack.c.b16 %v4424, %v4417
        %v5244 = vpack.c.b16 %v4425, %v4418
        %v5245 = vpack.c.b16 %v4426, %v4419
        %v5246 = vpack.c.b16 %v4427, %v4420
        %v5247 = vpack.c.b16 %v4428, %v4421
        %v5248 = vpack.c.b16 %v4429, %v4422
        %v5249 = vpack.c.b16 %v4437, %v4430
        %v5250 = vpack.c.b16 %v4438, %v4431
        %v5251 = vpack.c.b16 %v4439, %v4432
        %v5252 = vpack.c.b16 %v4440, %v4433
        %v5253 = vpack.c.b16 %v4441, %v4434
        %v5254 = vpack.c.b16 %v4442, %v4435
        %v5255 = vpack.c.b16 %v4443, %v4436
        %v5256 = vpack.c.b16 %v4451, %v4444
        %v5257 = vpack.c.b16 %v4452, %v4445
        %v5258 = vpack.c.b16 %v4453, %v4446
        %v5259 = vpack.c.b16 %v4454, %v4447
        %v5260 = vpack.c.b16 %v4455, %v4448
        %v5261 = vpack.c.b16 %v4456, %v4449
        %v5262 = vpack.c.b16 %v4457, %v4450
        %v5263 = vpack.c.b16 %v4465, %v4458
        %v5264 = vpack.c.b16 %v4466, %v4459
        %v5265 = vpack.c.b16 %v4467, %v4460
        %v5266 = vpack.c.b16 %v4468, %v4461
        %v5267 = vpack.c.b16 %v4469, %v4462
        %v5268 = vpack.c.b16 %v4470, %v4463
        %v5269 = vpack.c.b16 %v4471, %v4464
        %v5270 = vpack.c.b16 %v4479, %v4472
        %v5271 = vpack.c.b16 %v4480, %v4473
        %v5272 = vpack.c.b16 %v4481, %v4474
        %v5273 = vpack.c.b16 %v4482, %v4475
        %v5274 = vpack.c.b16 %v4483, %v4476
        %v5275 = vpack.c.b16 %v4484, %v4477
        %v5276 = vpack.c.b16 %v4485, %v4478
        %v5277 = vpack.c.b16 %v4493, %v4486
        %v5278 = vpack.c.b16 %v4494, %v4487
        %v5279 = vpack.c.b16 %v4495, %v4488
        %v5280 = vpack.c.b16 %v4496, %v4489
        %v5281 = vpack.c.b16 %v4497, %v4490
        %v5282 = vpack.c.b16 %v4498, %v4491
        %v5283 = vpack.c.b16 %v4499, %v4492
        %v5284 = vpack.c.b16 %v4507, %v4500
        %v5285 = vpack.c.b16 %v4508, %v4501
        %v5286 = vpack.c.b16 %v4509, %v4502
        %v5287 = vpack.c.b16 %v4510, %v4503
        %v5288 = vpack.c.b16 %v4511, %v4504
        %v5289 = vpack.c.b16 %v4512, %v4505
        %v5290 = vpack.c.b16 %v4513, %v4506
        %v5291 = vpack.c.b16 %v4521, %v4514
        %v5292 = vpack.c.b16 %v4522, %v4515
        %v5293 = vpack.c.b16 %v4523, %v4516
        %v5294 = vpack.c.b16 %v4524, %v4517
        %v5295 = vpack.c.b16 %v4525, %v4518
        %v5296 = vpack.c.b16 %v4526, %v4519
        %v5297 = vpack.c.b16 %v4527, %v4520
        %v5298 = vpack.c.b16 %v4535, %v4528
        %v5299 = vpack.c.b16 %v4536, %v4529
        %v5300 = vpack.c.b16 %v4537, %v4530
        %v5301 = vpack.c.b16 %v4538, %v4531
        %v5302 = vpack.c.b16 %v4539, %v4532
        %v5303 = vpack.c.b16 %v4540, %v4533
        %v5304 = vpack.c.b16 %v4541, %v4534
        %v5305 = vpack.c.b16 %v4549, %v4542
        %v5306 = vpack.c.b16 %v4550, %v4543
        %v5307 = vpack.c.b16 %v4551, %v4544
        %v5308 = vpack.c.b16 %v4552, %v4545
        %v5309 = vpack.c.b16 %v4553, %v4546
        %v5310 = vpack.c.b16 %v4554, %v4547
        %v5311 = vpack.c.b16 %v4555, %v4548
        %v5312 = vpack.c.b16 %v4563, %v4556
        %v5313 = vpack.c.b16 %v4564, %v4557
        %v5314 = vpack.c.b16 %v4565, %v4558
        %v5315 = vpack.c.b16 %v4566, %v4559
        %v5316 = vpack.c.b16 %v4567, %v4560
        %v5317 = vpack.c.b16 %v4568, %v4561
        %v5318 = vpack.c.b16 %v4569, %v4562
        %v5319 = vpack.c.b16 %v4577, %v4570
        %v5320 = vpack.c.b16 %v4578, %v4571
        %v5321 = vpack.c.b16 %v4579, %v4572
        %v5322 = vpack.c.b16 %v4580, %v4573
        %v5323 = vpack.c.b16 %v4581, %v4574
        %v5324 = vpack.c.b16 %v4582, %v4575
        %v5325 = vpack.c.b16 %v4583, %v4576
        %v5326 = vpack.c.b16 %v4591, %v4584
        %v5327 = vpack.c.b16 %v4592, %v4585
        %v5328 = vpack.c.b16 %v4593, %v4586
        %v5329 = vpack.c.b16 %v4594, %v4587
        %v5330 = vpack.c.b16 %v4595, %v4588
        %v5331 = vpack.c.b16 %v4596, %v4589
        %v5332 = vpack.c.b16 %v4597, %v4590
        %v5333 = vpack.c.b16 %v4605, %v4598
        %v5334 = vpack.c.b16 %v4606, %v4599
        %v5335 = vpack.c.b16 %v4607, %v4600
        %v5336 = vpack.c.b16 %v4608, %v4601
        %v5337 = vpack.c.b16 %v4609, %v4602
        %v5338 = vpack.c.b16 %v4610, %v4603
        %v5339 = vpack.c.b16 %v4611, %v4604
        %v5340 = vpack.c.b16 %v4619, %v4612
        %v5341 = vpack.c.b16 %v4620, %v4613
        %v5342 = vpack.c.b16 %v4621, %v4614
        %v5343 = vpack.c.b16 %v4622, %v4615
        %v5344 = vpack.c.b16 %v4623, %v4616
        %v5345 = vpack.c.b16 %v4624, %v4617
        %v5346 = vpack.c.b16 %v4625, %v4618
        %v5347 = vpack.c.b16 %v4633, %v4626
        %v5348 = vpack.c.b16 %v4634, %v4627
        %v5349 = vpack.c.b16 %v4635, %v4628
        %v5350 = vpack.c.b16 %v4636, %v4629
        %v5351 = vpack.c.b16 %v4637, %v4630
        %v5352 = vpack.c.b16 %v4638, %v4631
        %v5353 = vpack.c.b16 %v4639, %v4632
        %v5354 = vpack.c.b16 %v4647, %v4640
        %v5355 = vpack.c.b16 %v4648, %v4641
        %v5356 = vpack.c.b16 %v4649, %v4642
        %v5357 = vpack.c.b16 %v4650, %v4643
        %v5358 = vpack.c.b16 %v4651, %v4644
        %v5359 = vpack.c.b16 %v4652, %v4645
        %v5360 = vpack.c.b16 %v4653, %v4646
        %v5361 = vpack.c.b16 %v4661, %v4654
        %v5362 = vpack.c.b16 %v4662, %v4655
        %v5363 = vpack.c.b16 %v4663, %v4656
        %v5364 = vpack.c.b16 %v4664, %v4657
        %v5365 = vpack.c.b16 %v4665, %v4658
        %v5366 = vpack.c.b16 %v4666, %v4659
        %v5367 = vpack.c.b16 %v4667, %v4660
        %v5368 = vpack.c.b16 %v4675, %v4668
        %v5369 = vpack.c.b16 %v4676, %v4669
        %v5370 = vpack.c.b16 %v4677, %v4670
        %v5371 = vpack.c.b16 %v4678, %v4671
        %v5372 = vpack.c.b16 %v4679, %v4672
        %v5373 = vpack.c.b16 %v4680, %v4673
        %v5374 = vpack.c.b16 %v4681, %v4674
        %v5375 = vpack.c.b16 %v4689, %v4682
        %v5376 = vpack.c.b16 %v4690, %v4683
        %v5377 = vpack.c.b16 %v4691, %v4684
        %v5378 = vpack.c.b16 %v4692, %v4685
        %v5379 = vpack.c.b16 %v4693, %v4686
        %v5380 = vpack.c.b16 %v4694, %v4687
        %v5381 = vpack.c.b16 %v4695, %v4688
        %v5382 = vpack.c.b16 %v4703, %v4696
        %v5383 = vpack.c.b16 %v4704, %v4697
        %v5384 = vpack.c.b16 %v4705, %v4698
        %v5385 = vpack.c.b16 %v4706, %v4699
        %v5386 = vpack.c.b16 %v4707, %v4700
        %v5387 = vpack.c.b16 %v4708, %v4701
        %v5388 = vpack.c.b16 %v4709, %v4702
        %v5389 = vpack.c.b16 %v4717, %v4710
        %v5390 = vpack.c.b16 %v4718, %v4711
        %v5391 = vpack.c.b16 %v4719, %v4712
        %v5392 = vpack.c.b16 %v4720, %v4713
        %v5393 = vpack.c.b16 %v4721, %v4714
        %v5394 = vpack.c.b16 %v4722, %v4715
        %v5395 = vpack.c.b16 %v4723, %v4716
        %v5396 = vpack.c.b16 %v4731, %v4724
        %v5397 = vpack.c.b16 %v4732, %v4725
        %v5398 = vpack.c.b16 %v4733, %v4726
        %v5399 = vpack.c.b16 %v4734, %v4727
        %v5400 = vpack.c.b16 %v4735, %v4728
        %v5401 = vpack.c.b16 %v4736, %v4729
        %v5402 = vpack.c.b16 %v4737, %v4730
        %v5403 = vpack.c.b16 %v4745, %v4738
        %v5404 = vpack.c.b16 %v4746, %v4739
        %v5405 = vpack.c.b16 %v4747, %v4740
        %v5406 = vpack.c.b16 %v4748, %v4741
        %v5407 = vpack.c.b16 %v4749, %v4742
        %v5408 = vpack.c.b16 %v4750, %v4743
        %v5409 = vpack.c.b16 %v4751, %v4744
        %v5410 = vpack.c.b16 %v4759, %v4752
        %v5411 = vpack.c.b16 %v4760, %v4753
        %v5412 = vpack.c.b16 %v4761, %v4754
        %v5413 = vpack.c.b16 %v4762, %v4755
        %v5414 = vpack.c.b16 %v4763, %v4756
        %v5415 = vpack.c.b16 %v4764, %v4757
        %v5416 = vpack.c.b16 %v4765, %v4758
        %v5417 = vpack.c.b16 %v4773, %v4766
        %v5418 = vpack.c.b16 %v4774, %v4767
        %v5419 = vpack.c.b16 %v4775, %v4768
        %v5420 = vpack.c.b16 %v4776, %v4769
        %v5421 = vpack.c.b16 %v4777, %v4770
        %v5422 = vpack.c.b16 %v4778, %v4771
        %v5423 = vpack.c.b16 %v4779, %v4772
        %v5424 = vpack.c.b16 %v4787, %v4780
        %v5425 = vpack.c.b16 %v4788, %v4781
        %v5426 = vpack.c.b16 %v4789, %v4782
        %v5427 = vpack.c.b16 %v4790, %v4783
        %v5428 = vpack.c.b16 %v4791, %v4784
        %v5429 = vpack.c.b16 %v4792, %v4785
        %v5430 = vpack.c.b16 %v4793, %v4786
        %v5431 = vpack.c.b16 %v4801, %v4794
        %v5432 = vpack.c.b16 %v4802, %v4795
        %v5433 = vpack.c.b16 %v4803, %v4796
        %v5434 = vpack.c.b16 %v4804, %v4797
        %v5435 = vpack.c.b16 %v4805, %v4798
        %v5436 = vpack.c.b16 %v4806, %v4799
        %v5437 = vpack.c.b16 %v4807, %v4800
        %v5438 = vpack.c.b16 %v4815, %v4808
        %v5439 = vpack.c.b16 %v4816, %v4809
        %v5440 = vpack.c.b16 %v4817, %v4810
        %v5441 = vpack.c.b16 %v4818, %v4811
        %v5442 = vpack.c.b16 %v4819, %v4812
        %v5443 = vpack.c.b16 %v4820, %v4813
        %v5444 = vpack.c.b16 %v4821, %v4814
        %v5445 = vpack.c.b16 %v4829, %v4822
        %v5446 = vpack.c.b16 %v4830, %v4823
        %v5447 = vpack.c.b16 %v4831, %v4824
        %v5448 = vpack.c.b16 %v4832, %v4825
        %v5449 = vpack.c.b16 %v4833, %v4826
        %v5450 = vpack.c.b16 %v4834, %v4827
        %v5451 = vpack.c.b16 %v4835, %v4828
        %v5452 = vpack.c.b16 %v4843, %v4836
        %v5453 = vpack.c.b16 %v4844, %v4837
        %v5454 = vpack.c.b16 %v4845, %v4838
        %v5455 = vpack.c.b16 %v4846, %v4839
        %v5456 = vpack.c.b16 %v4847, %v4840
        %v5457 = vpack.c.b16 %v4848, %v4841
        %v5458 = vpack.c.b16 %v4849, %v4842
        %v5459 = vpack.c.b16 %v4857, %v4850
        %v5460 = vpack.c.b16 %v4858, %v4851
        %v5461 = vpack.c.b16 %v4859, %v4852
        %v5462 = vpack.c.b16 %v4860, %v4853
        %v5463 = vpack.c.b16 %v4861, %v4854
        %v5464 = vpack.c.b16 %v4862, %v4855
        %v5465 = vpack.c.b16 %v4863, %v4856
        %v5466 = vpack.c.b16 %v4871, %v4864
        %v5467 = vpack.c.b16 %v4872, %v4865
        %v5468 = vpack.c.b16 %v4873, %v4866
        %v5469 = vpack.c.b16 %v4874, %v4867
        %v5470 = vpack.c.b16 %v4875, %v4868
        %v5471 = vpack.c.b16 %v4876, %v4869
        %v5472 = vpack.c.b16 %v4877, %v4870
        %v5473 = vpack.c.b16 %v4885, %v4878
        %v5474 = vpack.c.b16 %v4886, %v4879
        %v5475 = vpack.c.b16 %v4887, %v4880
        %v5476 = vpack.c.b16 %v4888, %v4881
        %v5477 = vpack.c.b16 %v4889, %v4882
        %v5478 = vpack.c.b16 %v4890, %v4883
        %v5479 = vpack.c.b16 %v4891, %v4884
        %v5480 = vpack.c.b16 %v4899, %v4892
        %v5481 = vpack.c.b16 %v4900, %v4893
        %v5482 = vpack.c.b16 %v4901, %v4894
        %v5483 = vpack.c.b16 %v4902, %v4895
        %v5484 = vpack.c.b16 %v4903, %v4896
        %v5485 = vpack.c.b16 %v4904, %v4897
        %v5486 = vpack.c.b16 %v4905, %v4898
        %v5487 = vpack.c.b16 %v4913, %v4906
        %v5488 = vpack.c.b16 %v4914, %v4907
        %v5489 = vpack.c.b16 %v4915, %v4908
        %v5490 = vpack.c.b16 %v4916, %v4909
        %v5491 = vpack.c.b16 %v4917, %v4910
        %v5492 = vpack.c.b16 %v4918, %v4911
        %v5493 = vpack.c.b16 %v4919, %v4912
        %v5494 = vpack.c.b16 %v4927, %v4920
        %v5495 = vpack.c.b16 %v4928, %v4921
        %v5496 = vpack.c.b16 %v4929, %v4922
        %v5497 = vpack.c.b16 %v4930, %v4923
        %v5498 = vpack.c.b16 %v4931, %v4924
        %v5499 = vpack.c.b16 %v4932, %v4925
        %v5500 = vpack.c.b16 %v4933, %v4926
        %v5501 = vpack.c.b16 %v4941, %v4934
        %v5502 = vpack.c.b16 %v4942, %v4935
        %v5503 = vpack.c.b16 %v4943, %v4936
        %v5504 = vpack.c.b16 %v4944, %v4937
        %v5505 = vpack.c.b16 %v4945, %v4938
        %v5506 = vpack.c.b16 %v4946, %v4939
        %v5507 = vpack.c.b16 %v4947, %v4940
        %v5508 = vpack.c.b16 %v4955, %v4948
        %v5509 = vpack.c.b16 %v4956, %v4949
        %v5510 = vpack.c.b16 %v4957, %v4950
        %v5511 = vpack.c.b16 %v4958, %v4951
        %v5512 = vpack.c.b16 %v4959, %v4952
        %v5513 = vpack.c.b16 %v4960, %v4953
        %v5514 = vpack.c.b16 %v4961, %v4954
        %v5515 = vpack.c.b16 %v4969, %v4962
        %v5516 = vpack.c.b16 %v4970, %v4963
        %v5517 = vpack.c.b16 %v4971, %v4964
        %v5518 = vpack.c.b16 %v4972, %v4965
        %v5519 = vpack.c.b16 %v4973, %v4966
        %v5520 = vpack.c.b16 %v4974, %v4967
        %v5521 = vpack.c.b16 %v4975, %v4968
        %v5522 = vpack.c.b16 %v4983, %v4976
        %v5523 = vpack.c.b16 %v4984, %v4977
        %v5524 = vpack.c.b16 %v4985, %v4978
        %v5525 = vpack.c.b16 %v4986, %v4979
        %v5526 = vpack.c.b16 %v4987, %v4980
        %v5527 = vpack.c.b16 %v4988, %v4981
        %v5528 = vpack.c.b16 %v4989, %v4982
        %v5529 = vpack.c.b16 %v4997, %v4990
        %v5530 = vpack.c.b16 %v4998, %v4991
        %v5531 = vpack.c.b16 %v4999, %v4992
        %v5532 = vpack.c.b16 %v5000, %v4993
        %v5533 = vpack.c.b16 %v5001, %v4994
        %v5534 = vpack.c.b16 %v5002, %v4995
        %v5535 = vpack.c.b16 %v5003, %v4996
        %v5536 = vpack.c.b16 %v5011, %v5004
        %v5537 = vpack.c.b16 %v5012, %v5005
        %v5538 = vpack.c.b16 %v5013, %v5006
        %v5539 = vpack.c.b16 %v5014, %v5007
        %v5540 = vpack.c.b16 %v5015, %v5008
        %v5541 = vpack.c.b16 %v5016, %v5009
        %v5542 = vpack.c.b16 %v5017, %v5010
        %v5543 = vpack.c.b16 %v5025, %v5018
        %v5544 = vpack.c.b16 %v5026, %v5019
        %v5545 = vpack.c.b16 %v5027, %v5020
        %v5546 = vpack.c.b16 %v5028, %v5021
        %v5547 = vpack.c.b16 %v5029, %v5022
        %v5548 = vpack.c.b16 %v5030, %v5023
        %v5549 = vpack.c.b16 %v5031, %v5024
        %v5550 = vpack.c.b16 %v5039, %v5032
        %v5551 = vpack.c.b16 %v5040, %v5033
        %v5552 = vpack.c.b16 %v5041, %v5034
        %v5553 = vpack.c.b16 %v5042, %v5035
        %v5554 = vpack.c.b16 %v5043, %v5036
        %v5555 = vpack.c.b16 %v5044, %v5037
        %v5556 = vpack.c.b16 %v5045, %v5038
        %v5557 = vpack.c.b16 %v5053, %v5046
        %v5558 = vpack.c.b16 %v5054, %v5047
        %v5559 = vpack.c.b16 %v5055, %v5048
        %v5560 = vpack.c.b16 %v5056, %v5049
        %v5561 = vpack.c.b16 %v5057, %v5050
        %v5562 = vpack.c.b16 %v5058, %v5051
        %v5563 = vpack.c.b16 %v5059, %v5052
        %v5564 = vpack.c.b16 %v5067, %v5060
        %v5565 = vpack.c.b16 %v5068, %v5061
        %v5566 = vpack.c.b16 %v5069, %v5062
        %v5567 = vpack.c.b16 %v5070, %v5063
        %v5568 = vpack.c.b16 %v5071, %v5064
        %v5569 = vpack.c.b16 %v5072, %v5065
        %v5570 = vpack.c.b16 %v5073, %v5066
        %v5571 = vpack.c.b16 %v5081, %v5074
        %v5572 = vpack.c.b16 %v5082, %v5075
        %v5573 = vpack.c.b16 %v5083, %v5076
        %v5574 = vpack.c.b16 %v5084, %v5077
        %v5575 = vpack.c.b16 %v5085, %v5078
        %v5576 = vpack.c.b16 %v5086, %v5079
        %v5577 = vpack.c.b16 %v5087, %v5080
        %v5578 = vpack.c.b16 %v5095, %v5088
        %v5579 = vpack.c.b16 %v5096, %v5089
        %v5580 = vpack.c.b16 %v5097, %v5090
        %v5581 = vpack.c.b16 %v5098, %v5091
        %v5582 = vpack.c.b16 %v5099, %v5092
        %v5583 = vpack.c.b16 %v5100, %v5093
        %v5584 = vpack.c.b16 %v5101, %v5094
        %v5585 = vpack.c.b16 %v5109, %v5102
        %v5586 = vpack.c.b16 %v5110, %v5103
        %v5587 = vpack.c.b16 %v5111, %v5104
        %v5588 = vpack.c.b16 %v5112, %v5105
        %v5589 = vpack.c.b16 %v5113, %v5106
        %v5590 = vpack.c.b16 %v5114, %v5107
        %v5591 = vpack.c.b16 %v5115, %v5108
        %v5592 = vpack.c.b16 %v5123, %v5116
        %v5593 = vpack.c.b16 %v5124, %v5117
        %v5594 = vpack.c.b16 %v5125, %v5118
        %v5595 = vpack.c.b16 %v5126, %v5119
        %v5596 = vpack.c.b16 %v5127, %v5120
        %v5597 = vpack.c.b16 %v5128, %v5121
        %v5598 = vpack.c.b16 %v5129, %v5122
        %v5599 = vpack.c.b16 %v5137, %v5130
        %v5600 = vpack.c.b16 %v5138, %v5131
        %v5601 = vpack.c.b16 %v5139, %v5132
        %v5602 = vpack.c.b16 %v5140, %v5133
        %v5603 = vpack.c.b16 %v5141, %v5134
        %v5604 = vpack.c.b16 %v5142, %v5135
        %v5605 = vpack.c.b16 %v5143, %v5136
        %v5606 = vpack.c.b16 %v5151, %v5144
        %v5607 = vpack.c.b16 %v5152, %v5145
        %v5608 = vpack.c.b16 %v5153, %v5146
        %v5609 = vpack.c.b16 %v5154, %v5147
        %v5610 = vpack.c.b16 %v5155, %v5148
        %v5611 = vpack.c.b16 %v5156, %v5149
        %v5612 = vpack.c.b16 %v5157, %v5150
        %v5613 = vpack.c.b16 %v5165, %v5158
        %v5614 = vpack.c.b16 %v5166, %v5159
        %v5615 = vpack.c.b16 %v5167, %v5160
        %v5616 = vpack.c.b16 %v5168, %v5161
        %v5617 = vpack.c.b16 %v5169, %v5162
        %v5618 = vpack.c.b16 %v5170, %v5163
        %v5619 = vpack.c.b16 %v5171, %v5164
        %6068 = vmatprep.subr.bf16.mxu0 %v5173
        %6069 = vmatpush1.bf16.msra.mxu0 %v5172
        %6070 = vmatprep.subr.bf16.mxu0 %v5180
        %6071 = vmatpush1.bf16.msra.mxu0 %v5179
        %6072 = vmatprep.subr.bf16.mxu0 %v5187
        %6073 = vmatpush1.bf16.msra.mxu0 %v5186
        %6074 = vmatprep.subr.bf16.mxu0 %v5194
        %6075 = vmatpush1.bf16.msra.mxu0 %v5193
        %6076 = vmatprep.subr.bf16.mxu0 %v5201
        %6077 = vmatpush1.bf16.msra.mxu0 %v5200
        %6078 = vmatprep.subr.bf16.mxu0 %v5208
        %6079 = vmatpush1.bf16.msra.mxu0 %v5207
        %6080 = vmatprep.subr.bf16.mxu0 %v5215
        %6081 = vmatpush1.bf16.msra.mxu0 %v5214
        %6082 = vmatprep.subr.bf16.mxu0 %v5222
        %6083 = vmatpush1.bf16.msra.mxu0 %v5221
        %6084 = vmatprep.subr.bf16.mxu0 %v5229
        %6085 = vmatpush1.bf16.msra.mxu0 %v5228
        %6086 = vmatprep.subr.bf16.mxu0 %v5236
        %6087 = vmatpush1.bf16.msra.mxu0 %v5235
        %6088 = vmatprep.subr.bf16.mxu0 %v5243
        %6089 = vmatpush1.bf16.msra.mxu0 %v5242
        %6090 = vmatprep.subr.bf16.mxu0 %v5250
        %6091 = vmatpush1.bf16.msra.mxu0 %v5249
        %6092 = vmatprep.subr.bf16.mxu0 %v5257
        %6093 = vmatpush1.bf16.msra.mxu0 %v5256
        %6094 = vmatprep.subr.bf16.mxu0 %v5264
        %6095 = vmatpush1.bf16.msra.mxu0 %v5263
        %6096 = vmatprep.subr.bf16.mxu0 %v5271
        %6097 = vmatpush1.bf16.msra.mxu0 %v5270
        %6098 = vmatprep.subr.bf16.mxu0 %v5278
        %6099 = vmatpush1.bf16.msra.mxu0 %v5277
        %6100 = vmatprep.mubr.bf16.mxu0 %v3208
        %6101 = vmatmul.mubr.bf16.gmra.mrb[0].mxu0 %v3207
        %v6102 = vpop.f32.mrb[0].mxu0
        %v6103 = vadd.f32 %v3732, %v6102
        %v6104 = vpop.f32.mrb[0].mxu0
        %v6105 = vadd.f32 %v3736, %v6104
        %v6106 = vpop.f32.mrb[0].mxu0
        %v6107 = vadd.f32 %v3732, %v6106
        %v6108 = vpop.f32.mrb[0].mxu0
        %v6109 = vadd.f32 %v3736, %v6108
        %6110 = vdwg.mxu0
        %6111 = vmatprep.subr.bf16.mxu0 %v5285
        %6112 = vmatpush1.bf16.msra.mxu0 %v5284
        %6113 = vmatprep.subr.bf16.mxu0 %v5292
        %6114 = vmatpush1.bf16.msra.mxu0 %v5291
        %6115 = vmatprep.subr.bf16.mxu0 %v5299
        %6116 = vmatpush1.bf16.msra.mxu0 %v5298
        %6117 = vmatprep.subr.bf16.mxu0 %v5306
        %6118 = vmatpush1.bf16.msra.mxu0 %v5305
        %6119 = vmatprep.subr.bf16.mxu0 %v5313
        %6120 = vmatpush1.bf16.msra.mxu0 %v5312
        %6121 = vmatprep.subr.bf16.mxu0 %v5320
        %6122 = vmatpush1.bf16.msra.mxu0 %v5319
        %6123 = vmatprep.subr.bf16.mxu0 %v5327
        %6124 = vmatpush1.bf16.msra.mxu0 %v5326
        %6125 = vmatprep.subr.bf16.mxu0 %v5334
        %6126 = vmatpush1.bf16.msra.mxu0 %v5333
        %6127 = vmatprep.subr.bf16.mxu0 %v5341
        %6128 = vmatpush1.bf16.msra.mxu0 %v5340
        %6129 = vmatprep.subr.bf16.mxu0 %v5348
        %6130 = vmatpush1.bf16.msra.mxu0 %v5347
        %6131 = vmatprep.subr.bf16.mxu0 %v5355
        %6132 = vmatpush1.bf16.msra.mxu0 %v5354
        %6133 = vmatprep.subr.bf16.mxu0 %v5362
        %6134 = vmatpush1.bf16.msra.mxu0 %v5361
        %6135 = vmatprep.subr.bf16.mxu0 %v5369
        %6136 = vmatpush1.bf16.msra.mxu0 %v5368
        %6137 = vmatprep.subr.bf16.mxu0 %v5376
        %6138 = vmatpush1.bf16.msra.mxu0 %v5375
        %6139 = vmatprep.subr.bf16.mxu0 %v5383
        %6140 = vmatpush1.bf16.msra.mxu0 %v5382
        %6141 = vmatprep.subr.bf16.mxu0 %v5390
        %6142 = vmatpush1.bf16.msra.mxu0 %v5389
        %6143 = vmatprep.mubr.bf16.mxu0 %v3210
        %6144 = vmatmul.mubr.bf16.gmra.mrb[0].mxu0 %v3209
        %v6145 = vpop.f32.mrb[0].mxu0
        %v6146 = vadd.f32 %v6103, %v6145
        %v6147 = vpop.f32.mrb[0].mxu0
        %v6148 = vadd.f32 %v6105, %v6147
        %v6149 = vpop.f32.mrb[0].mxu0
        %v6150 = vadd.f32 %v6107, %v6149
        %v6151 = vpop.f32.mrb[0].mxu0
        %v6152 = vadd.f32 %v6109, %v6151
        %6153 = vdwg.mxu0
        %6154 = vmatprep.subr.bf16.mxu0 %v5397
        %6155 = vmatpush1.bf16.msra.mxu0 %v5396
        %6156 = vmatprep.subr.bf16.mxu0 %v5404
        %6157 = vmatpush1.bf16.msra.mxu0 %v5403
        %6158 = vmatprep.subr.bf16.mxu0 %v5411
        %6159 = vmatpush1.bf16.msra.mxu0 %v5410
        %6160 = vmatprep.subr.bf16.mxu0 %v5418
        %6161 = vmatpush1.bf16.msra.mxu0 %v5417
        %6162 = vmatprep.subr.bf16.mxu0 %v5425
        %6163 = vmatpush1.bf16.msra.mxu0 %v5424
        %6164 = vmatprep.subr.bf16.mxu0 %v5432
        %6165 = vmatpush1.bf16.msra.mxu0 %v5431
        %6166 = vmatprep.subr.bf16.mxu0 %v5439
        %6167 = vmatpush1.bf16.msra.mxu0 %v5438
        %6168 = vmatprep.subr.bf16.mxu0 %v5446
        %6169 = vmatpush1.bf16.msra.mxu0 %v5445
        %6170 = vmatprep.subr.bf16.mxu0 %v5453
        %6171 = vmatpush1.bf16.msra.mxu0 %v5452
        %6172 = vmatprep.subr.bf16.mxu0 %v5460
        %6173 = vmatpush1.bf16.msra.mxu0 %v5459
        %6174 = vmatprep.subr.bf16.mxu0 %v5467
        %6175 = vmatpush1.bf16.msra.mxu0 %v5466
        %6176 = vmatprep.subr.bf16.mxu0 %v5474
        %6177 = vmatpush1.bf16.msra.mxu0 %v5473
        %6178 = vmatprep.subr.bf16.mxu0 %v5481
        %6179 = vmatpush1.bf16.msra.mxu0 %v5480
        %6180 = vmatprep.subr.bf16.mxu0 %v5488
        %6181 = vmatpush1.bf16.msra.mxu0 %v5487
        %6182 = vmatprep.subr.bf16.mxu0 %v5495
        %6183 = vmatpush1.bf16.msra.mxu0 %v5494
        %6184 = vmatprep.subr.bf16.mxu0 %v5502
        %6185 = vmatpush1.bf16.msra.mxu0 %v5501
        %6186 = vmatprep.mubr.bf16.mxu0 %v3212
        %6187 = vmatmul.mubr.bf16.gmra.mrb[0].mxu0 %v3211
        %v6188 = vpop.f32.mrb[0].mxu0
        %v6189 = vadd.f32 %v6146, %v6188
        %v6190 = vpop.f32.mrb[0].mxu0
        %v6191 = vadd.f32 %v6148, %v6190
        %v6192 = vpop.f32.mrb[0].mxu0
        %v6193 = vadd.f32 %v6150, %v6192
        %v6194 = vpop.f32.mrb[0].mxu0
        %v6195 = vadd.f32 %v6152, %v6194
        %6196 = vdwg.mxu0
        %6197 = vmatprep.subr.bf16.mxu0 %v5509
        %6198 = vmatpush1.bf16.msra.mxu0 %v5508
        %6199 = vmatprep.subr.bf16.mxu0 %v5516
        %6200 = vmatpush1.bf16.msra.mxu0 %v5515
        %6201 = vmatprep.subr.bf16.mxu0 %v5523
        %6202 = vmatpush1.bf16.msra.mxu0 %v5522
        %6203 = vmatprep.subr.bf16.mxu0 %v5530
        %6204 = vmatpush1.bf16.msra.mxu0 %v5529
        %6205 = vmatprep.subr.bf16.mxu0 %v5537
        %6206 = vmatpush1.bf16.msra.mxu0 %v5536
        %6207 = vmatprep.subr.bf16.mxu0 %v5544
        %6208 = vmatpush1.bf16.msra.mxu0 %v5543
        %6209 = vmatprep.subr.bf16.mxu0 %v5551
        %6210 = vmatpush1.bf16.msra.mxu0 %v5550
        %6211 = vmatprep.subr.bf16.mxu0 %v5558
        %6212 = vmatpush1.bf16.msra.mxu0 %v5557
        %6213 = vmatprep.subr.bf16.mxu0 %v5565
        %6214 = vmatpush1.bf16.msra.mxu0 %v5564
        %6215 = vmatprep.subr.bf16.mxu0 %v5572
        %6216 = vmatpush1.bf16.msra.mxu0 %v5571
        %6217 = vmatprep.subr.bf16.mxu0 %v5579
        %6218 = vmatpush1.bf16.msra.mxu0 %v5578
        %6219 = vmatprep.subr.bf16.mxu0 %v5586
        %6220 = vmatpush1.bf16.msra.mxu0 %v5585
        %6221 = vmatprep.subr.bf16.mxu0 %v5593
        %6222 = vmatpush1.bf16.msra.mxu0 %v5592
        %6223 = vmatprep.subr.bf16.mxu0 %v5600
        %6224 = vmatpush1.bf16.msra.mxu0 %v5599
        %6225 = vmatprep.subr.bf16.mxu0 %v5607
        %6226 = vmatpush1.bf16.msra.mxu0 %v5606
        %6227 = vmatprep.subr.bf16.mxu0 %v5614
        %6228 = vmatpush1.bf16.msra.mxu0 %v5613
        %6229 = vmatprep.mubr.bf16.mxu0 %v3214
        %6230 = vmatmul.mubr.bf16.gmra.mrb[0].mxu0 %v3213
        %v6231 = vpop.f32.mrb[0].mxu0
        %v6232 = vadd.f32 %v6189, %v6231
        %v6233 = vpop.f32.mrb[0].mxu0
        %v6234 = vadd.f32 %v6191, %v6233
        %v6235 = vpop.f32.mrb[0].mxu0
        %v6236 = vadd.f32 %v6193, %v6235
        %v6237 = vpop.f32.mrb[0].mxu0
        %v6238 = vadd.f32 %v6195, %v6237
        %6239 = vdwg.mxu0
        %6240 = vmatprep.subr.bf16.mxu0 %v5175
        %6241 = vmatpush1.bf16.msra.mxu0 %v5174
        %6242 = vmatprep.subr.bf16.mxu0 %v5182
        %6243 = vmatpush1.bf16.msra.mxu0 %v5181
        %6244 = vmatprep.subr.bf16.mxu0 %v5189
        %6245 = vmatpush1.bf16.msra.mxu0 %v5188
        %6246 = vmatprep.subr.bf16.mxu0 %v5196
        %6247 = vmatpush1.bf16.msra.mxu0 %v5195
        %6248 = vmatprep.subr.bf16.mxu0 %v5203
        %6249 = vmatpush1.bf16.msra.mxu0 %v5202
        %6250 = vmatprep.subr.bf16.mxu0 %v5210
        %6251 = vmatpush1.bf16.msra.mxu0 %v5209
        %6252 = vmatprep.subr.bf16.mxu0 %v5217
        %6253 = vmatpush1.bf16.msra.mxu0 %v5216
        %6254 = vmatprep.subr.bf16.mxu0 %v5224
        %6255 = vmatpush1.bf16.msra.mxu0 %v5223
        %6256 = vmatprep.subr.bf16.mxu0 %v5231
        %6257 = vmatpush1.bf16.msra.mxu0 %v5230
        %6258 = vmatprep.subr.bf16.mxu0 %v5238
        %6259 = vmatpush1.bf16.msra.mxu0 %v5237
        %6260 = vmatprep.subr.bf16.mxu0 %v5245
        %6261 = vmatpush1.bf16.msra.mxu0 %v5244
        %6262 = vmatprep.subr.bf16.mxu0 %v5252
        %6263 = vmatpush1.bf16.msra.mxu0 %v5251
        %6264 = vmatprep.subr.bf16.mxu0 %v5259
        %6265 = vmatpush1.bf16.msra.mxu0 %v5258
        %6266 = vmatprep.subr.bf16.mxu0 %v5266
        %6267 = vmatpush1.bf16.msra.mxu0 %v5265
        %6268 = vmatprep.subr.bf16.mxu0 %v5273
        %6269 = vmatpush1.bf16.msra.mxu0 %v5272
        %6270 = vmatprep.subr.bf16.mxu0 %v5280
        %6271 = vmatpush1.bf16.msra.mxu0 %v5279
        %6272 = vmatprep.mubr.bf16.mxu0 %v3208
        %6273 = vmatmul.mubr.bf16.gmra.mrb[0].mxu0 %v3207
        %v6274 = vpop.f32.mrb[0].mxu0
        %v6275 = vadd.f32 %v3740, %v6274
        %v6276 = vpop.f32.mrb[0].mxu0
        %v6277 = vadd.f32 %v3744, %v6276
        %v6278 = vpop.f32.mrb[0].mxu0
        %v6279 = vadd.f32 %v3740, %v6278
        %v6280 = vpop.f32.mrb[0].mxu0
        %v6281 = vadd.f32 %v3744, %v6280
        %6282 = vdwg.mxu0
        %6283 = vmatprep.subr.bf16.mxu0 %v5287
        %6284 = vmatpush1.bf16.msra.mxu0 %v5286
        %6285 = vmatprep.subr.bf16.mxu0 %v5294
        %6286 = vmatpush1.bf16.msra.mxu0 %v5293
        %6287 = vmatprep.subr.bf16.mxu0 %v5301
        %6288 = vmatpush1.bf16.msra.mxu0 %v5300
        %6289 = vmatprep.subr.bf16.mxu0 %v5308
        %6290 = vmatpush1.bf16.msra.mxu0 %v5307
        %6291 = vmatprep.subr.bf16.mxu0 %v5315
        %6292 = vmatpush1.bf16.msra.mxu0 %v5314
        %6293 = vmatprep.subr.bf16.mxu0 %v5322
        %6294 = vmatpush1.bf16.msra.mxu0 %v5321
        %6295 = vmatprep.subr.bf16.mxu0 %v5329
        %6296 = vmatpush1.bf16.msra.mxu0 %v5328
        %6297 = vmatprep.subr.bf16.mxu0 %v5336
        %6298 = vmatpush1.bf16.msra.mxu0 %v5335
        %6299 = vmatprep.subr.bf16.mxu0 %v5343
        %6300 = vmatpush1.bf16.msra.mxu0 %v5342
        %6301 = vmatprep.subr.bf16.mxu0 %v5350
        %6302 = vmatpush1.bf16.msra.mxu0 %v5349
        %6303 = vmatprep.subr.bf16.mxu0 %v5357
        %6304 = vmatpush1.bf16.msra.mxu0 %v5356
        %6305 = vmatprep.subr.bf16.mxu0 %v5364
        %6306 = vmatpush1.bf16.msra.mxu0 %v5363
        %6307 = vmatprep.subr.bf16.mxu0 %v5371
        %6308 = vmatpush1.bf16.msra.mxu0 %v5370
        %6309 = vmatprep.subr.bf16.mxu0 %v5378
        %6310 = vmatpush1.bf16.msra.mxu0 %v5377
        %6311 = vmatprep.subr.bf16.mxu0 %v5385
        %6312 = vmatpush1.bf16.msra.mxu0 %v5384
        %6313 = vmatprep.subr.bf16.mxu0 %v5392
        %6314 = vmatpush1.bf16.msra.mxu0 %v5391
        %6315 = vmatprep.mubr.bf16.mxu0 %v3210
        %6316 = vmatmul.mubr.bf16.gmra.mrb[0].mxu0 %v3209
        %v6317 = vpop.f32.mrb[0].mxu0
        %v6318 = vadd.f32 %v6275, %v6317
        %v6319 = vpop.f32.mrb[0].mxu0
        %v6320 = vadd.f32 %v6277, %v6319
        %v6321 = vpop.f32.mrb[0].mxu0
        %v6322 = vadd.f32 %v6279, %v6321
        %v6323 = vpop.f32.mrb[0].mxu0
        %v6324 = vadd.f32 %v6281, %v6323
        %6325 = vdwg.mxu0
        %6326 = vmatprep.subr.bf16.mxu0 %v5399
        %6327 = vmatpush1.bf16.msra.mxu0 %v5398
        %6328 = vmatprep.subr.bf16.mxu0 %v5406
        %6329 = vmatpush1.bf16.msra.mxu0 %v5405
        %6330 = vmatprep.subr.bf16.mxu0 %v5413
        %6331 = vmatpush1.bf16.msra.mxu0 %v5412
        %6332 = vmatprep.subr.bf16.mxu0 %v5420
        %6333 = vmatpush1.bf16.msra.mxu0 %v5419
        %6334 = vmatprep.subr.bf16.mxu0 %v5427
        %6335 = vmatpush1.bf16.msra.mxu0 %v5426
        %6336 = vmatprep.subr.bf16.mxu0 %v5434
        %6337 = vmatpush1.bf16.msra.mxu0 %v5433
        %6338 = vmatprep.subr.bf16.mxu0 %v5441
        %6339 = vmatpush1.bf16.msra.mxu0 %v5440
        %6340 = vmatprep.subr.bf16.mxu0 %v5448
        %6341 = vmatpush1.bf16.msra.mxu0 %v5447
        %6342 = vmatprep.subr.bf16.mxu0 %v5455
        %6343 = vmatpush1.bf16.msra.mxu0 %v5454
        %6344 = vmatprep.subr.bf16.mxu0 %v5462
        %6345 = vmatpush1.bf16.msra.mxu0 %v5461
        %6346 = vmatprep.subr.bf16.mxu0 %v5469
        %6347 = vmatpush1.bf16.msra.mxu0 %v5468
        %6348 = vmatprep.subr.bf16.mxu0 %v5476
        %6349 = vmatpush1.bf16.msra.mxu0 %v5475
        %6350 = vmatprep.subr.bf16.mxu0 %v5483
        %6351 = vmatpush1.bf16.msra.mxu0 %v5482
        %6352 = vmatprep.subr.bf16.mxu0 %v5490
        %6353 = vmatpush1.bf16.msra.mxu0 %v5489
        %6354 = vmatprep.subr.bf16.mxu0 %v5497
        %6355 = vmatpush1.bf16.msra.mxu0 %v5496
        %6356 = vmatprep.subr.bf16.mxu0 %v5504
        %6357 = vmatpush1.bf16.msra.mxu0 %v5503
        %6358 = vmatprep.mubr.bf16.mxu0 %v3212
        %6359 = vmatmul.mubr.bf16.gmra.mrb[0].mxu0 %v3211
        %v6360 = vpop.f32.mrb[0].mxu0
        %v6361 = vadd.f32 %v6318, %v6360
        %v6362 = vpop.f32.mrb[0].mxu0
        %v6363 = vadd.f32 %v6320, %v6362
        %v6364 = vpop.f32.mrb[0].mxu0
        %v6365 = vadd.f32 %v6322, %v6364
        %v6366 = vpop.f32.mrb[0].mxu0
        %v6367 = vadd.f32 %v6324, %v6366
        %6368 = vdwg.mxu0
        %6369 = vmatprep.subr.bf16.mxu0 %v5511
        %6370 = vmatpush1.bf16.msra.mxu0 %v5510
        %6371 = vmatprep.subr.bf16.mxu0 %v5518
        %6372 = vmatpush1.bf16.msra.mxu0 %v5517
        %6373 = vmatprep.subr.bf16.mxu0 %v5525
        %6374 = vmatpush1.bf16.msra.mxu0 %v5524
        %6375 = vmatprep.subr.bf16.mxu0 %v5532
        %6376 = vmatpush1.bf16.msra.mxu0 %v5531
        %6377 = vmatprep.subr.bf16.mxu0 %v5539
        %6378 = vmatpush1.bf16.msra.mxu0 %v5538
        %6379 = vmatprep.subr.bf16.mxu0 %v5546
        %6380 = vmatpush1.bf16.msra.mxu0 %v5545
        %6381 = vmatprep.subr.bf16.mxu0 %v5553
        %6382 = vmatpush1.bf16.msra.mxu0 %v5552
        %6383 = vmatprep.subr.bf16.mxu0 %v5560
        %6384 = vmatpush1.bf16.msra.mxu0 %v5559
        %6385 = vmatprep.subr.bf16.mxu0 %v5567
        %6386 = vmatpush1.bf16.msra.mxu0 %v5566
        %6387 = vmatprep.subr.bf16.mxu0 %v5574
        %6388 = vmatpush1.bf16.msra.mxu0 %v5573
        %6389 = vmatprep.subr.bf16.mxu0 %v5581
        %6390 = vmatpush1.bf16.msra.mxu0 %v5580
        %6391 = vmatprep.subr.bf16.mxu0 %v5588
        %6392 = vmatpush1.bf16.msra.mxu0 %v5587
        %6393 = vmatprep.subr.bf16.mxu0 %v5595
        %6394 = vmatpush1.bf16.msra.mxu0 %v5594
        %6395 = vmatprep.subr.bf16.mxu0 %v5602
        %6396 = vmatpush1.bf16.msra.mxu0 %v5601
        %6397 = vmatprep.subr.bf16.mxu0 %v5609
        %6398 = vmatpush1.bf16.msra.mxu0 %v5608
        %6399 = vmatprep.subr.bf16.mxu0 %v5616
        %6400 = vmatpush1.bf16.msra.mxu0 %v5615
        %6401 = vmatprep.mubr.bf16.mxu0 %v3214
        %6402 = vmatmul.mubr.bf16.gmra.mrb[0].mxu0 %v3213
        %v6403 = vpop.f32.mrb[0].mxu0
        %v6404 = vadd.f32 %v6361, %v6403
        %v6405 = vpop.f32.mrb[0].mxu0
        %v6406 = vadd.f32 %v6363, %v6405
        %v6407 = vpop.f32.mrb[0].mxu0
        %v6408 = vadd.f32 %v6365, %v6407
        %v6409 = vpop.f32.mrb[0].mxu0
        %v6410 = vadd.f32 %v6367, %v6409
        %6411 = vdwg.mxu0
        %6412 = vmatprep.subr.bf16.mxu0 %v5177
        %6413 = vmatpush1.bf16.msra.mxu0 %v5176
        %6414 = vmatprep.subr.bf16.mxu0 %v5184
        %6415 = vmatpush1.bf16.msra.mxu0 %v5183
        %6416 = vmatprep.subr.bf16.mxu0 %v5191
        %6417 = vmatpush1.bf16.msra.mxu0 %v5190
        %6418 = vmatprep.subr.bf16.mxu0 %v5198
        %6419 = vmatpush1.bf16.msra.mxu0 %v5197
        %6420 = vmatprep.subr.bf16.mxu0 %v5205
        %6421 = vmatpush1.bf16.msra.mxu0 %v5204
        %6422 = vmatprep.subr.bf16.mxu0 %v5212
        %6423 = vmatpush1.bf16.msra.mxu0 %v5211
        %6424 = vmatprep.subr.bf16.mxu0 %v5219
        %6425 = vmatpush1.bf16.msra.mxu0 %v5218
        %6426 = vmatprep.subr.bf16.mxu0 %v5226
        %6427 = vmatpush1.bf16.msra.mxu0 %v5225
        %6428 = vmatprep.subr.bf16.mxu0 %v5233
        %6429 = vmatpush1.bf16.msra.mxu0 %v5232
        %6430 = vmatprep.subr.bf16.mxu0 %v5240
        %6431 = vmatpush1.bf16.msra.mxu0 %v5239
        %6432 = vmatprep.subr.bf16.mxu0 %v5247
        %6433 = vmatpush1.bf16.msra.mxu0 %v5246
        %6434 = vmatprep.subr.bf16.mxu0 %v5254
        %6435 = vmatpush1.bf16.msra.mxu0 %v5253
        %6436 = vmatprep.subr.bf16.mxu0 %v5261
        %6437 = vmatpush1.bf16.msra.mxu0 %v5260
        %6438 = vmatprep.subr.bf16.mxu0 %v5268
        %6439 = vmatpush1.bf16.msra.mxu0 %v5267
        %6440 = vmatprep.subr.bf16.mxu0 %v5275
        %6441 = vmatpush1.bf16.msra.mxu0 %v5274
        %6442 = vmatprep.subr.bf16.mxu0 %v5282
        %6443 = vmatpush1.bf16.msra.mxu0 %v5281
        %6444 = vmatprep.mubr.bf16.mxu0 %v3208
        %6445 = vmatmul.mubr.bf16.gmra.mrb[0].mxu0 %v3207
        %v6446 = vpop.f32.mrb[0].mxu0
        %v6447 = vadd.f32 %v3748, %v6446
        %v6448 = vpop.f32.mrb[0].mxu0
        %v6449 = vadd.f32 %v3752, %v6448
        %v6450 = vpop.f32.mrb[0].mxu0
        %v6451 = vadd.f32 %v3748, %v6450
        %v6452 = vpop.f32.mrb[0].mxu0
        %v6453 = vadd.f32 %v3752, %v6452
        %6454 = vdwg.mxu0
        %6455 = vmatprep.subr.bf16.mxu0 %v5289
        %6456 = vmatpush1.bf16.msra.mxu0 %v5288
        %6457 = vmatprep.subr.bf16.mxu0 %v5296
        %6458 = vmatpush1.bf16.msra.mxu0 %v5295
        %6459 = vmatprep.subr.bf16.mxu0 %v5303
        %6460 = vmatpush1.bf16.msra.mxu0 %v5302
        %6461 = vmatprep.subr.bf16.mxu0 %v5310
        %6462 = vmatpush1.bf16.msra.mxu0 %v5309
        %6463 = vmatprep.subr.bf16.mxu0 %v5317
        %6464 = vmatpush1.bf16.msra.mxu0 %v5316
        %6465 = vmatprep.subr.bf16.mxu0 %v5324
        %6466 = vmatpush1.bf16.msra.mxu0 %v5323
        %6467 = vmatprep.subr.bf16.mxu0 %v5331
        %6468 = vmatpush1.bf16.msra.mxu0 %v5330
        %6469 = vmatprep.subr.bf16.mxu0 %v5338
        %6470 = vmatpush1.bf16.msra.mxu0 %v5337
        %6471 = vmatprep.subr.bf16.mxu0 %v5345
        %6472 = vmatpush1.bf16.msra.mxu0 %v5344
        %6473 = vmatprep.subr.bf16.mxu0 %v5352
        %6474 = vmatpush1.bf16.msra.mxu0 %v5351
        %6475 = vmatprep.subr.bf16.mxu0 %v5359
        %6476 = vmatpush1.bf16.msra.mxu0 %v5358
        %6477 = vmatprep.subr.bf16.mxu0 %v5366
        %6478 = vmatpush1.bf16.msra.mxu0 %v5365
        %6479 = vmatprep.subr.bf16.mxu0 %v5373
        %6480 = vmatpush1.bf16.msra.mxu0 %v5372
        %6481 = vmatprep.subr.bf16.mxu0 %v5380
        %6482 = vmatpush1.bf16.msra.mxu0 %v5379
        %6483 = vmatprep.subr.bf16.mxu0 %v5387
        %6484 = vmatpush1.bf16.msra.mxu0 %v5386
        %6485 = vmatprep.subr.bf16.mxu0 %v5394
        %6486 = vmatpush1.bf16.msra.mxu0 %v5393
        %6487 = vmatprep.mubr.bf16.mxu0 %v3210
        %6488 = vmatmul.mubr.bf16.gmra.mrb[0].mxu0 %v3209
        %v6489 = vpop.f32.mrb[0].mxu0
        %v6490 = vadd.f32 %v6447, %v6489
        %v6491 = vpop.f32.mrb[0].mxu0
        %v6492 = vadd.f32 %v6449, %v6491
        %v6493 = vpop.f32.mrb[0].mxu0
        %v6494 = vadd.f32 %v6451, %v6493
        %v6495 = vpop.f32.mrb[0].mxu0
        %v6496 = vadd.f32 %v6453, %v6495
        %6497 = vdwg.mxu0
        %6498 = vmatprep.subr.bf16.mxu0 %v5401
        %6499 = vmatpush1.bf16.msra.mxu0 %v5400
        %6500 = vmatprep.subr.bf16.mxu0 %v5408
        %6501 = vmatpush1.bf16.msra.mxu0 %v5407
        %6502 = vmatprep.subr.bf16.mxu0 %v5415
        %6503 = vmatpush1.bf16.msra.mxu0 %v5414
        %6504 = vmatprep.subr.bf16.mxu0 %v5422
        %6505 = vmatpush1.bf16.msra.mxu0 %v5421
        %6506 = vmatprep.subr.bf16.mxu0 %v5429
        %6507 = vmatpush1.bf16.msra.mxu0 %v5428
        %6508 = vmatprep.subr.bf16.mxu0 %v5436
        %6509 = vmatpush1.bf16.msra.mxu0 %v5435
        %6510 = vmatprep.subr.bf16.mxu0 %v5443
        %6511 = vmatpush1.bf16.msra.mxu0 %v5442
        %6512 = vmatprep.subr.bf16.mxu0 %v5450
        %6513 = vmatpush1.bf16.msra.mxu0 %v5449
        %6514 = vmatprep.subr.bf16.mxu0 %v5457
        %6515 = vmatpush1.bf16.msra.mxu0 %v5456
        %6516 = vmatprep.subr.bf16.mxu0 %v5464
        %6517 = vmatpush1.bf16.msra.mxu0 %v5463
        %6518 = vmatprep.subr.bf16.mxu0 %v5471
        %6519 = vmatpush1.bf16.msra.mxu0 %v5470
        %6520 = vmatprep.subr.bf16.mxu0 %v5478
        %6521 = vmatpush1.bf16.msra.mxu0 %v5477
        %6522 = vmatprep.subr.bf16.mxu0 %v5485
        %6523 = vmatpush1.bf16.msra.mxu0 %v5484
        %6524 = vmatprep.subr.bf16.mxu0 %v5492
        %6525 = vmatpush1.bf16.msra.mxu0 %v5491
        %6526 = vmatprep.subr.bf16.mxu0 %v5499
        %6527 = vmatpush1.bf16.msra.mxu0 %v5498
        %6528 = vmatprep.subr.bf16.mxu0 %v5506
        %6529 = vmatpush1.bf16.msra.mxu0 %v5505
        %6530 = vmatprep.mubr.bf16.mxu0 %v3212
        %6531 = vmatmul.mubr.bf16.gmra.mrb[0].mxu0 %v3211
        %v6532 = vpop.f32.mrb[0].mxu0
        %v6533 = vadd.f32 %v6490, %v6532
        %v6534 = vpop.f32.mrb[0].mxu0
        %v6535 = vadd.f32 %v6492, %v6534
        %v6536 = vpop.f32.mrb[0].mxu0
        %v6537 = vadd.f32 %v6494, %v6536
        %v6538 = vpop.f32.mrb[0].mxu0
        %v6539 = vadd.f32 %v6496, %v6538
        %6540 = vdwg.mxu0
        %6541 = vmatprep.subr.bf16.mxu0 %v5513
        %6542 = vmatpush1.bf16.msra.mxu0 %v5512
        %6543 = vmatprep.subr.bf16.mxu0 %v5520
        %6544 = vmatpush1.bf16.msra.mxu0 %v5519
        %6545 = vmatprep.subr.bf16.mxu0 %v5527
        %6546 = vmatpush1.bf16.msra.mxu0 %v5526
        %6547 = vmatprep.subr.bf16.mxu0 %v5534
        %6548 = vmatpush1.bf16.msra.mxu0 %v5533
        %6549 = vmatprep.subr.bf16.mxu0 %v5541
        %6550 = vmatpush1.bf16.msra.mxu0 %v5540
        %6551 = vmatprep.subr.bf16.mxu0 %v5548
        %6552 = vmatpush1.bf16.msra.mxu0 %v5547
        %6553 = vmatprep.subr.bf16.mxu0 %v5555
        %6554 = vmatpush1.bf16.msra.mxu0 %v5554
        %6555 = vmatprep.subr.bf16.mxu0 %v5562
        %6556 = vmatpush1.bf16.msra.mxu0 %v5561
        %6557 = vmatprep.subr.bf16.mxu0 %v5569
        %6558 = vmatpush1.bf16.msra.mxu0 %v5568
        %6559 = vmatprep.subr.bf16.mxu0 %v5576
        %6560 = vmatpush1.bf16.msra.mxu0 %v5575
        %6561 = vmatprep.subr.bf16.mxu0 %v5583
        %6562 = vmatpush1.bf16.msra.mxu0 %v5582
        %6563 = vmatprep.subr.bf16.mxu0 %v5590
        %6564 = vmatpush1.bf16.msra.mxu0 %v5589
        %6565 = vmatprep.subr.bf16.mxu0 %v5597
        %6566 = vmatpush1.bf16.msra.mxu0 %v5596
        %6567 = vmatprep.subr.bf16.mxu0 %v5604
        %6568 = vmatpush1.bf16.msra.mxu0 %v5603
        %6569 = vmatprep.subr.bf16.mxu0 %v5611
        %6570 = vmatpush1.bf16.msra.mxu0 %v5610
        %6571 = vmatprep.subr.bf16.mxu0 %v5618
        %6572 = vmatpush1.bf16.msra.mxu0 %v5617
        %6573 = vmatprep.mubr.bf16.mxu0 %v3214
        %6574 = vmatmul.mubr.bf16.gmra.mrb[0].mxu0 %v3213
        %v6575 = vpop.f32.mrb[0].mxu0
        %v6576 = vadd.f32 %v6533, %v6575
        %v6577 = vpop.f32.mrb[0].mxu0
        %v6578 = vadd.f32 %v6535, %v6577
        %v6579 = vpop.f32.mrb[0].mxu0
        %v6580 = vadd.f32 %v6537, %v6579
        %v6581 = vpop.f32.mrb[0].mxu0
        %v6582 = vadd.f32 %v6539, %v6581
        %6583 = vdwg.mxu0
        %6584 = vmatprep.subr.bf16.mxu0 0
        %6585 = vmatpush1.bf16.msra.mxu0 %v5178
        %6586 = vmatprep.subr.bf16.mxu0 0
        %6587 = vmatpush1.bf16.msra.mxu0 %v5185
        %6588 = vmatprep.subr.bf16.mxu0 0
        %6589 = vmatpush1.bf16.msra.mxu0 %v5192
        %6590 = vmatprep.subr.bf16.mxu0 0
        %6591 = vmatpush1.bf16.msra.mxu0 %v5199
        %6592 = vmatprep.subr.bf16.mxu0 0
        %6593 = vmatpush1.bf16.msra.mxu0 %v5206
        %6594 = vmatprep.subr.bf16.mxu0 0
        %6595 = vmatpush1.bf16.msra.mxu0 %v5213
        %6596 = vmatprep.subr.bf16.mxu0 0
        %6597 = vmatpush1.bf16.msra.mxu0 %v5220
        %6598 = vmatprep.subr.bf16.mxu0 0
        %6599 = vmatpush1.bf16.msra.mxu0 %v5227
        %6600 = vmatprep.subr.bf16.mxu0 0
        %6601 = vmatpush1.bf16.msra.mxu0 %v5234
        %6602 = vmatprep.subr.bf16.mxu0 0
        %6603 = vmatpush1.bf16.msra.mxu0 %v5241
        %6604 = vmatprep.subr.bf16.mxu0 0
        %6605 = vmatpush1.bf16.msra.mxu0 %v5248
        %6606 = vmatprep.subr.bf16.mxu0 0
        %6607 = vmatpush1.bf16.msra.mxu0 %v5255
        %6608 = vmatprep.subr.bf16.mxu0 0
        %6609 = vmatpush1.bf16.msra.mxu0 %v5262
        %6610 = vmatprep.subr.bf16.mxu0 0
        %6611 = vmatpush1.bf16.msra.mxu0 %v5269
        %6612 = vmatprep.subr.bf16.mxu0 0
        %6613 = vmatpush1.bf16.msra.mxu0 %v5276
        %6614 = vmatprep.subr.bf16.mxu0 0
        %6615 = vmatpush1.bf16.msra.mxu0 %v5283
        %6616 = vmatprep.mubr.bf16.mxu0 %v3208
        %6617 = vmatmul.mubr.bf16.gmra.mrb[0].mxu0 %v3207
        %v6618 = vpop.f32.mrb[0].mxu0
        %v6619 = vadd.f32 %v3756, %v6618
        %v6620 = vpop.f32.mrb[0].mxu0
        %v6621 = vpop.f32.mrb[0].mxu0
        %v6622 = vadd.f32 %v3756, %v6621
        %v6623 = vpop.f32.mrb[0].mxu0
        %6624 = vdwg.mxu0
        %6625 = vmatprep.subr.bf16.mxu0 0
        %6626 = vmatpush1.bf16.msra.mxu0 %v5290
        %6627 = vmatprep.subr.bf16.mxu0 0
        %6628 = vmatpush1.bf16.msra.mxu0 %v5297
        %6629 = vmatprep.subr.bf16.mxu0 0
        %6630 = vmatpush1.bf16.msra.mxu0 %v5304
        %6631 = vmatprep.subr.bf16.mxu0 0
        %6632 = vmatpush1.bf16.msra.mxu0 %v5311
        %6633 = vmatprep.subr.bf16.mxu0 0
        %6634 = vmatpush1.bf16.msra.mxu0 %v5318
        %6635 = vmatprep.subr.bf16.mxu0 0
        %6636 = vmatpush1.bf16.msra.mxu0 %v5325
        %6637 = vmatprep.subr.bf16.mxu0 0
        %6638 = vmatpush1.bf16.msra.mxu0 %v5332
        %6639 = vmatprep.subr.bf16.mxu0 0
        %6640 = vmatpush1.bf16.msra.mxu0 %v5339
        %6641 = vmatprep.subr.bf16.mxu0 0
        %6642 = vmatpush1.bf16.msra.mxu0 %v5346
        %6643 = vmatprep.subr.bf16.mxu0 0
        %6644 = vmatpush1.bf16.msra.mxu0 %v5353
        %6645 = vmatprep.subr.bf16.mxu0 0
        %6646 = vmatpush1.bf16.msra.mxu0 %v5360
        %6647 = vmatprep.subr.bf16.mxu0 0
        %6648 = vmatpush1.bf16.msra.mxu0 %v5367
        %6649 = vmatprep.subr.bf16.mxu0 0
        %6650 = vmatpush1.bf16.msra.mxu0 %v5374
        %6651 = vmatprep.subr.bf16.mxu0 0
        %6652 = vmatpush1.bf16.msra.mxu0 %v5381
        %6653 = vmatprep.subr.bf16.mxu0 0
        %6654 = vmatpush1.bf16.msra.mxu0 %v5388
        %6655 = vmatprep.subr.bf16.mxu0 0
        %6656 = vmatpush1.bf16.msra.mxu0 %v5395
        %6657 = vmatprep.mubr.bf16.mxu0 %v3210
        %6658 = vmatmul.mubr.bf16.gmra.mrb[0].mxu0 %v3209
        %v6659 = vpop.f32.mrb[0].mxu0
        %v6660 = vadd.f32 %v6619, %v6659
        %v6661 = vpop.f32.mrb[0].mxu0
        %v6662 = vpop.f32.mrb[0].mxu0
        %v6663 = vadd.f32 %v6622, %v6662
        %v6664 = vpop.f32.mrb[0].mxu0
        %6665 = vdwg.mxu0
        %6666 = vmatprep.subr.bf16.mxu0 0
        %6667 = vmatpush1.bf16.msra.mxu0 %v5402
        %6668 = vmatprep.subr.bf16.mxu0 0
        %6669 = vmatpush1.bf16.msra.mxu0 %v5409
        %6670 = vmatprep.subr.bf16.mxu0 0
        %6671 = vmatpush1.bf16.msra.mxu0 %v5416
        %6672 = vmatprep.subr.bf16.mxu0 0
        %6673 = vmatpush1.bf16.msra.mxu0 %v5423
        %6674 = vmatprep.subr.bf16.mxu0 0
        %6675 = vmatpush1.bf16.msra.mxu0 %v5430
        %6676 = vmatprep.subr.bf16.mxu0 0
        %6677 = vmatpush1.bf16.msra.mxu0 %v5437
        %6678 = vmatprep.subr.bf16.mxu0 0
        %6679 = vmatpush1.bf16.msra.mxu0 %v5444
        %6680 = vmatprep.subr.bf16.mxu0 0
        %6681 = vmatpush1.bf16.msra.mxu0 %v5451
        %6682 = vmatprep.subr.bf16.mxu0 0
        %6683 = vmatpush1.bf16.msra.mxu0 %v5458
        %6684 = vmatprep.subr.bf16.mxu0 0
        %6685 = vmatpush1.bf16.msra.mxu0 %v5465
        %6686 = vmatprep.subr.bf16.mxu0 0
        %6687 = vmatpush1.bf16.msra.mxu0 %v5472
        %6688 = vmatprep.subr.bf16.mxu0 0
        %6689 = vmatpush1.bf16.msra.mxu0 %v5479
        %6690 = vmatprep.subr.bf16.mxu0 0
        %6691 = vmatpush1.bf16.msra.mxu0 %v5486
        %6692 = vmatprep.subr.bf16.mxu0 0
        %6693 = vmatpush1.bf16.msra.mxu0 %v5493
        %6694 = vmatprep.subr.bf16.mxu0 0
        %6695 = vmatpush1.bf16.msra.mxu0 %v5500
        %6696 = vmatprep.subr.bf16.mxu0 0
        %6697 = vmatpush1.bf16.msra.mxu0 %v5507
        %6698 = vmatprep.mubr.bf16.mxu0 %v3212
        %6699 = vmatmul.mubr.bf16.gmra.mrb[0].mxu0 %v3211
        %v6700 = vpop.f32.mrb[0].mxu0
        %v6701 = vadd.f32 %v6660, %v6700
        %v6702 = vpop.f32.mrb[0].mxu0
        %v6703 = vpop.f32.mrb[0].mxu0
        %v6704 = vadd.f32 %v6663, %v6703
        %v6705 = vpop.f32.mrb[0].mxu0
        %6706 = vdwg.mxu0
        %6707 = vmatprep.subr.bf16.mxu0 0
        %6708 = vmatpush1.bf16.msra.mxu0 %v5514
        %6709 = vmatprep.subr.bf16.mxu0 0
        %6710 = vmatpush1.bf16.msra.mxu0 %v5521
        %6711 = vmatprep.subr.bf16.mxu0 0
        %6712 = vmatpush1.bf16.msra.mxu0 %v5528
        %6713 = vmatprep.subr.bf16.mxu0 0
        %6714 = vmatpush1.bf16.msra.mxu0 %v5535
        %6715 = vmatprep.subr.bf16.mxu0 0
        %6716 = vmatpush1.bf16.msra.mxu0 %v5542
        %6717 = vmatprep.subr.bf16.mxu0 0
        %6718 = vmatpush1.bf16.msra.mxu0 %v5549
        %6719 = vmatprep.subr.bf16.mxu0 0
        %6720 = vmatpush1.bf16.msra.mxu0 %v5556
        %6721 = vmatprep.subr.bf16.mxu0 0
        %6722 = vmatpush1.bf16.msra.mxu0 %v5563
        %6723 = vmatprep.subr.bf16.mxu0 0
        %6724 = vmatpush1.bf16.msra.mxu0 %v5570
        %6725 = vmatprep.subr.bf16.mxu0 0
        %6726 = vmatpush1.bf16.msra.mxu0 %v5577
        %6727 = vmatprep.subr.bf16.mxu0 0
        %6728 = vmatpush1.bf16.msra.mxu0 %v5584
        %6729 = vmatprep.subr.bf16.mxu0 0
        %6730 = vmatpush1.bf16.msra.mxu0 %v5591
        %6731 = vmatprep.subr.bf16.mxu0 0
        %6732 = vmatpush1.bf16.msra.mxu0 %v5598
        %6733 = vmatprep.subr.bf16.mxu0 0
        %6734 = vmatpush1.bf16.msra.mxu0 %v5605
        %6735 = vmatprep.subr.bf16.mxu0 0
        %6736 = vmatpush1.bf16.msra.mxu0 %v5612
        %6737 = vmatprep.subr.bf16.mxu0 0
        %6738 = vmatpush1.bf16.msra.mxu0 %v5619
        %6739 = vmatprep.mubr.bf16.mxu0 %v3214
        %6740 = vmatmul.mubr.bf16.gmra.mrb[0].mxu0 %v3213
        %v6741 = vpop.f32.mrb[0].mxu0
        %v6742 = vadd.f32 %v6701, %v6741
        %v6743 = vpop.f32.mrb[0].mxu0
        %v6744 = vpop.f32.mrb[0].mxu0
        %v6745 = vadd.f32 %v6704, %v6744
        %v6746 = vpop.f32.mrb[0].mxu0
        %6747 = vdwg.mxu0
        %v6748 = vpack.c.bf16 %v6236, %v6232
        %v6749 = vpack.c.bf16 %v6238, %v6234
        %v6750 = vpack.c.bf16 %v6408, %v6404
        %v6751 = vpack.c.bf16 %v6410, %v6406
        %v6752 = vpack.c.bf16 %v6580, %v6576
        %v6753 = vpack.c.bf16 %v6582, %v6578
        %v6754 = vpack.c.bf16 %v6745, %v6742
        %v6755 = vtanh.bf16.pop %v6748
        %v6756 = vtanh.bf16.pop %v6749
        %v6757 = vtanh.bf16.pop %v6750
        %v6758 = vtanh.bf16.pop %v6751
        %v6759 = vtanh.bf16.pop %v6752
        %v6760 = vtanh.bf16.pop %v6753
        %v6761 = vtanh.bf16.pop %v6754
        %v6769 = vunpack.c.l.b16 %v6755
        %v6770 = vunpack.c.l.b16 %v6756
        %v6771 = vunpack.c.l.b16 %v6757
        %v6772 = vunpack.c.l.b16 %v6758
        %v6773 = vunpack.c.l.b16 %v6759
        %v6774 = vunpack.c.l.b16 %v6760
        %v6775 = vunpack.c.l.b16 %v6761
        %v6776 = vunpack.c.h.b16 %v6755
        %v6777 = vunpack.c.h.b16 %v6756
        %v6778 = vunpack.c.h.b16 %v6757
        %v6779 = vunpack.c.h.b16 %v6758
        %v6780 = vunpack.c.h.b16 %v6759
        %v6781 = vunpack.c.h.b16 %v6760
        %v6782 = vunpack.c.h.b16 %v6761
        %v6783 = vpack.c.b16 %v6770, %v6769
        %v6784 = vpack.c.b16 %v6772, %v6771
        %v6785 = vpack.c.b16 %v6774, %v6773
        %v6786 = vpack.c.b16 %v6775, %v6775
        %v6787 = vpack.c.b16 %v6777, %v6776
        %v6788 = vpack.c.b16 %v6779, %v6778
        %v6789 = vpack.c.b16 %v6781, %v6780
        %v6790 = vpack.c.b16 %v6782, %v6782
        %6799 = vst [vmem:[%s445] sm:$0xff] %v6783
        %6800 = vst [vmem:[%s445 + $0x8] sm:$0xff] %v6784
        %6801 = vst [vmem:[%s445 + $0x10] sm:$0xff] %v6785
        %6802 = vst [vmem:[%s445 + $0x18] sm:$0xf] %v6786
        %6803 = vst [vmem:[%s445 + $0x1c] sm:$0xff] %v6787
        %6804 = vst [vmem:[%s445 + $0x24] sm:$0xff] %v6788
        %6805 = vst [vmem:[%s445 + $0x2c] sm:$0xff] %v6789
        %6806 = vst [vmem:[%s445 + $0x34] sm:$0xf] %v6790
        %s6807 = smul.u32 2, %s25
        %p6808 = scmp.lt.s32.totalorder %s6807, 5
        %s6809 = scalar_select %p6808, %s6807, 5
        %s6810 = smul.addr %s6809, 7
        %s6811 = smul.addr %s6810, 4
        %s6812 = scalar_lea.vmem %s9, %s6811
        // Predicated region
        $region89: #{generator_forward.1} parent=55 // pred_check
          %p6813 = pneg %p237
        $region90: #{generator_forward.1} parent=55 // pred_check_branch
          %6815 = sbr.rel (%p6813) target = $region92
        $region91: #{generator_forward.1} parent=55 // pred_region
          %s6816 = smul.u32 2, %s25
        $region92: #{generator_forward.1} parent=55 // pred_fallthru
          _
      $region56: #{generator_forward.1} parent=5 // pred_fallthru
        _
      %p6817 = scmp.le.s32.totalorder 2, %s20
      // Predicated region
      $region93: #{generator_forward.1} parent=5 // pred_check
        %p6818 = pneg %p6817
      $region94: #{generator_forward.1} parent=5 // pred_check_branch
        %6820 = sbr.rel (%p6818) target = $region96
      $region95: #{generator_forward.1} parent=5 // pred_region
        %s6821 = ssub.s32 %s20, 2
        // Predicated region
        $region97: #{generator_forward.1} parent=95 // pred_check
          %p6822 = pneg %p243
        $region98: #{generator_forward.1} parent=95 // pred_check_branch
          %6824 = sbr.rel (%p6822) target = $region100
        $region99: #{generator_forward.1} parent=95 // pred_region
          %s6825 = smul.u32 2, %s26
          %p6826 = scmp.lt.s32.totalorder %s6825, 5
          %s6827 = scalar_select %p6826, %s6825, 5
          %s6828 = smul.addr %s6827, 7
          %s6829 = smul.addr %s6828, 4
          %s6830 = scalar_lea.vmem %s9, %s6829
        $region100: #{generator_forward.1} parent=95 // pred_fallthru
          _
      $region96: #{generator_forward.1} parent=5 // pred_fallthru
        _
    $region6: #{generator_forward.1} parent=1 // loop_footer
      %s24 = sadd.s32 1, %s20
    $region7: #{generator_forward.1} parent=1 // loop_footer_branch
      %19 = sbr.rel target = $region3
    $region8: #{generator_forward.1} parent=1 // loop_exit
      _
    %6831 = vsyncpa [#allocation3], 1
    %s6832 = scalar_lea.sflag [#allocation3], 1
    %6833 = vsyncpa %s6832, 1
    %6834 = vsyncpa [#allocation5], 1
    %6835 = vsyncpa [#allocation8], 1
    %6836 = vsyncpa [#allocation11], 1
    %6837 = vsyncpa [#allocation14], 1

</llo_original>
